<compile_context>
chip_gen: v6e
topology: v6e:2x2x1
jax: 0.10.0
libtpu: 0.0.40
codegen_flags: <defaults>
</compile_context>

<pallas_src>
import math
import functools

import jax
import jax.numpy as jnp
from jax.experimental import pallas as pl
from jax.experimental.pallas import tpu as pltpu

INPUT_DIM = 2
EMBED_DIM = 128
HIDDEN_DIM = 256
NUM_HEADS = 4
NUM_LAYERS = 2
HEAD_DIM = EMBED_DIM // NUM_HEADS
BN_EPS = 1e-5


def _mm(a, b, dtype):
    """MXU matmul: operands cast to `dtype` (f32 or bf16), f32 accumulation."""
    return jnp.dot(a.astype(dtype), b.astype(dtype),
                   preferred_element_type=jnp.float32)


def _bn(x, w, b):
    """Training-mode BatchNorm1d over the flattened (B*M) token axis.

    Centered two-pass stats (mean, then mean((x-mean)^2)), all in f32, so the
    kernel tracks the pure-f32 reference even for features whose batch
    variance is tiny; the single-pass E[x^2]-E[x]^2 form loses ~1e-6 absolute
    on var to cancellation which 1/sqrt(var+eps) amplifies past the check
    tolerance at BM=16.
    """
    # TODO(synk): with a token-tiled grid, accumulate cross-tile sum/sum^2 into
    # VMEM scratch over an "arbitrary" sweep and normalize in a second pass;
    # per-tile stats would silently change semantics.
    mean = jnp.mean(x, axis=0, keepdims=True)
    d = x - mean                                   # reused for var and output
    var = jnp.mean(d * d, axis=0, keepdims=True)
    return d * jax.lax.rsqrt(var + BN_EPS) * w + b


# ---------------------------------------------------------------------------
# Single fused kernel: AgentEmbedding + NUM_LAYERS x MultiHeadAttentionLayer
# ---------------------------------------------------------------------------
def encoder_kernel(B, M, matmul_dtype,
                   xin_ref, w_in_ref, b_in_ref,
                   wqkv_ref, wo_ref, bn1w_ref, bn1b_ref,
                   w1_ref, b1_ref, w2_ref, b2_ref, bn2w_ref, bn2b_ref,
                   out_ref):
    BM = B * M
    E = EMBED_DIM
    D = HEAD_DIM
    mm = functools.partial(_mm, dtype=matmul_dtype)

    # --- AgentEmbedding (fully folded in the wrapper): h = [last|cur]@W_in + c
    # Single K=4 MXU matmul; kept f32 (tiny, feeds a variance-normalizing BN).
    h = jnp.dot(xin_ref[...], w_in_ref[...],
                preferred_element_type=jnp.float32) + b_in_ref[...]   # [BM, E]

    # --- attention layers (statically unrolled; all weights VMEM-resident) --
    for l in range(NUM_LAYERS):
        # Fused Q/K/V projection: one lane-dense [BM,E]@[E,3E] MXU matmul.
        # 1/sqrt(HEAD_DIM) is pre-folded into the Q columns (see fuse_params).
        qkv = mm(h, wqkv_ref[l]).reshape(B, M, 3 * E)
        wo_l = wo_ref[l]                                    # [H*D, E] = [E, E]

        # Per-head attention; each head's output goes straight through its
        # [D,E] row-slice of Wo and is accumulated into a [BM,E] f32
        # accumulator — no 32-lane concat / lane relayout, no extra Wo matmul.
        mha = jnp.zeros((BM, E), jnp.float32)
        for hd in range(NUM_HEADS):
            q = qkv[:, :, 0 * E + hd * D: 0 * E + (hd + 1) * D]
            k = qkv[:, :, 1 * E + hd * D: 1 * E + (hd + 1) * D]
            v = qkv[:, :, 2 * E + hd * D: 2 * E + (hd + 1) * D]
            s = jnp.einsum('bmd,bnd->bmn',
                           q.astype(matmul_dtype), k.astype(matmul_dtype),
                           preferred_element_type=jnp.float32)   # scale folded
            s = s - jnp.max(s, axis=-1, keepdims=True)
            p = jnp.exp(s)
            # Exact reciprocal: approx=True (EUP vrcp) is ~free but its ~2e-4
            # relative error is amplified by the downstream BatchNorms to
            # ~3e-2 at this tiny batch, which broke the reference check.
            a = p * pl.reciprocal(jnp.sum(p, axis=-1, keepdims=True),
                                  approx=False)
            o = jnp.einsum('bmn,bnd->bmd',
                           a.astype(matmul_dtype), v.astype(matmul_dtype),
                           preferred_element_type=jnp.float32)   # [B, M, D]
            mha = mha + mm(o.reshape(BM, D), wo_l[hd * D:(hd + 1) * D, :])

        h1 = _bn(h + mha, bn1w_ref[l], bn1b_ref[l])               # [BM, E]
        ff = jnp.maximum(mm(h1, w1_ref[l]) + b1_ref[l], 0.0)      # [BM, HIDDEN]
        ff = mm(ff, w2_ref[l]) + b2_ref[l]                        # [BM, E]
        h = _bn(h1 + ff, bn2w_ref[l], bn2b_ref[l])

    out_ref[...] = h.reshape(B, M, E)


# ---------------------------------------------------------------------------
# Wrapper
# ---------------------------------------------------------------------------
def fuse_params(params, matmul_dtype=jnp.float32):
    """Fold AgentEmbedding, fold the attention scale into Q, repack weights
    lane-dense, and pre-cast the MXU operands to `matmul_dtype` — all once."""
    E = EMBED_DIM
    inv_sqrt_d = 1.0 / math.sqrt(HEAD_DIM)

    wa_top, wa_bot = params['wa'][:E, :], params['wa'][E:, :]
    w_in = jnp.concatenate([params['wl'] @ wa_top, params['wc'] @ wa_bot], axis=0)
    b_in = params['bl'] @ wa_top + params['bc'] @ wa_bot + params['ba']

    def head_concat(w):                      # [H, E, D] -> [E, H*D] = [E, E]
        return jnp.transpose(w, (1, 0, 2)).reshape(E, E)

    wqkv, wo = [], []
    for lp in params['layers']:
        wqkv.append(jnp.concatenate(
            [head_concat(lp['wq']) * inv_sqrt_d,         # fold 1/sqrt(D) into Q
             head_concat(lp['wk']),
             head_concat(lp['wv'])], axis=-1))           # [E, 3E]
        wo.append(lp['wo'].reshape(E, E))                # [H*D, E]

    stack = lambda k: jnp.stack([lp[k] for lp in params['layers']])
    cast = lambda x: x.astype(matmul_dtype)              # pre-cast MXU weights once
    return dict(
        w_in=w_in, b_in=b_in,                            # embedding stays f32
        wqkv=cast(jnp.stack(wqkv)), wo=cast(jnp.stack(wo)),
        bn1w=stack('bn1w'), bn1b=stack('bn1b'),
        w1=cast(stack('w1')), b1=stack('b1'),
        w2=cast(stack('w2')), b2=stack('b2'),
        bn2w=stack('bn2w'), bn2b=stack('bn2b'),
    )


@jax.jit
def agent_encoder(last, cur, fused):
    B, M, _ = last.shape
    matmul_dtype = fused['wqkv'].dtype                   # static under jit
    xin = jnp.concatenate([last, cur], axis=-1).reshape(B * M, 2 * INPUT_DIM)

    # Scoped-VMEM budget from the actual weight + resident-activation bytes,
    # 4x headroom, >=16 MiB, capped well under v7x's 64 MiB physical VMEM.
    weight_bytes = sum(int(v.size) * v.dtype.itemsize for v in fused.values())
    act_bytes = B * M * (6 * EMBED_DIM + HIDDEN_DIM) * 4
    vmem_limit = int(min(48 * 2**20,
                         max(16 * 2**20, 4 * (weight_bytes + act_bytes))))

    vmem = lambda: pl.BlockSpec(memory_space=pltpu.MemorySpace.VMEM)
    return pl.pallas_call(
        functools.partial(encoder_kernel, B, M, matmul_dtype),
        out_shape=jax.ShapeDtypeStruct((B, M, EMBED_DIM), jnp.float32),
        in_specs=[vmem() for _ in range(13)],
        out_specs=vmem(),
        compiler_params=pltpu.CompilerParams(vmem_limit_bytes=vmem_limit),
    )(xin, fused['w_in'], fused['b_in'],
      fused['wqkv'], fused['wo'], fused['bn1w'], fused['bn1b'],
      fused['w1'], fused['b1'], fused['w2'], fused['b2'],
      fused['bn2w'], fused['bn2b'])


# ---------------------------------------------------------------------------
# Deterministic parameter init (shapes from AgentEncoder.__init__ defaults)
# ---------------------------------------------------------------------------
def init_params(key):
    keys = iter(jax.random.split(key, 64))

    def uni(fan_in, shape):
        bound = 1.0 / math.sqrt(fan_in)
        return jax.random.uniform(next(keys), shape, jnp.float32, -bound, bound)

    params = {
        'wl': uni(INPUT_DIM, (INPUT_DIM, EMBED_DIM)),
        'bl': uni(INPUT_DIM, (1, EMBED_DIM)),
        'wc': uni(INPUT_DIM, (INPUT_DIM, EMBED_DIM)),
        'bc': uni(INPUT_DIM, (1, EMBED_DIM)),
        'wa': uni(2 * EMBED_DIM, (2 * EMBED_DIM, EMBED_DIM)),
        'ba': uni(2 * EMBED_DIM, (1, EMBED_DIM)),
        'layers': [],
    }
    for _ in range(NUM_LAYERS):
        params['layers'].append({
            'wq': uni(EMBED_DIM, (NUM_HEADS, EMBED_DIM, HEAD_DIM)),
            'wk': uni(EMBED_DIM, (NUM_HEADS, EMBED_DIM, HEAD_DIM)),
            'wv': uni(EMBED_DIM, (NUM_HEADS, EMBED_DIM, HEAD_DIM)),
            'wo': uni(HEAD_DIM, (NUM_HEADS, HEAD_DIM, EMBED_DIM)),
            'bn1w': jnp.ones((1, EMBED_DIM), jnp.float32),
            'bn1b': jnp.zeros((1, EMBED_DIM), jnp.float32),
            'w1': uni(EMBED_DIM, (EMBED_DIM, HIDDEN_DIM)),
            'b1': uni(EMBED_DIM, (1, HIDDEN_DIM)),
            'w2': uni(HIDDEN_DIM, (HIDDEN_DIM, EMBED_DIM)),
            'b2': uni(HIDDEN_DIM, (1, EMBED_DIM)),
            'bn2w': jnp.ones((1, EMBED_DIM), jnp.float32),
            'bn2b': jnp.zeros((1, EMBED_DIM), jnp.float32),
        })
    return params


# ---------------------------------------------------------------------------
# Pure-JAX reference (mirrors the PyTorch forward) for the correctness check.
# ---------------------------------------------------------------------------
def reference(last, cur, params):
    le = last @ params['wl'] + params['bl']
    ce = cur @ params['wc'] + params['bc']
    h = jnp.concatenate([le, ce], axis=-1) @ params['wa'] + params['ba']
    for lp in params['layers']:
        q = jnp.einsum('bme,hed->hbmd', h, lp['wq'])
        k = jnp.einsum('bme,hed->hbmd', h, lp['wk'])
        v = jnp.einsum('bme,hed->hbmd', h, lp['wv'])
        s = jnp.einsum('hbmd,hbnd->hbmn', q, k) / math.sqrt(HEAD_DIM)
        a = jax.nn.softmax(s, axis=-1)
        o = jnp.einsum('hbmn,hbnd->hbmd', a, v)
        mha = jnp.einsum('hbmd,hde->bme', o, lp['wo'])
        h1 = h + mha
        mean = jnp.mean(h1, axis=(0, 1), keepdims=True)
        var = jnp.mean((h1 - mean) ** 2, axis=(0, 1), keepdims=True)
        h1 = (h1 - mean) * jax.lax.rsqrt(var + BN_EPS) * lp['bn1w'] + lp['bn1b']
        ff = jnp.maximum(h1 @ lp['w1'] + lp['b1'], 0.0) @ lp['w2'] + lp['b2']
        h2 = h1 + ff
        mean = jnp.mean(h2, axis=(0, 1), keepdims=True)
        var = jnp.mean((h2 - mean) ** 2, axis=(0, 1), keepdims=True)
        h = (h2 - mean) * jax.lax.rsqrt(var + BN_EPS) * lp['bn2w'] + lp['bn2b']
    return h


if __name__ == "__main__":
    key = jax.random.PRNGKey(0)
    k_params, k_last, k_cur = jax.random.split(key, 3)

    B, M = 2, 8  # 2 batches, 8 agents
    params = init_params(k_params)
    last_city = jax.random.uniform(k_last, (B, M, INPUT_DIM), jnp.float32)
    cur_city = jax.random.uniform(k_cur, (B, M, INPUT_DIM), jnp.float32)

    # f32 MXU path: verified against the PyTorch-mirroring reference.
    fused_f32 = fuse_params(params, jnp.float32)
    out = jax.block_until_ready(agent_encoder(last_city, cur_city, fused_f32))
    ref = reference(last_city, cur_city, params)
    assert out.shape == (B, M, EMBED_DIM)
    max_err = float(jnp.max(jnp.abs(out - ref)))
    assert jnp.allclose(out, ref, rtol=1e-2, atol=1e-2), (
        f"mismatch vs reference: max abs err {max_err}")

    # bf16 MXU path (production setting on v5e/v6e/v7x): smoke run.  The
    # training-mode BatchNorms amplify bf16 rounding unboundedly at this tiny,
    # near-degenerate B*M=16, so only finiteness/shape are asserted here.
    fused_bf16 = fuse_params(params, jnp.bfloat16)
    out_bf16 = jax.block_until_ready(agent_encoder(last_city, cur_city, fused_bf16))
    assert out_bf16.shape == (B, M, EMBED_DIM)
    assert bool(jnp.all(jnp.isfinite(out_bf16)))

    print("KERNEL_OK")
</pallas_src>

<mosaic_0001>
module attributes {stable_mosaic.version = 11 : i64} {
  func.func @encoder_kernel(%arg0: memref<16x4xf32, #tpu.memory_space<vmem>>, %arg1: memref<4x128xf32, #tpu.memory_space<vmem>>, %arg2: memref<1x128xf32, #tpu.memory_space<vmem>>, %arg3: memref<2x128x384xf32, #tpu.memory_space<vmem>>, %arg4: memref<2x128x128xf32, #tpu.memory_space<vmem>>, %arg5: memref<2x1x128xf32, #tpu.memory_space<vmem>>, %arg6: memref<2x1x128xf32, #tpu.memory_space<vmem>>, %arg7: memref<2x128x256xf32, #tpu.memory_space<vmem>>, %arg8: memref<2x1x256xf32, #tpu.memory_space<vmem>>, %arg9: memref<2x256x128xf32, #tpu.memory_space<vmem>>, %arg10: memref<2x1x128xf32, #tpu.memory_space<vmem>>, %arg11: memref<2x1x128xf32, #tpu.memory_space<vmem>>, %arg12: memref<2x1x128xf32, #tpu.memory_space<vmem>>, %arg13: memref<2x8x128xf32, #tpu.memory_space<vmem>>) attributes {dimension_semantics = [], scalar_prefetch = 0 : i64, scratch_operands = 0 : i64, tpu.core_type = #tpu.core_type<tc>} {
    %c0 = arith.constant 0 : index
    %c0_0 = arith.constant 0 : index
    %0 = vector.load %arg0[%c0, %c0_0] : memref<16x4xf32, #tpu.memory_space<vmem>>, vector<16x4xf32>
    %c0_1 = arith.constant 0 : index
    %c0_2 = arith.constant 0 : index
    %1 = vector.load %arg1[%c0_1, %c0_2] : memref<4x128xf32, #tpu.memory_space<vmem>>, vector<4x128xf32>
    %cst = arith.constant dense<0.000000e+00> : vector<16x128xf32>
    %2 = tpu.matmul %0, %1, %cst {dimension_numbers = #tpu.dot_dimension_numbers<[1], [0], [0], [1], [0, 0, 1, 1], [], []>} : vector<16x4xf32>, vector<4x128xf32>, vector<16x128xf32> -> vector<16x128xf32>
    %c0_3 = arith.constant 0 : index
    %c0_4 = arith.constant 0 : index
    %3 = vector.load %arg2[%c0_3, %c0_4] : memref<1x128xf32, #tpu.memory_space<vmem>>, vector<1x128xf32>
    %4 = vector.broadcast %3 : vector<1x128xf32> to vector<16x128xf32>
    %5 = arith.addf %2, %4 : vector<16x128xf32>
    %c0_5 = arith.constant 0 : index
    %c0_6 = arith.constant 0 : index
    %c0_7 = arith.constant 0 : index
    %6 = vector.load %arg3[%c0_5, %c0_6, %c0_7] : memref<2x128x384xf32, #tpu.memory_space<vmem>>, vector<1x128x384xf32>
    %7 = vector.shape_cast %6 : vector<1x128x384xf32> to vector<128x384xf32>
    %cst_8 = arith.constant dense<0.000000e+00> : vector<16x384xf32>
    %8 = tpu.matmul %5, %7, %cst_8 {dimension_numbers = #tpu.dot_dimension_numbers<[1], [0], [0], [1], [0, 0, 1, 1], [], []>} : vector<16x128xf32>, vector<128x384xf32>, vector<16x384xf32> -> vector<16x384xf32>
    %9 = vector.shape_cast %8 : vector<16x384xf32> to vector<2x8x384xf32>
    %c0_9 = arith.constant 0 : index
    %c0_10 = arith.constant 0 : index
    %c0_11 = arith.constant 0 : index
    %10 = vector.load %arg4[%c0_9, %c0_10, %c0_11] : memref<2x128x128xf32, #tpu.memory_space<vmem>>, vector<1x128x128xf32>
    %11 = vector.shape_cast %10 : vector<1x128x128xf32> to vector<128x128xf32>
    %cst_12 = arith.constant 0.000000e+00 : f32
    %12 = vector.broadcast %cst_12 : f32 to vector<16x128xf32>
    %13 = vector.extract_strided_slice %9 {offsets = [0, 0, 0], sizes = [2, 8, 32], strides = [1, 1, 1]} : vector<2x8x384xf32> to vector<2x8x32xf32>
    %14 = vector.extract_strided_slice %9 {offsets = [0, 0, 128], sizes = [2, 8, 32], strides = [1, 1, 1]} : vector<2x8x384xf32> to vector<2x8x32xf32>
    %15 = vector.extract_strided_slice %9 {offsets = [0, 0, 256], sizes = [2, 8, 32], strides = [1, 1, 1]} : vector<2x8x384xf32> to vector<2x8x32xf32>
    "tpu.trace_start"() <{level = 10 : i32, message = "bmd,bnd->bmn"}> : () -> ()
    %cst_13 = arith.constant dense<0.000000e+00> : vector<2x8x8xf32>
    %16 = tpu.matmul %13, %14, %cst_13 {dimension_numbers = #tpu.dot_dimension_numbers<[2], [2], [1], [1], [0, 0, 0, 1, 1, 1], [0], [0]>} : vector<2x8x32xf32>, vector<2x8x32xf32>, vector<2x8x8xf32> -> vector<2x8x8xf32>
    "tpu.trace_stop"() : () -> ()
    %cst_14 = arith.constant dense<0xFF800000> : vector<2x8xf32>
    %17 = vector.multi_reduction <maximumf>, %16, %cst_14 [2] : vector<2x8x8xf32> to vector<2x8xf32>
    %18 = vector.shape_cast %17 : vector<2x8xf32> to vector<2x8x1xf32>
    %19 = vector.broadcast %18 : vector<2x8x1xf32> to vector<2x8x8xf32>
    %20 = arith.subf %16, %19 : vector<2x8x8xf32>
    %21 = math.exp %20 : vector<2x8x8xf32>
    %cst_15 = arith.constant dense<0.000000e+00> : vector<2x8xf32>
    %22 = vector.multi_reduction <add>, %21, %cst_15 [2] : vector<2x8x8xf32> to vector<2x8xf32>
    %23 = vector.shape_cast %22 : vector<2x8xf32> to vector<2x8x1xf32>
    %24 = tpu.reciprocal %23 : vector<2x8x1xf32> -> vector<2x8x1xf32>
    %25 = vector.broadcast %24 : vector<2x8x1xf32> to vector<2x8x8xf32>
    %26 = arith.mulf %21, %25 : vector<2x8x8xf32>
    "tpu.trace_start"() <{level = 10 : i32, message = "bmn,bnd->bmd"}> : () -> ()
    %cst_16 = arith.constant dense<0.000000e+00> : vector<2x8x32xf32>
    %27 = tpu.matmul %26, %15, %cst_16 {dimension_numbers = #tpu.dot_dimension_numbers<[2], [1], [1], [2], [0, 0, 0, 1, 1, 2], [0], [0]>} : vector<2x8x8xf32>, vector<2x8x32xf32>, vector<2x8x32xf32> -> vector<2x8x32xf32>
    "tpu.trace_stop"() : () -> ()
    %28 = vector.shape_cast %27 : vector<2x8x32xf32> to vector<16x32xf32>
    %29 = vector.extract_strided_slice %11 {offsets = [0, 0], sizes = [32, 128], strides = [1, 1]} : vector<128x128xf32> to vector<32x128xf32>
    %cst_17 = arith.constant dense<0.000000e+00> : vector<16x128xf32>
    %30 = tpu.matmul %28, %29, %cst_17 {dimension_numbers = #tpu.dot_dimension_numbers<[1], [0], [0], [1], [0, 0, 1, 1], [], []>} : vector<16x32xf32>, vector<32x128xf32>, vector<16x128xf32> -> vector<16x128xf32>
    %31 = arith.addf %12, %30 : vector<16x128xf32>
    %32 = vector.extract_strided_slice %9 {offsets = [0, 0, 32], sizes = [2, 8, 32], strides = [1, 1, 1]} : vector<2x8x384xf32> to vector<2x8x32xf32>
    %33 = vector.extract_strided_slice %9 {offsets = [0, 0, 160], sizes = [2, 8, 32], strides = [1, 1, 1]} : vector<2x8x384xf32> to vector<2x8x32xf32>
    %34 = vector.extract_strided_slice %9 {offsets = [0, 0, 288], sizes = [2, 8, 32], strides = [1, 1, 1]} : vector<2x8x384xf32> to vector<2x8x32xf32>
    "tpu.trace_start"() <{level = 10 : i32, message = "bmd,bnd->bmn"}> : () -> ()
    %cst_18 = arith.constant dense<0.000000e+00> : vector<2x8x8xf32>
    %35 = tpu.matmul %32, %33, %cst_18 {dimension_numbers = #tpu.dot_dimension_numbers<[2], [2], [1], [1], [0, 0, 0, 1, 1, 1], [0], [0]>} : vector<2x8x32xf32>, vector<2x8x32xf32>, vector<2x8x8xf32> -> vector<2x8x8xf32>
    "tpu.trace_stop"() : () -> ()
    %cst_19 = arith.constant dense<0xFF800000> : vector<2x8xf32>
    %36 = vector.multi_reduction <maximumf>, %35, %cst_19 [2] : vector<2x8x8xf32> to vector<2x8xf32>
    %37 = vector.shape_cast %36 : vector<2x8xf32> to vector<2x8x1xf32>
    %38 = vector.broadcast %37 : vector<2x8x1xf32> to vector<2x8x8xf32>
    %39 = arith.subf %35, %38 : vector<2x8x8xf32>
    %40 = math.exp %39 : vector<2x8x8xf32>
    %cst_20 = arith.constant dense<0.000000e+00> : vector<2x8xf32>
    %41 = vector.multi_reduction <add>, %40, %cst_20 [2] : vector<2x8x8xf32> to vector<2x8xf32>
    %42 = vector.shape_cast %41 : vector<2x8xf32> to vector<2x8x1xf32>
    %43 = tpu.reciprocal %42 : vector<2x8x1xf32> -> vector<2x8x1xf32>
    %44 = vector.broadcast %43 : vector<2x8x1xf32> to vector<2x8x8xf32>
    %45 = arith.mulf %40, %44 : vector<2x8x8xf32>
    "tpu.trace_start"() <{level = 10 : i32, message = "bmn,bnd->bmd"}> : () -> ()
    %cst_21 = arith.constant dense<0.000000e+00> : vector<2x8x32xf32>
    %46 = tpu.matmul %45, %34, %cst_21 {dimension_numbers = #tpu.dot_dimension_numbers<[2], [1], [1], [2], [0, 0, 0, 1, 1, 2], [0], [0]>} : vector<2x8x8xf32>, vector<2x8x32xf32>, vector<2x8x32xf32> -> vector<2x8x32xf32>
    "tpu.trace_stop"() : () -> ()
    %47 = vector.shape_cast %46 : vector<2x8x32xf32> to vector<16x32xf32>
    %48 = vector.extract_strided_slice %11 {offsets = [32, 0], sizes = [32, 128], strides = [1, 1]} : vector<128x128xf32> to vector<32x128xf32>
    %cst_22 = arith.constant dense<0.000000e+00> : vector<16x128xf32>
    %49 = tpu.matmul %47, %48, %cst_22 {dimension_numbers = #tpu.dot_dimension_numbers<[1], [0], [0], [1], [0, 0, 1, 1], [], []>} : vector<16x32xf32>, vector<32x128xf32>, vector<16x128xf32> -> vector<16x128xf32>
    %50 = arith.addf %31, %49 : vector<16x128xf32>
    %51 = vector.extract_strided_slice %9 {offsets = [0, 0, 64], sizes = [2, 8, 32], strides = [1, 1, 1]} : vector<2x8x384xf32> to vector<2x8x32xf32>
    %52 = vector.extract_strided_slice %9 {offsets = [0, 0, 192], sizes = [2, 8, 32], strides = [1, 1, 1]} : vector<2x8x384xf32> to vector<2x8x32xf32>
    %53 = vector.extract_strided_slice %9 {offsets = [0, 0, 320], sizes = [2, 8, 32], strides = [1, 1, 1]} : vector<2x8x384xf32> to vector<2x8x32xf32>
    "tpu.trace_start"() <{level = 10 : i32, message = "bmd,bnd->bmn"}> : () -> ()
    %cst_23 = arith.constant dense<0.000000e+00> : vector<2x8x8xf32>
    %54 = tpu.matmul %51, %52, %cst_23 {dimension_numbers = #tpu.dot_dimension_numbers<[2], [2], [1], [1], [0, 0, 0, 1, 1, 1], [0], [0]>} : vector<2x8x32xf32>, vector<2x8x32xf32>, vector<2x8x8xf32> -> vector<2x8x8xf32>
    "tpu.trace_stop"() : () -> ()
    %cst_24 = arith.constant dense<0xFF800000> : vector<2x8xf32>
    %55 = vector.multi_reduction <maximumf>, %54, %cst_24 [2] : vector<2x8x8xf32> to vector<2x8xf32>
    %56 = vector.shape_cast %55 : vector<2x8xf32> to vector<2x8x1xf32>
    %57 = vector.broadcast %56 : vector<2x8x1xf32> to vector<2x8x8xf32>
    %58 = arith.subf %54, %57 : vector<2x8x8xf32>
    %59 = math.exp %58 : vector<2x8x8xf32>
    %cst_25 = arith.constant dense<0.000000e+00> : vector<2x8xf32>
    %60 = vector.multi_reduction <add>, %59, %cst_25 [2] : vector<2x8x8xf32> to vector<2x8xf32>
    %61 = vector.shape_cast %60 : vector<2x8xf32> to vector<2x8x1xf32>
    %62 = tpu.reciprocal %61 : vector<2x8x1xf32> -> vector<2x8x1xf32>
    %63 = vector.broadcast %62 : vector<2x8x1xf32> to vector<2x8x8xf32>
    %64 = arith.mulf %59, %63 : vector<2x8x8xf32>
    "tpu.trace_start"() <{level = 10 : i32, message = "bmn,bnd->bmd"}> : () -> ()
    %cst_26 = arith.constant dense<0.000000e+00> : vector<2x8x32xf32>
    %65 = tpu.matmul %64, %53, %cst_26 {dimension_numbers = #tpu.dot_dimension_numbers<[2], [1], [1], [2], [0, 0, 0, 1, 1, 2], [0], [0]>} : vector<2x8x8xf32>, vector<2x8x32xf32>, vector<2x8x32xf32> -> vector<2x8x32xf32>
    "tpu.trace_stop"() : () -> ()
    %66 = vector.shape_cast %65 : vector<2x8x32xf32> to vector<16x32xf32>
    %67 = vector.extract_strided_slice %11 {offsets = [64, 0], sizes = [32, 128], strides = [1, 1]} : vector<128x128xf32> to vector<32x128xf32>
    %cst_27 = arith.constant dense<0.000000e+00> : vector<16x128xf32>
    %68 = tpu.matmul %66, %67, %cst_27 {dimension_numbers = #tpu.dot_dimension_numbers<[1], [0], [0], [1], [0, 0, 1, 1], [], []>} : vector<16x32xf32>, vector<32x128xf32>, vector<16x128xf32> -> vector<16x128xf32>
    %69 = arith.addf %50, %68 : vector<16x128xf32>
    %70 = vector.extract_strided_slice %9 {offsets = [0, 0, 96], sizes = [2, 8, 32], strides = [1, 1, 1]} : vector<2x8x384xf32> to vector<2x8x32xf32>
    %71 = vector.extract_strided_slice %9 {offsets = [0, 0, 224], sizes = [2, 8, 32], strides = [1, 1, 1]} : vector<2x8x384xf32> to vector<2x8x32xf32>
    %72 = vector.extract_strided_slice %9 {offsets = [0, 0, 352], sizes = [2, 8, 32], strides = [1, 1, 1]} : vector<2x8x384xf32> to vector<2x8x32xf32>
    "tpu.trace_start"() <{level = 10 : i32, message = "bmd,bnd->bmn"}> : () -> ()
    %cst_28 = arith.constant dense<0.000000e+00> : vector<2x8x8xf32>
    %73 = tpu.matmul %70, %71, %cst_28 {dimension_numbers = #tpu.dot_dimension_numbers<[2], [2], [1], [1], [0, 0, 0, 1, 1, 1], [0], [0]>} : vector<2x8x32xf32>, vector<2x8x32xf32>, vector<2x8x8xf32> -> vector<2x8x8xf32>
    "tpu.trace_stop"() : () -> ()
    %cst_29 = arith.constant dense<0xFF800000> : vector<2x8xf32>
    %74 = vector.multi_reduction <maximumf>, %73, %cst_29 [2] : vector<2x8x8xf32> to vector<2x8xf32>
    %75 = vector.shape_cast %74 : vector<2x8xf32> to vector<2x8x1xf32>
    %76 = vector.broadcast %75 : vector<2x8x1xf32> to vector<2x8x8xf32>
    %77 = arith.subf %73, %76 : vector<2x8x8xf32>
    %78 = math.exp %77 : vector<2x8x8xf32>
    %cst_30 = arith.constant dense<0.000000e+00> : vector<2x8xf32>
    %79 = vector.multi_reduction <add>, %78, %cst_30 [2] : vector<2x8x8xf32> to vector<2x8xf32>
    %80 = vector.shape_cast %79 : vector<2x8xf32> to vector<2x8x1xf32>
    %81 = tpu.reciprocal %80 : vector<2x8x1xf32> -> vector<2x8x1xf32>
    %82 = vector.broadcast %81 : vector<2x8x1xf32> to vector<2x8x8xf32>
    %83 = arith.mulf %78, %82 : vector<2x8x8xf32>
    "tpu.trace_start"() <{level = 10 : i32, message = "bmn,bnd->bmd"}> : () -> ()
    %cst_31 = arith.constant dense<0.000000e+00> : vector<2x8x32xf32>
    %84 = tpu.matmul %83, %72, %cst_31 {dimension_numbers = #tpu.dot_dimension_numbers<[2], [1], [1], [2], [0, 0, 0, 1, 1, 2], [0], [0]>} : vector<2x8x8xf32>, vector<2x8x32xf32>, vector<2x8x32xf32> -> vector<2x8x32xf32>
    "tpu.trace_stop"() : () -> ()
    %85 = vector.shape_cast %84 : vector<2x8x32xf32> to vector<16x32xf32>
    %86 = vector.extract_strided_slice %11 {offsets = [96, 0], sizes = [32, 128], strides = [1, 1]} : vector<128x128xf32> to vector<32x128xf32>
    %cst_32 = arith.constant dense<0.000000e+00> : vector<16x128xf32>
    %87 = tpu.matmul %85, %86, %cst_32 {dimension_numbers = #tpu.dot_dimension_numbers<[1], [0], [0], [1], [0, 0, 1, 1], [], []>} : vector<16x32xf32>, vector<32x128xf32>, vector<16x128xf32> -> vector<16x128xf32>
    %88 = arith.addf %69, %87 : vector<16x128xf32>
    %89 = arith.addf %5, %88 : vector<16x128xf32>
    %c0_33 = arith.constant 0 : index
    %c0_34 = arith.constant 0 : index
    %c0_35 = arith.constant 0 : index
    %90 = vector.load %arg5[%c0_33, %c0_34, %c0_35] : memref<2x1x128xf32, #tpu.memory_space<vmem>>, vector<1x1x128xf32>
    %91 = vector.shape_cast %90 : vector<1x1x128xf32> to vector<1x128xf32>
    %c0_36 = arith.constant 0 : index
    %c0_37 = arith.constant 0 : index
    %c0_38 = arith.constant 0 : index
    %92 = vector.load %arg6[%c0_36, %c0_37, %c0_38] : memref<2x1x128xf32, #tpu.memory_space<vmem>>, vector<1x1x128xf32>
    %93 = vector.shape_cast %92 : vector<1x1x128xf32> to vector<1x128xf32>
    %cst_39 = arith.constant dense<0.000000e+00> : vector<128xf32>
    %94 = vector.multi_reduction <add>, %89, %cst_39 [0] : vector<16x128xf32> to vector<128xf32>
    %95 = vector.shape_cast %94 : vector<128xf32> to vector<1x128xf32>
    %cst_40 = arith.constant 1.600000e+01 : f32
    %96 = vector.broadcast %cst_40 : f32 to vector<1x128xf32>
    %97 = arith.divf %95, %96 : vector<1x128xf32>
    %98 = vector.broadcast %97 : vector<1x128xf32> to vector<16x128xf32>
    %99 = arith.subf %89, %98 : vector<16x128xf32>
    %100 = arith.mulf %99, %99 : vector<16x128xf32>
    %cst_41 = arith.constant dense<0.000000e+00> : vector<128xf32>
    %101 = vector.multi_reduction <add>, %100, %cst_41 [0] : vector<16x128xf32> to vector<128xf32>
    %102 = vector.shape_cast %101 : vector<128xf32> to vector<1x128xf32>
    %cst_42 = arith.constant 1.600000e+01 : f32
    %103 = vector.broadcast %cst_42 : f32 to vector<1x128xf32>
    %104 = arith.divf %102, %103 : vector<1x128xf32>
    %cst_43 = arith.constant 9.99999974E-6 : f32
    %105 = vector.broadcast %cst_43 : f32 to vector<1x128xf32>
    %106 = arith.addf %104, %105 : vector<1x128xf32>
    %107 = math.rsqrt %106 : vector<1x128xf32>
    %108 = vector.broadcast %107 : vector<1x128xf32> to vector<16x128xf32>
    %109 = arith.mulf %99, %108 : vector<16x128xf32>
    %110 = vector.broadcast %91 : vector<1x128xf32> to vector<16x128xf32>
    %111 = arith.mulf %109, %110 : vector<16x128xf32>
    %112 = vector.broadcast %93 : vector<1x128xf32> to vector<16x128xf32>
    %113 = arith.addf %111, %112 : vector<16x128xf32>
    %c0_44 = arith.constant 0 : index
    %c0_45 = arith.constant 0 : index
    %c0_46 = arith.constant 0 : index
    %114 = vector.load %arg7[%c0_44, %c0_45, %c0_46] : memref<2x128x256xf32, #tpu.memory_space<vmem>>, vector<1x128x256xf32>
    %115 = vector.shape_cast %114 : vector<1x128x256xf32> to vector<128x256xf32>
    %cst_47 = arith.constant dense<0.000000e+00> : vector<16x256xf32>
    %116 = tpu.matmul %113, %115, %cst_47 {dimension_numbers = #tpu.dot_dimension_numbers<[1], [0], [0], [1], [0, 0, 1, 1], [], []>} : vector<16x128xf32>, vector<128x256xf32>, vector<16x256xf32> -> vector<16x256xf32>
    %c0_48 = arith.constant 0 : index
    %c0_49 = arith.constant 0 : index
    %c0_50 = arith.constant 0 : index
    %117 = vector.load %arg8[%c0_48, %c0_49, %c0_50] : memref<2x1x256xf32, #tpu.memory_space<vmem>>, vector<1x1x256xf32>
    %118 = vector.shape_cast %117 : vector<1x1x256xf32> to vector<1x256xf32>
    %119 = vector.broadcast %118 : vector<1x256xf32> to vector<16x256xf32>
    %120 = arith.addf %116, %119 : vector<16x256xf32>
    %cst_51 = arith.constant 0.000000e+00 : f32
    %121 = vector.broadcast %cst_51 : f32 to vector<16x256xf32>
    %122 = arith.maximumf %120, %121 : vector<16x256xf32>
    %c0_52 = arith.constant 0 : index
    %c0_53 = arith.constant 0 : index
    %c0_54 = arith.constant 0 : index
    %123 = vector.load %arg9[%c0_52, %c0_53, %c0_54] : memref<2x256x128xf32, #tpu.memory_space<vmem>>, vector<1x256x128xf32>
    %124 = vector.shape_cast %123 : vector<1x256x128xf32> to vector<256x128xf32>
    %cst_55 = arith.constant dense<0.000000e+00> : vector<16x128xf32>
    %125 = tpu.matmul %122, %124, %cst_55 {dimension_numbers = #tpu.dot_dimension_numbers<[1], [0], [0], [1], [0, 0, 1, 1], [], []>} : vector<16x256xf32>, vector<256x128xf32>, vector<16x128xf32> -> vector<16x128xf32>
    %c0_56 = arith.constant 0 : index
    %c0_57 = arith.constant 0 : index
    %c0_58 = arith.constant 0 : index
    %126 = vector.load %arg10[%c0_56, %c0_57, %c0_58] : memref<2x1x128xf32, #tpu.memory_space<vmem>>, vector<1x1x128xf32>
    %127 = vector.shape_cast %126 : vector<1x1x128xf32> to vector<1x128xf32>
    %128 = vector.broadcast %127 : vector<1x128xf32> to vector<16x128xf32>
    %129 = arith.addf %125, %128 : vector<16x128xf32>
    %130 = arith.addf %113, %129 : vector<16x128xf32>
    %c0_59 = arith.constant 0 : index
    %c0_60 = arith.constant 0 : index
    %c0_61 = arith.constant 0 : index
    %131 = vector.load %arg11[%c0_59, %c0_60, %c0_61] : memref<2x1x128xf32, #tpu.memory_space<vmem>>, vector<1x1x128xf32>
    %132 = vector.shape_cast %131 : vector<1x1x128xf32> to vector<1x128xf32>
    %c0_62 = arith.constant 0 : index
    %c0_63 = arith.constant 0 : index
    %c0_64 = arith.constant 0 : index
    %133 = vector.load %arg12[%c0_62, %c0_63, %c0_64] : memref<2x1x128xf32, #tpu.memory_space<vmem>>, vector<1x1x128xf32>
    %134 = vector.shape_cast %133 : vector<1x1x128xf32> to vector<1x128xf32>
    %cst_65 = arith.constant dense<0.000000e+00> : vector<128xf32>
    %135 = vector.multi_reduction <add>, %130, %cst_65 [0] : vector<16x128xf32> to vector<128xf32>
    %136 = vector.shape_cast %135 : vector<128xf32> to vector<1x128xf32>
    %cst_66 = arith.constant 1.600000e+01 : f32
    %137 = vector.broadcast %cst_66 : f32 to vector<1x128xf32>
    %138 = arith.divf %136, %137 : vector<1x128xf32>
    %139 = vector.broadcast %138 : vector<1x128xf32> to vector<16x128xf32>
    %140 = arith.subf %130, %139 : vector<16x128xf32>
    %141 = arith.mulf %140, %140 : vector<16x128xf32>
    %cst_67 = arith.constant dense<0.000000e+00> : vector<128xf32>
    %142 = vector.multi_reduction <add>, %141, %cst_67 [0] : vector<16x128xf32> to vector<128xf32>
    %143 = vector.shape_cast %142 : vector<128xf32> to vector<1x128xf32>
    %cst_68 = arith.constant 1.600000e+01 : f32
    %144 = vector.broadcast %cst_68 : f32 to vector<1x128xf32>
    %145 = arith.divf %143, %144 : vector<1x128xf32>
    %cst_69 = arith.constant 9.99999974E-6 : f32
    %146 = vector.broadcast %cst_69 : f32 to vector<1x128xf32>
    %147 = arith.addf %145, %146 : vector<1x128xf32>
    %148 = math.rsqrt %147 : vector<1x128xf32>
    %149 = vector.broadcast %148 : vector<1x128xf32> to vector<16x128xf32>
    %150 = arith.mulf %140, %149 : vector<16x128xf32>
    %151 = vector.broadcast %132 : vector<1x128xf32> to vector<16x128xf32>
    %152 = arith.mulf %150, %151 : vector<16x128xf32>
    %153 = vector.broadcast %134 : vector<1x128xf32> to vector<16x128xf32>
    %154 = arith.addf %152, %153 : vector<16x128xf32>
    %c1 = arith.constant 1 : index
    %c0_70 = arith.constant 0 : index
    %c0_71 = arith.constant 0 : index
    %155 = vector.load %arg3[%c1, %c0_70, %c0_71] : memref<2x128x384xf32, #tpu.memory_space<vmem>>, vector<1x128x384xf32>
    %156 = vector.shape_cast %155 : vector<1x128x384xf32> to vector<128x384xf32>
    %cst_72 = arith.constant dense<0.000000e+00> : vector<16x384xf32>
    %157 = tpu.matmul %154, %156, %cst_72 {dimension_numbers = #tpu.dot_dimension_numbers<[1], [0], [0], [1], [0, 0, 1, 1], [], []>} : vector<16x128xf32>, vector<128x384xf32>, vector<16x384xf32> -> vector<16x384xf32>
    %158 = vector.shape_cast %157 : vector<16x384xf32> to vector<2x8x384xf32>
    %c1_73 = arith.constant 1 : index
    %c0_74 = arith.constant 0 : index
    %c0_75 = arith.constant 0 : index
    %159 = vector.load %arg4[%c1_73, %c0_74, %c0_75] : memref<2x128x128xf32, #tpu.memory_space<vmem>>, vector<1x128x128xf32>
    %160 = vector.shape_cast %159 : vector<1x128x128xf32> to vector<128x128xf32>
    %cst_76 = arith.constant 0.000000e+00 : f32
    %161 = vector.broadcast %cst_76 : f32 to vector<16x128xf32>
    %162 = vector.extract_strided_slice %158 {offsets = [0, 0, 0], sizes = [2, 8, 32], strides = [1, 1, 1]} : vector<2x8x384xf32> to vector<2x8x32xf32>
    %163 = vector.extract_strided_slice %158 {offsets = [0, 0, 128], sizes = [2, 8, 32], strides = [1, 1, 1]} : vector<2x8x384xf32> to vector<2x8x32xf32>
    %164 = vector.extract_strided_slice %158 {offsets = [0, 0, 256], sizes = [2, 8, 32], strides = [1, 1, 1]} : vector<2x8x384xf32> to vector<2x8x32xf32>
    "tpu.trace_start"() <{level = 10 : i32, message = "bmd,bnd->bmn"}> : () -> ()
    %cst_77 = arith.constant dense<0.000000e+00> : vector<2x8x8xf32>
    %165 = tpu.matmul %162, %163, %cst_77 {dimension_numbers = #tpu.dot_dimension_numbers<[2], [2], [1], [1], [0, 0, 0, 1, 1, 1], [0], [0]>} : vector<2x8x32xf32>, vector<2x8x32xf32>, vector<2x8x8xf32> -> vector<2x8x8xf32>
    "tpu.trace_stop"() : () -> ()
    %cst_78 = arith.constant dense<0xFF800000> : vector<2x8xf32>
    %166 = vector.multi_reduction <maximumf>, %165, %cst_78 [2] : vector<2x8x8xf32> to vector<2x8xf32>
    %167 = vector.shape_cast %166 : vector<2x8xf32> to vector<2x8x1xf32>
    %168 = vector.broadcast %167 : vector<2x8x1xf32> to vector<2x8x8xf32>
    %169 = arith.subf %165, %168 : vector<2x8x8xf32>
    %170 = math.exp %169 : vector<2x8x8xf32>
    %cst_79 = arith.constant dense<0.000000e+00> : vector<2x8xf32>
    %171 = vector.multi_reduction <add>, %170, %cst_79 [2] : vector<2x8x8xf32> to vector<2x8xf32>
    %172 = vector.shape_cast %171 : vector<2x8xf32> to vector<2x8x1xf32>
    %173 = tpu.reciprocal %172 : vector<2x8x1xf32> -> vector<2x8x1xf32>
    %174 = vector.broadcast %173 : vector<2x8x1xf32> to vector<2x8x8xf32>
    %175 = arith.mulf %170, %174 : vector<2x8x8xf32>
    "tpu.trace_start"() <{level = 10 : i32, message = "bmn,bnd->bmd"}> : () -> ()
    %cst_80 = arith.constant dense<0.000000e+00> : vector<2x8x32xf32>
    %176 = tpu.matmul %175, %164, %cst_80 {dimension_numbers = #tpu.dot_dimension_numbers<[2], [1], [1], [2], [0, 0, 0, 1, 1, 2], [0], [0]>} : vector<2x8x8xf32>, vector<2x8x32xf32>, vector<2x8x32xf32> -> vector<2x8x32xf32>
    "tpu.trace_stop"() : () -> ()
    %177 = vector.shape_cast %176 : vector<2x8x32xf32> to vector<16x32xf32>
    %178 = vector.extract_strided_slice %160 {offsets = [0, 0], sizes = [32, 128], strides = [1, 1]} : vector<128x128xf32> to vector<32x128xf32>
    %cst_81 = arith.constant dense<0.000000e+00> : vector<16x128xf32>
    %179 = tpu.matmul %177, %178, %cst_81 {dimension_numbers = #tpu.dot_dimension_numbers<[1], [0], [0], [1], [0, 0, 1, 1], [], []>} : vector<16x32xf32>, vector<32x128xf32>, vector<16x128xf32> -> vector<16x128xf32>
    %180 = arith.addf %161, %179 : vector<16x128xf32>
    %181 = vector.extract_strided_slice %158 {offsets = [0, 0, 32], sizes = [2, 8, 32], strides = [1, 1, 1]} : vector<2x8x384xf32> to vector<2x8x32xf32>
    %182 = vector.extract_strided_slice %158 {offsets = [0, 0, 160], sizes = [2, 8, 32], strides = [1, 1, 1]} : vector<2x8x384xf32> to vector<2x8x32xf32>
    %183 = vector.extract_strided_slice %158 {offsets = [0, 0, 288], sizes = [2, 8, 32], strides = [1, 1, 1]} : vector<2x8x384xf32> to vector<2x8x32xf32>
    "tpu.trace_start"() <{level = 10 : i32, message = "bmd,bnd->bmn"}> : () -> ()
    %cst_82 = arith.constant dense<0.000000e+00> : vector<2x8x8xf32>
    %184 = tpu.matmul %181, %182, %cst_82 {dimension_numbers = #tpu.dot_dimension_numbers<[2], [2], [1], [1], [0, 0, 0, 1, 1, 1], [0], [0]>} : vector<2x8x32xf32>, vector<2x8x32xf32>, vector<2x8x8xf32> -> vector<2x8x8xf32>
    "tpu.trace_stop"() : () -> ()
    %cst_83 = arith.constant dense<0xFF800000> : vector<2x8xf32>
    %185 = vector.multi_reduction <maximumf>, %184, %cst_83 [2] : vector<2x8x8xf32> to vector<2x8xf32>
    %186 = vector.shape_cast %185 : vector<2x8xf32> to vector<2x8x1xf32>
    %187 = vector.broadcast %186 : vector<2x8x1xf32> to vector<2x8x8xf32>
    %188 = arith.subf %184, %187 : vector<2x8x8xf32>
    %189 = math.exp %188 : vector<2x8x8xf32>
    %cst_84 = arith.constant dense<0.000000e+00> : vector<2x8xf32>
    %190 = vector.multi_reduction <add>, %189, %cst_84 [2] : vector<2x8x8xf32> to vector<2x8xf32>
    %191 = vector.shape_cast %190 : vector<2x8xf32> to vector<2x8x1xf32>
    %192 = tpu.reciprocal %191 : vector<2x8x1xf32> -> vector<2x8x1xf32>
    %193 = vector.broadcast %192 : vector<2x8x1xf32> to vector<2x8x8xf32>
    %194 = arith.mulf %189, %193 : vector<2x8x8xf32>
    "tpu.trace_start"() <{level = 10 : i32, message = "bmn,bnd->bmd"}> : () -> ()
    %cst_85 = arith.constant dense<0.000000e+00> : vector<2x8x32xf32>
    %195 = tpu.matmul %194, %183, %cst_85 {dimension_numbers = #tpu.dot_dimension_numbers<[2], [1], [1], [2], [0, 0, 0, 1, 1, 2], [0], [0]>} : vector<2x8x8xf32>, vector<2x8x32xf32>, vector<2x8x32xf32> -> vector<2x8x32xf32>
    "tpu.trace_stop"() : () -> ()
    %196 = vector.shape_cast %195 : vector<2x8x32xf32> to vector<16x32xf32>
    %197 = vector.extract_strided_slice %160 {offsets = [32, 0], sizes = [32, 128], strides = [1, 1]} : vector<128x128xf32> to vector<32x128xf32>
    %cst_86 = arith.constant dense<0.000000e+00> : vector<16x128xf32>
    %198 = tpu.matmul %196, %197, %cst_86 {dimension_numbers = #tpu.dot_dimension_numbers<[1], [0], [0], [1], [0, 0, 1, 1], [], []>} : vector<16x32xf32>, vector<32x128xf32>, vector<16x128xf32> -> vector<16x128xf32>
    %199 = arith.addf %180, %198 : vector<16x128xf32>
    %200 = vector.extract_strided_slice %158 {offsets = [0, 0, 64], sizes = [2, 8, 32], strides = [1, 1, 1]} : vector<2x8x384xf32> to vector<2x8x32xf32>
    %201 = vector.extract_strided_slice %158 {offsets = [0, 0, 192], sizes = [2, 8, 32], strides = [1, 1, 1]} : vector<2x8x384xf32> to vector<2x8x32xf32>
    %202 = vector.extract_strided_slice %158 {offsets = [0, 0, 320], sizes = [2, 8, 32], strides = [1, 1, 1]} : vector<2x8x384xf32> to vector<2x8x32xf32>
    "tpu.trace_start"() <{level = 10 : i32, message = "bmd,bnd->bmn"}> : () -> ()
    %cst_87 = arith.constant dense<0.000000e+00> : vector<2x8x8xf32>
    %203 = tpu.matmul %200, %201, %cst_87 {dimension_numbers = #tpu.dot_dimension_numbers<[2], [2], [1], [1], [0, 0, 0, 1, 1, 1], [0], [0]>} : vector<2x8x32xf32>, vector<2x8x32xf32>, vector<2x8x8xf32> -> vector<2x8x8xf32>
    "tpu.trace_stop"() : () -> ()
    %cst_88 = arith.constant dense<0xFF800000> : vector<2x8xf32>
    %204 = vector.multi_reduction <maximumf>, %203, %cst_88 [2] : vector<2x8x8xf32> to vector<2x8xf32>
    %205 = vector.shape_cast %204 : vector<2x8xf32> to vector<2x8x1xf32>
    %206 = vector.broadcast %205 : vector<2x8x1xf32> to vector<2x8x8xf32>
    %207 = arith.subf %203, %206 : vector<2x8x8xf32>
    %208 = math.exp %207 : vector<2x8x8xf32>
    %cst_89 = arith.constant dense<0.000000e+00> : vector<2x8xf32>
    %209 = vector.multi_reduction <add>, %208, %cst_89 [2] : vector<2x8x8xf32> to vector<2x8xf32>
    %210 = vector.shape_cast %209 : vector<2x8xf32> to vector<2x8x1xf32>
    %211 = tpu.reciprocal %210 : vector<2x8x1xf32> -> vector<2x8x1xf32>
    %212 = vector.broadcast %211 : vector<2x8x1xf32> to vector<2x8x8xf32>
    %213 = arith.mulf %208, %212 : vector<2x8x8xf32>
    "tpu.trace_start"() <{level = 10 : i32, message = "bmn,bnd->bmd"}> : () -> ()
    %cst_90 = arith.constant dense<0.000000e+00> : vector<2x8x32xf32>
    %214 = tpu.matmul %213, %202, %cst_90 {dimension_numbers = #tpu.dot_dimension_numbers<[2], [1], [1], [2], [0, 0, 0, 1, 1, 2], [0], [0]>} : vector<2x8x8xf32>, vector<2x8x32xf32>, vector<2x8x32xf32> -> vector<2x8x32xf32>
    "tpu.trace_stop"() : () -> ()
    %215 = vector.shape_cast %214 : vector<2x8x32xf32> to vector<16x32xf32>
    %216 = vector.extract_strided_slice %160 {offsets = [64, 0], sizes = [32, 128], strides = [1, 1]} : vector<128x128xf32> to vector<32x128xf32>
    %cst_91 = arith.constant dense<0.000000e+00> : vector<16x128xf32>
    %217 = tpu.matmul %215, %216, %cst_91 {dimension_numbers = #tpu.dot_dimension_numbers<[1], [0], [0], [1], [0, 0, 1, 1], [], []>} : vector<16x32xf32>, vector<32x128xf32>, vector<16x128xf32> -> vector<16x128xf32>
    %218 = arith.addf %199, %217 : vector<16x128xf32>
    %219 = vector.extract_strided_slice %158 {offsets = [0, 0, 96], sizes = [2, 8, 32], strides = [1, 1, 1]} : vector<2x8x384xf32> to vector<2x8x32xf32>
    %220 = vector.extract_strided_slice %158 {offsets = [0, 0, 224], sizes = [2, 8, 32], strides = [1, 1, 1]} : vector<2x8x384xf32> to vector<2x8x32xf32>
    %221 = vector.extract_strided_slice %158 {offsets = [0, 0, 352], sizes = [2, 8, 32], strides = [1, 1, 1]} : vector<2x8x384xf32> to vector<2x8x32xf32>
    "tpu.trace_start"() <{level = 10 : i32, message = "bmd,bnd->bmn"}> : () -> ()
    %cst_92 = arith.constant dense<0.000000e+00> : vector<2x8x8xf32>
    %222 = tpu.matmul %219, %220, %cst_92 {dimension_numbers = #tpu.dot_dimension_numbers<[2], [2], [1], [1], [0, 0, 0, 1, 1, 1], [0], [0]>} : vector<2x8x32xf32>, vector<2x8x32xf32>, vector<2x8x8xf32> -> vector<2x8x8xf32>
    "tpu.trace_stop"() : () -> ()
    %cst_93 = arith.constant dense<0xFF800000> : vector<2x8xf32>
    %223 = vector.multi_reduction <maximumf>, %222, %cst_93 [2] : vector<2x8x8xf32> to vector<2x8xf32>
    %224 = vector.shape_cast %223 : vector<2x8xf32> to vector<2x8x1xf32>
    %225 = vector.broadcast %224 : vector<2x8x1xf32> to vector<2x8x8xf32>
    %226 = arith.subf %222, %225 : vector<2x8x8xf32>
    %227 = math.exp %226 : vector<2x8x8xf32>
    %cst_94 = arith.constant dense<0.000000e+00> : vector<2x8xf32>
    %228 = vector.multi_reduction <add>, %227, %cst_94 [2] : vector<2x8x8xf32> to vector<2x8xf32>
    %229 = vector.shape_cast %228 : vector<2x8xf32> to vector<2x8x1xf32>
    %230 = tpu.reciprocal %229 : vector<2x8x1xf32> -> vector<2x8x1xf32>
    %231 = vector.broadcast %230 : vector<2x8x1xf32> to vector<2x8x8xf32>
    %232 = arith.mulf %227, %231 : vector<2x8x8xf32>
    "tpu.trace_start"() <{level = 10 : i32, message = "bmn,bnd->bmd"}> : () -> ()
    %cst_95 = arith.constant dense<0.000000e+00> : vector<2x8x32xf32>
    %233 = tpu.matmul %232, %221, %cst_95 {dimension_numbers = #tpu.dot_dimension_numbers<[2], [1], [1], [2], [0, 0, 0, 1, 1, 2], [0], [0]>} : vector<2x8x8xf32>, vector<2x8x32xf32>, vector<2x8x32xf32> -> vector<2x8x32xf32>
    "tpu.trace_stop"() : () -> ()
    %234 = vector.shape_cast %233 : vector<2x8x32xf32> to vector<16x32xf32>
    %235 = vector.extract_strided_slice %160 {offsets = [96, 0], sizes = [32, 128], strides = [1, 1]} : vector<128x128xf32> to vector<32x128xf32>
    %cst_96 = arith.constant dense<0.000000e+00> : vector<16x128xf32>
    %236 = tpu.matmul %234, %235, %cst_96 {dimension_numbers = #tpu.dot_dimension_numbers<[1], [0], [0], [1], [0, 0, 1, 1], [], []>} : vector<16x32xf32>, vector<32x128xf32>, vector<16x128xf32> -> vector<16x128xf32>
    %237 = arith.addf %218, %236 : vector<16x128xf32>
    %238 = arith.addf %154, %237 : vector<16x128xf32>
    %c1_97 = arith.constant 1 : index
    %c0_98 = arith.constant 0 : index
    %c0_99 = arith.constant 0 : index
    %239 = vector.load %arg5[%c1_97, %c0_98, %c0_99] : memref<2x1x128xf32, #tpu.memory_space<vmem>>, vector<1x1x128xf32>
    %240 = vector.shape_cast %239 : vector<1x1x128xf32> to vector<1x128xf32>
    %c1_100 = arith.constant 1 : index
    %c0_101 = arith.constant 0 : index
    %c0_102 = arith.constant 0 : index
    %241 = vector.load %arg6[%c1_100, %c0_101, %c0_102] : memref<2x1x128xf32, #tpu.memory_space<vmem>>, vector<1x1x128xf32>
    %242 = vector.shape_cast %241 : vector<1x1x128xf32> to vector<1x128xf32>
    %cst_103 = arith.constant dense<0.000000e+00> : vector<128xf32>
    %243 = vector.multi_reduction <add>, %238, %cst_103 [0] : vector<16x128xf32> to vector<128xf32>
    %244 = vector.shape_cast %243 : vector<128xf32> to vector<1x128xf32>
    %cst_104 = arith.constant 1.600000e+01 : f32
    %245 = vector.broadcast %cst_104 : f32 to vector<1x128xf32>
    %246 = arith.divf %244, %245 : vector<1x128xf32>
    %247 = vector.broadcast %246 : vector<1x128xf32> to vector<16x128xf32>
    %248 = arith.subf %238, %247 : vector<16x128xf32>
    %249 = arith.mulf %248, %248 : vector<16x128xf32>
    %cst_105 = arith.constant dense<0.000000e+00> : vector<128xf32>
    %250 = vector.multi_reduction <add>, %249, %cst_105 [0] : vector<16x128xf32> to vector<128xf32>
    %251 = vector.shape_cast %250 : vector<128xf32> to vector<1x128xf32>
    %cst_106 = arith.constant 1.600000e+01 : f32
    %252 = vector.broadcast %cst_106 : f32 to vector<1x128xf32>
    %253 = arith.divf %251, %252 : vector<1x128xf32>
    %cst_107 = arith.constant 9.99999974E-6 : f32
    %254 = vector.broadcast %cst_107 : f32 to vector<1x128xf32>
    %255 = arith.addf %253, %254 : vector<1x128xf32>
    %256 = math.rsqrt %255 : vector<1x128xf32>
    %257 = vector.broadcast %256 : vector<1x128xf32> to vector<16x128xf32>
    %258 = arith.mulf %248, %257 : vector<16x128xf32>
    %259 = vector.broadcast %240 : vector<1x128xf32> to vector<16x128xf32>
    %260 = arith.mulf %258, %259 : vector<16x128xf32>
    %261 = vector.broadcast %242 : vector<1x128xf32> to vector<16x128xf32>
    %262 = arith.addf %260, %261 : vector<16x128xf32>
    %c1_108 = arith.constant 1 : index
    %c0_109 = arith.constant 0 : index
    %c0_110 = arith.constant 0 : index
    %263 = vector.load %arg7[%c1_108, %c0_109, %c0_110] : memref<2x128x256xf32, #tpu.memory_space<vmem>>, vector<1x128x256xf32>
    %264 = vector.shape_cast %263 : vector<1x128x256xf32> to vector<128x256xf32>
    %cst_111 = arith.constant dense<0.000000e+00> : vector<16x256xf32>
    %265 = tpu.matmul %262, %264, %cst_111 {dimension_numbers = #tpu.dot_dimension_numbers<[1], [0], [0], [1], [0, 0, 1, 1], [], []>} : vector<16x128xf32>, vector<128x256xf32>, vector<16x256xf32> -> vector<16x256xf32>
    %c1_112 = arith.constant 1 : index
    %c0_113 = arith.constant 0 : index
    %c0_114 = arith.constant 0 : index
    %266 = vector.load %arg8[%c1_112, %c0_113, %c0_114] : memref<2x1x256xf32, #tpu.memory_space<vmem>>, vector<1x1x256xf32>
    %267 = vector.shape_cast %266 : vector<1x1x256xf32> to vector<1x256xf32>
    %268 = vector.broadcast %267 : vector<1x256xf32> to vector<16x256xf32>
    %269 = arith.addf %265, %268 : vector<16x256xf32>
    %cst_115 = arith.constant 0.000000e+00 : f32
    %270 = vector.broadcast %cst_115 : f32 to vector<16x256xf32>
    %271 = arith.maximumf %269, %270 : vector<16x256xf32>
    %c1_116 = arith.constant 1 : index
    %c0_117 = arith.constant 0 : index
    %c0_118 = arith.constant 0 : index
    %272 = vector.load %arg9[%c1_116, %c0_117, %c0_118] : memref<2x256x128xf32, #tpu.memory_space<vmem>>, vector<1x256x128xf32>
    %273 = vector.shape_cast %272 : vector<1x256x128xf32> to vector<256x128xf32>
    %cst_119 = arith.constant dense<0.000000e+00> : vector<16x128xf32>
    %274 = tpu.matmul %271, %273, %cst_119 {dimension_numbers = #tpu.dot_dimension_numbers<[1], [0], [0], [1], [0, 0, 1, 1], [], []>} : vector<16x256xf32>, vector<256x128xf32>, vector<16x128xf32> -> vector<16x128xf32>
    %c1_120 = arith.constant 1 : index
    %c0_121 = arith.constant 0 : index
    %c0_122 = arith.constant 0 : index
    %275 = vector.load %arg10[%c1_120, %c0_121, %c0_122] : memref<2x1x128xf32, #tpu.memory_space<vmem>>, vector<1x1x128xf32>
    %276 = vector.shape_cast %275 : vector<1x1x128xf32> to vector<1x128xf32>
    %277 = vector.broadcast %276 : vector<1x128xf32> to vector<16x128xf32>
    %278 = arith.addf %274, %277 : vector<16x128xf32>
    %279 = arith.addf %262, %278 : vector<16x128xf32>
    %c1_123 = arith.constant 1 : index
    %c0_124 = arith.constant 0 : index
    %c0_125 = arith.constant 0 : index
    %280 = vector.load %arg11[%c1_123, %c0_124, %c0_125] : memref<2x1x128xf32, #tpu.memory_space<vmem>>, vector<1x1x128xf32>
    %281 = vector.shape_cast %280 : vector<1x1x128xf32> to vector<1x128xf32>
    %c1_126 = arith.constant 1 : index
    %c0_127 = arith.constant 0 : index
    %c0_128 = arith.constant 0 : index
    %282 = vector.load %arg12[%c1_126, %c0_127, %c0_128] : memref<2x1x128xf32, #tpu.memory_space<vmem>>, vector<1x1x128xf32>
    %283 = vector.shape_cast %282 : vector<1x1x128xf32> to vector<1x128xf32>
    %cst_129 = arith.constant dense<0.000000e+00> : vector<128xf32>
    %284 = vector.multi_reduction <add>, %279, %cst_129 [0] : vector<16x128xf32> to vector<128xf32>
    %285 = vector.shape_cast %284 : vector<128xf32> to vector<1x128xf32>
    %cst_130 = arith.constant 1.600000e+01 : f32
    %286 = vector.broadcast %cst_130 : f32 to vector<1x128xf32>
    %287 = arith.divf %285, %286 : vector<1x128xf32>
    %288 = vector.broadcast %287 : vector<1x128xf32> to vector<16x128xf32>
    %289 = arith.subf %279, %288 : vector<16x128xf32>
    %290 = arith.mulf %289, %289 : vector<16x128xf32>
    %cst_131 = arith.constant dense<0.000000e+00> : vector<128xf32>
    %291 = vector.multi_reduction <add>, %290, %cst_131 [0] : vector<16x128xf32> to vector<128xf32>
    %292 = vector.shape_cast %291 : vector<128xf32> to vector<1x128xf32>
    %cst_132 = arith.constant 1.600000e+01 : f32
    %293 = vector.broadcast %cst_132 : f32 to vector<1x128xf32>
    %294 = arith.divf %292, %293 : vector<1x128xf32>
    %cst_133 = arith.constant 9.99999974E-6 : f32
    %295 = vector.broadcast %cst_133 : f32 to vector<1x128xf32>
    %296 = arith.addf %294, %295 : vector<1x128xf32>
    %297 = math.rsqrt %296 : vector<1x128xf32>
    %298 = vector.broadcast %297 : vector<1x128xf32> to vector<16x128xf32>
    %299 = arith.mulf %289, %298 : vector<16x128xf32>
    %300 = vector.broadcast %281 : vector<1x128xf32> to vector<16x128xf32>
    %301 = arith.mulf %299, %300 : vector<16x128xf32>
    %302 = vector.broadcast %283 : vector<1x128xf32> to vector<16x128xf32>
    %303 = arith.addf %301, %302 : vector<16x128xf32>
    %304 = vector.shape_cast %303 : vector<16x128xf32> to vector<2x8x128xf32>
    %c0_134 = arith.constant 0 : index
    %c0_135 = arith.constant 0 : index
    %c0_136 = arith.constant 0 : index
    %305 = vector.load %arg13[%c0_134, %c0_135, %c0_136] : memref<2x8x128xf32, #tpu.memory_space<vmem>>, vector<2x8x128xf32>
    tpu.vector_store %arg13[%c0_134, %c0_135, %c0_136], %304 {strides = array<i32>} : memref<2x8x128xf32, #tpu.memory_space<vmem>>, vector<2x8x128xf32>,
    return
  }
}

</mosaic_0001>

<llo_original>
// kernel: agent_encoder.1
$region0: #{agent_encoder.1}
  #allocation0 [shape = 'u32[]', space=smem, size = 0x4, offset = 0x4, fixed_abs, tag = 'smem constant byte address 0x4 - core index']
  #allocation1 [shape = 'u32[144,128]{1,0:T(1,128)}', space=vmem, size = 0x12000, scoped, tag = 'internal scratch']
  %s0 = inlined_call_operand.vmem [shape: f32[16,4], index: 0, kind: input, shape index: {}]
  %s1 = inlined_call_operand.vmem [shape: f32[4,128], index: 1, kind: input, shape index: {}]
  %s2 = inlined_call_operand.vmem [shape: f32[1,128], index: 2, kind: input, shape index: {}]
  %s3 = inlined_call_operand.hbm [shape: f32[2,128,384], index: 3, kind: input, shape index: {}]
  %s4 = inlined_call_operand.hbm [shape: f32[2,128,128], index: 4, kind: input, shape index: {}]
  %s5 = inlined_call_operand.vmem [shape: f32[2,1,128], index: 5, kind: input, shape index: {}]
  %s6 = inlined_call_operand.vmem [shape: f32[2,1,128], index: 6, kind: input, shape index: {}]
  %s7 = inlined_call_operand.hbm [shape: f32[2,128,256], index: 7, kind: input, shape index: {}]
  %s8 = inlined_call_operand.vmem [shape: f32[2,1,256], index: 8, kind: input, shape index: {}]
  %s9 = inlined_call_operand.hbm [shape: f32[2,256,128], index: 9, kind: input, shape index: {}]
  %s10 = inlined_call_operand.vmem [shape: f32[2,1,128], index: 10, kind: input, shape index: {}]
  %s11 = inlined_call_operand.vmem [shape: f32[2,1,128], index: 11, kind: input, shape index: {}]
  %s12 = inlined_call_operand.vmem [shape: f32[2,1,128], index: 12, kind: input, shape index: {}]
  %s13 = inlined_call_operand.hbm [shape: f32[2,8,128], index: 13, kind: output, shape index: {}]
  %s14 = sld [smem:[#allocation0]]
  $region78: #{agent_encoder.1} parent=0
    _
  %s16 = ssub.s32 1, %s14
  %s17 = scalar_select 0, %s16, %s14
  $region1: #{agent_encoder.1} parent=0
    #allocation2 [shape = 'u8[393216]{0}', space=vmem, size = 0x60000, scoped, tag = 'input window, operand 3, single buffered']
    #allocation3 [shape = 's32[1]{0}', space=sflag, size = 0x4, scoped, tag = 'scoped memory for agent_encoder.1']
    #allocation4 [shape = 's32[1]{0}', space=sflag, size = 0x4, scoped, tag = 'scoped memory for agent_encoder.1']
    #allocation5 [shape = 'u8[131072]{0}', space=vmem, size = 0x20000, scoped, tag = 'input window, operand 4, single buffered']
    #allocation6 [shape = 's32[1]{0}', space=sflag, size = 0x4, scoped, tag = 'scoped memory for agent_encoder.1']
    #allocation7 [shape = 'u8[262144]{0}', space=vmem, size = 0x40000, scoped, tag = 'input window, operand 7, single buffered']
    #allocation8 [shape = 'u8[262144]{0}', space=vmem, size = 0x40000, scoped, tag = 'input window, operand 9, single buffered']
    #allocation9 [shape = 's32[1]{0}', space=sflag, size = 0x4, scoped, tag = 'scoped memory for agent_encoder.1']
    #allocation10 [shape = 'u8[8192]{0}', space=vmem, size = 0x2000, scoped, tag = 'output window, operand 0, single buffered']
    %18 = vsyncpa [#allocation3], 0
    %19 = vsyncpa [#allocation6], 0
    %20 = vsyncpa [#allocation9], 0
    %21 = vsyncpa [#allocation4], 0
    // Predicated region
    $region2: #{agent_encoder.1} parent=1 // pred_check
      _
    $region3: #{agent_encoder.1} parent=1 // pred_check_branch
      %23 = sbr.rel (0) target = $region5
    $region4: #{agent_encoder.1} parent=1 // pred_region
      _
    $region5: #{agent_encoder.1} parent=1 // pred_fallthru
      _
    // Predicated region
    $region6: #{agent_encoder.1} parent=1 // pred_check
      _
    $region7: #{agent_encoder.1} parent=1 // pred_check_branch
      %25 = sbr.rel (0) target = $region9
    $region8: #{agent_encoder.1} parent=1 // pred_region
      _
    $region9: #{agent_encoder.1} parent=1 // pred_fallthru
      _
    // Predicated region
    $region10: #{agent_encoder.1} parent=1 // pred_check
      _
    $region11: #{agent_encoder.1} parent=1 // pred_check_branch
      %27 = sbr.rel (0) target = $region13
    $region12: #{agent_encoder.1} parent=1 // pred_region
      _
    $region13: #{agent_encoder.1} parent=1 // pred_fallthru
      _
    // Predicated region
    $region14: #{agent_encoder.1} parent=1 // pred_check
      _
    $region15: #{agent_encoder.1} parent=1 // pred_check_branch
      %29 = sbr.rel (0) target = $region17
    $region16: #{agent_encoder.1} parent=1 // pred_region
      %s31 = ssub.s32 12288, 12288
      %32 = vsyncadd [#allocation3], %s31
      %s33 = sshll.u32 [#allocation2], 4
      %s34 = int_to_ptr.vmem [resolvable:$true] %s33
      %39 = dma.hbm_to_vmem [thread:$0]  %s3, 12288, %s34, [#allocation3], 384, 384, 24
    $region17: #{agent_encoder.1} parent=1 // pred_fallthru
      _
    // Predicated region
    $region18: #{agent_encoder.1} parent=1 // pred_check
      _
    $region19: #{agent_encoder.1} parent=1 // pred_check_branch
      %41 = sbr.rel (0) target = $region21
    $region20: #{agent_encoder.1} parent=1 // pred_region
      %s43 = ssub.s32 4096, 4096
      %44 = vsyncadd [#allocation6], %s43
      %s45 = sshll.u32 [#allocation5], 4
      %s46 = int_to_ptr.vmem [resolvable:$true] %s45
      %51 = dma.hbm_to_vmem [thread:$0]  %s4, 4096, %s46, [#allocation6], 128, 128, 8
    $region21: #{agent_encoder.1} parent=1 // pred_fallthru
      _
    // Predicated region
    $region22: #{agent_encoder.1} parent=1 // pred_check
      _
    $region23: #{agent_encoder.1} parent=1 // pred_check_branch
      %53 = sbr.rel (0) target = $region25
    $region24: #{agent_encoder.1} parent=1 // pred_region
      _
    $region25: #{agent_encoder.1} parent=1 // pred_fallthru
      _
    // Predicated region
    $region26: #{agent_encoder.1} parent=1 // pred_check
      _
    $region27: #{agent_encoder.1} parent=1 // pred_check_branch
      %55 = sbr.rel (0) target = $region29
    $region28: #{agent_encoder.1} parent=1 // pred_region
      _
    $region29: #{agent_encoder.1} parent=1 // pred_fallthru
      _
    // Predicated region
    $region30: #{agent_encoder.1} parent=1 // pred_check
      _
    $region31: #{agent_encoder.1} parent=1 // pred_check_branch
      %57 = sbr.rel (0) target = $region33
    $region32: #{agent_encoder.1} parent=1 // pred_region
      %s59 = ssub.s32 8192, 8192
      %60 = vsyncadd [#allocation6], %s59
      %s61 = sshll.u32 [#allocation7], 4
      %s62 = int_to_ptr.vmem [resolvable:$true] %s61
      %67 = dma.hbm_to_vmem [thread:$0]  %s7, 8192, %s62, [#allocation6], 256, 256, 16
    $region33: #{agent_encoder.1} parent=1 // pred_fallthru
      _
    // Predicated region
    $region34: #{agent_encoder.1} parent=1 // pred_check
      _
    $region35: #{agent_encoder.1} parent=1 // pred_check_branch
      %69 = sbr.rel (0) target = $region37
    $region36: #{agent_encoder.1} parent=1 // pred_region
      _
    $region37: #{agent_encoder.1} parent=1 // pred_fallthru
      _
    // Predicated region
    $region38: #{agent_encoder.1} parent=1 // pred_check
      _
    $region39: #{agent_encoder.1} parent=1 // pred_check_branch
      %71 = sbr.rel (0) target = $region41
    $region40: #{agent_encoder.1} parent=1 // pred_region
      %s73 = ssub.s32 8192, 8192
      %74 = vsyncadd [#allocation9], %s73
      %s75 = sshll.u32 [#allocation8], 4
      %s76 = int_to_ptr.vmem [resolvable:$true] %s75
      %81 = dma.hbm_to_vmem [thread:$0]  %s9, 8192, %s76, [#allocation9], 128, 128, 8
    $region41: #{agent_encoder.1} parent=1 // pred_fallthru
      _
    // Predicated region
    $region42: #{agent_encoder.1} parent=1 // pred_check
      _
    $region43: #{agent_encoder.1} parent=1 // pred_check_branch
      %83 = sbr.rel (0) target = $region45
    $region44: #{agent_encoder.1} parent=1 // pred_region
      _
    $region45: #{agent_encoder.1} parent=1 // pred_fallthru
      _
    // Predicated region
    $region46: #{agent_encoder.1} parent=1 // pred_check
      _
    $region47: #{agent_encoder.1} parent=1 // pred_check_branch
      %85 = sbr.rel (0) target = $region49
    $region48: #{agent_encoder.1} parent=1 // pred_region
      _
    $region49: #{agent_encoder.1} parent=1 // pred_fallthru
      _
    // Predicated region
    $region50: #{agent_encoder.1} parent=1 // pred_check
      _
    $region51: #{agent_encoder.1} parent=1 // pred_check_branch
      %87 = sbr.rel (0) target = $region53
    $region52: #{agent_encoder.1} parent=1 // pred_region
      _
    $region53: #{agent_encoder.1} parent=1 // pred_fallthru
      _
    // Predicated region
    $region54: #{agent_encoder.1} parent=1 // pred_check
      _
    $region55: #{agent_encoder.1} parent=1 // pred_check_branch
      %89 = sbr.rel (0) target = $region57
    $region56: #{agent_encoder.1} parent=1 // pred_region
      %90 = dma.done [#allocation3], 12288
    $region57: #{agent_encoder.1} parent=1 // pred_fallthru
      _
    // Predicated region
    $region58: #{agent_encoder.1} parent=1 // pred_check
      _
    $region59: #{agent_encoder.1} parent=1 // pred_check_branch
      %92 = sbr.rel (0) target = $region61
    $region60: #{agent_encoder.1} parent=1 // pred_region
      %93 = dma.done [#allocation6], 4096
    $region61: #{agent_encoder.1} parent=1 // pred_fallthru
      _
    // Predicated region
    $region62: #{agent_encoder.1} parent=1 // pred_check
      _
    $region63: #{agent_encoder.1} parent=1 // pred_check_branch
      %95 = sbr.rel (0) target = $region65
    $region64: #{agent_encoder.1} parent=1 // pred_region
      %96 = dma.done [#allocation6], 8192
    $region65: #{agent_encoder.1} parent=1 // pred_fallthru
      _
    // Predicated region
    $region66: #{agent_encoder.1} parent=1 // pred_check
      _
    $region67: #{agent_encoder.1} parent=1 // pred_check_branch
      %98 = sbr.rel (0) target = $region69
    $region68: #{agent_encoder.1} parent=1 // pred_region
      %99 = dma.done [#allocation9], 8192
    $region69: #{agent_encoder.1} parent=1 // pred_fallthru
      _
    %v100 = vld [vmem:[%s0] sm:$0xff]
    %v101 = vld [vmem:[%s0 + $0x8] sm:$0xff]
    %v102 = vld [vmem:[%s1] sm:$0xf]
    %v103 = vld [vmem:[%s2] sm:$0x1]
    %v105 = vlaneseq
    %v106 = vshrl.u32 %v105, 7
    %v107 = vsub.s32 0, %v106
    %v108 = vrot.slane %v103, %v107
    %vm110 = vcmask 31744
    %v112 = vsel %vm110, %v100, 0
    %v115 = vsel %vm110, %v101, 0
    %vm117 = vcmask 1043456
    %v119 = vsel %vm117, %v102, 0
    %121 = vmatprep.subr.mxu0 0.0
    %122 = vmatpush1.msra.mxu0 0.0
    %123 = vmatprep.subr.mxu0 0.0
    %124 = vmatpush1.msra.mxu0 0.0
    %125 = vmatprep.subr.mxu0 0.0
    %126 = vmatpush1.msra.mxu0 0.0
    %127 = vmatprep.subr.mxu0 0.0
    %128 = vmatpush1.msra.mxu0 0.0
    %129 = vmatprep.subr.mxu0 0.0
    %130 = vmatpush1.msra.mxu0 0.0
    %131 = vmatprep.subr.mxu0 0.0
    %132 = vmatpush1.msra.mxu0 0.0
    %133 = vmatprep.subr.mxu0 0.0
    %134 = vmatpush1.msra.mxu0 0.0
    %135 = vmatprep.subr.mxu0 0.0
    %136 = vmatpush1.msra.mxu0 0.0
    %137 = vmatprep.subr.mxu0 0.0
    %138 = vmatpush1.msra.mxu0 0.0
    %139 = vmatprep.subr.mxu0 0.0
    %140 = vmatpush1.msra.mxu0 0.0
    %141 = vmatprep.subr.mxu0 0.0
    %142 = vmatpush1.msra.mxu0 0.0
    %143 = vmatprep.subr.mxu0 0.0
    %144 = vmatpush1.msra.mxu0 0.0
    %145 = vmatprep.subr.mxu0 0.0
    %146 = vmatpush1.msra.mxu0 0.0
    %147 = vmatprep.subr.mxu0 0.0
    %148 = vmatpush1.msra.mxu0 0.0
    %149 = vmatprep.subr.mxu0 0.0
    %150 = vmatpush1.msra.mxu0 0.0
    %151 = vmatprep.subr.mxu0 0.0
    %152 = vmatpush1.msra.mxu0 %v119
    %153 = vmatprep.subr.mxu0 0.0
    %154 = vmatpush2.msra.mxu0 0.0
    %155 = vmatprep.subr.mxu0 0.0
    %156 = vmatpush2.msra.mxu0 0.0
    %157 = vmatprep.subr.mxu0 0.0
    %158 = vmatpush2.msra.mxu0 0.0
    %159 = vmatprep.subr.mxu0 0.0
    %160 = vmatpush2.msra.mxu0 0.0
    %161 = vmatprep.subr.mxu0 0.0
    %162 = vmatpush2.msra.mxu0 0.0
    %163 = vmatprep.subr.mxu0 0.0
    %164 = vmatpush2.msra.mxu0 0.0
    %165 = vmatprep.subr.mxu0 0.0
    %166 = vmatpush2.msra.mxu0 0.0
    %167 = vmatprep.subr.mxu0 0.0
    %168 = vmatpush2.msra.mxu0 0.0
    %169 = vmatprep.subr.mxu0 0.0
    %170 = vmatpush2.msra.mxu0 0.0
    %171 = vmatprep.subr.mxu0 0.0
    %172 = vmatpush2.msra.mxu0 0.0
    %173 = vmatprep.subr.mxu0 0.0
    %174 = vmatpush2.msra.mxu0 0.0
    %175 = vmatprep.subr.mxu0 0.0
    %176 = vmatpush2.msra.mxu0 0.0
    %177 = vmatprep.subr.mxu0 0.0
    %178 = vmatpush2.msra.mxu0 0.0
    %179 = vmatprep.subr.mxu0 0.0
    %180 = vmatpush2.msra.mxu0 0.0
    %181 = vmatprep.subr.mxu0 0.0
    %182 = vmatpush2.msra.mxu0 0.0
    %183 = vmatprep.subr.mxu0 0.0
    %184 = vmatpush2.msra.mxu0 0.0
    %185 = vmatprep.mubr.f32.mxu0 0.0
    %186 = vmatmul.mubr.f32.gmra.mxu0 %v112
    %v187 = vpop.f32.mrf.mxu0
    %v188 = vadd.f32 %v108, %v187
    %v189 = vpop.f32.mrf.mxu0
    %190 = vmatprep.mubr.f32.mxu0 0.0
    %191 = vmatmul.mubr.f32.gmra.mxu0 %v115
    %v192 = vpop.f32.mrf.mxu0
    %v193 = vadd.f32 %v108, %v192
    %v194 = vpop.f32.mrf.mxu0
    %195 = vdwg.mxu0
    %v196 = vld [vmem:[#allocation2] sm:$0xff]
    %v197 = vld [vmem:[#allocation2 + $0x8] sm:$0xff]
    %v198 = vld [vmem:[#allocation2 + $0x10] sm:$0xff]
    %v199 = vld [vmem:[#allocation2 + $0x18] sm:$0xff]
    %v200 = vld [vmem:[#allocation2 + $0x20] sm:$0xff]
    %v201 = vld [vmem:[#allocation2 + $0x28] sm:$0xff]
    %v202 = vld [vmem:[#allocation2 + $0x30] sm:$0xff]
    %v203 = vld [vmem:[#allocation2 + $0x38] sm:$0xff]
    %v204 = vld [vmem:[#allocation2 + $0x40] sm:$0xff]
    %v205 = vld [vmem:[#allocation2 + $0x48] sm:$0xff]
    %v206 = vld [vmem:[#allocation2 + $0x50] sm:$0xff]
    %v207 = vld [vmem:[#allocation2 + $0x58] sm:$0xff]
    %v208 = vld [vmem:[#allocation2 + $0x60] sm:$0xff]
    %v209 = vld [vmem:[#allocation2 + $0x68] sm:$0xff]
    %v210 = vld [vmem:[#allocation2 + $0x70] sm:$0xff]
    %v211 = vld [vmem:[#allocation2 + $0x78] sm:$0xff]
    %v212 = vld [vmem:[#allocation2 + $0x80] sm:$0xff]
    %v213 = vld [vmem:[#allocation2 + $0x88] sm:$0xff]
    %v214 = vld [vmem:[#allocation2 + $0x90] sm:$0xff]
    %v215 = vld [vmem:[#allocation2 + $0x98] sm:$0xff]
    %v216 = vld [vmem:[#allocation2 + $0xa0] sm:$0xff]
    %v217 = vld [vmem:[#allocation2 + $0xa8] sm:$0xff]
    %v218 = vld [vmem:[#allocation2 + $0xb0] sm:$0xff]
    %v219 = vld [vmem:[#allocation2 + $0xb8] sm:$0xff]
    %v220 = vld [vmem:[#allocation2 + $0xc0] sm:$0xff]
    %v221 = vld [vmem:[#allocation2 + $0xc8] sm:$0xff]
    %v222 = vld [vmem:[#allocation2 + $0xd0] sm:$0xff]
    %v223 = vld [vmem:[#allocation2 + $0xd8] sm:$0xff]
    %v224 = vld [vmem:[#allocation2 + $0xe0] sm:$0xff]
    %v225 = vld [vmem:[#allocation2 + $0xe8] sm:$0xff]
    %v226 = vld [vmem:[#allocation2 + $0xf0] sm:$0xff]
    %v227 = vld [vmem:[#allocation2 + $0xf8] sm:$0xff]
    %v228 = vld [vmem:[#allocation2 + $0x100] sm:$0xff]
    %v229 = vld [vmem:[#allocation2 + $0x108] sm:$0xff]
    %v230 = vld [vmem:[#allocation2 + $0x110] sm:$0xff]
    %v231 = vld [vmem:[#allocation2 + $0x118] sm:$0xff]
    %v232 = vld [vmem:[#allocation2 + $0x120] sm:$0xff]
    %v233 = vld [vmem:[#allocation2 + $0x128] sm:$0xff]
    %v234 = vld [vmem:[#allocation2 + $0x130] sm:$0xff]
    %v235 = vld [vmem:[#allocation2 + $0x138] sm:$0xff]
    %v236 = vld [vmem:[#allocation2 + $0x140] sm:$0xff]
    %v237 = vld [vmem:[#allocation2 + $0x148] sm:$0xff]
    %v238 = vld [vmem:[#allocation2 + $0x150] sm:$0xff]
    %v239 = vld [vmem:[#allocation2 + $0x158] sm:$0xff]
    %v240 = vld [vmem:[#allocation2 + $0x160] sm:$0xff]
    %v241 = vld [vmem:[#allocation2 + $0x168] sm:$0xff]
    %v242 = vld [vmem:[#allocation2 + $0x170] sm:$0xff]
    %v243 = vld [vmem:[#allocation2 + $0x178] sm:$0xff]
    %244 = vmatprep.subr.mxu0 %v242
    %245 = vmatpush1.msra.mxu0 %v241
    %246 = vmatprep.subr.mxu0 %v239
    %247 = vmatpush1.msra.mxu0 %v238
    %248 = vmatprep.subr.mxu0 %v236
    %249 = vmatpush1.msra.mxu0 %v235
    %250 = vmatprep.subr.mxu0 %v233
    %251 = vmatpush1.msra.mxu0 %v232
    %252 = vmatprep.subr.mxu0 %v230
    %253 = vmatpush1.msra.mxu0 %v229
    %254 = vmatprep.subr.mxu0 %v227
    %255 = vmatpush1.msra.mxu0 %v226
    %256 = vmatprep.subr.mxu0 %v224
    %257 = vmatpush1.msra.mxu0 %v223
    %258 = vmatprep.subr.mxu0 %v221
    %259 = vmatpush1.msra.mxu0 %v220
    %260 = vmatprep.subr.mxu0 %v218
    %261 = vmatpush1.msra.mxu0 %v217
    %262 = vmatprep.subr.mxu0 %v215
    %263 = vmatpush1.msra.mxu0 %v214
    %264 = vmatprep.subr.mxu0 %v212
    %265 = vmatpush1.msra.mxu0 %v211
    %266 = vmatprep.subr.mxu0 %v209
    %267 = vmatpush1.msra.mxu0 %v208
    %268 = vmatprep.subr.mxu0 %v206
    %269 = vmatpush1.msra.mxu0 %v205
    %270 = vmatprep.subr.mxu0 %v203
    %271 = vmatpush1.msra.mxu0 %v202
    %272 = vmatprep.subr.mxu0 %v200
    %273 = vmatpush1.msra.mxu0 %v199
    %274 = vmatprep.subr.mxu0 %v197
    %275 = vmatpush1.msra.mxu0 %v196
    %276 = vmatprep.subr.mxu0 0.0
    %277 = vmatpush2.msra.mxu0 0.0
    %278 = vmatprep.subr.mxu0 0.0
    %279 = vmatpush2.msra.mxu0 0.0
    %280 = vmatprep.subr.mxu0 0.0
    %281 = vmatpush2.msra.mxu0 0.0
    %282 = vmatprep.subr.mxu0 0.0
    %283 = vmatpush2.msra.mxu0 0.0
    %284 = vmatprep.subr.mxu0 0.0
    %285 = vmatpush2.msra.mxu0 0.0
    %286 = vmatprep.subr.mxu0 0.0
    %287 = vmatpush2.msra.mxu0 0.0
    %288 = vmatprep.subr.mxu0 0.0
    %289 = vmatpush2.msra.mxu0 0.0
    %290 = vmatprep.subr.mxu0 0.0
    %291 = vmatpush2.msra.mxu0 0.0
    %292 = vmatprep.subr.mxu0 0.0
    %293 = vmatpush2.msra.mxu0 0.0
    %294 = vmatprep.subr.mxu0 0.0
    %295 = vmatpush2.msra.mxu0 0.0
    %296 = vmatprep.subr.mxu0 0.0
    %297 = vmatpush2.msra.mxu0 0.0
    %298 = vmatprep.subr.mxu0 0.0
    %299 = vmatpush2.msra.mxu0 0.0
    %300 = vmatprep.subr.mxu0 0.0
    %301 = vmatpush2.msra.mxu0 0.0
    %302 = vmatprep.subr.mxu0 0.0
    %303 = vmatpush2.msra.mxu0 0.0
    %304 = vmatprep.subr.mxu0 0.0
    %305 = vmatpush2.msra.mxu0 0.0
    %306 = vmatprep.subr.mxu0 0.0
    %307 = vmatpush2.msra.mxu0 0.0
    %308 = vmatprep.mubr.f32.mxu0 0.0
    %309 = vmatmul.mubr.f32.gmra.mxu0 %v188
    %v310 = vpop.f32.mrf.mxu0
    %v311 = vadd.f32 0.0, %v310
    %v312 = vpop.f32.mrf.mxu0
    %v313 = vadd.f32 0.0, %v312
    %314 = vmatprep.mubr.f32.mxu0 0.0
    %315 = vmatmul.mubr.f32.gmra.mxu0 %v193
    %v316 = vpop.f32.mrf.mxu0
    %v317 = vadd.f32 0.0, %v316
    %v318 = vpop.f32.mrf.mxu0
    %v319 = vadd.f32 0.0, %v318
    %320 = vdwg.mxu0
    %321 = vmatprep.subr.mxu0 0.0
    %322 = vmatpush1.msra.mxu0 %v243
    %323 = vmatprep.subr.mxu0 0.0
    %324 = vmatpush1.msra.mxu0 %v240
    %325 = vmatprep.subr.mxu0 0.0
    %326 = vmatpush1.msra.mxu0 %v237
    %327 = vmatprep.subr.mxu0 0.0
    %328 = vmatpush1.msra.mxu0 %v234
    %329 = vmatprep.subr.mxu0 0.0
    %330 = vmatpush1.msra.mxu0 %v231
    %331 = vmatprep.subr.mxu0 0.0
    %332 = vmatpush1.msra.mxu0 %v228
    %333 = vmatprep.subr.mxu0 0.0
    %334 = vmatpush1.msra.mxu0 %v225
    %335 = vmatprep.subr.mxu0 0.0
    %336 = vmatpush1.msra.mxu0 %v222
    %337 = vmatprep.subr.mxu0 0.0
    %338 = vmatpush1.msra.mxu0 %v219
    %339 = vmatprep.subr.mxu0 0.0
    %340 = vmatpush1.msra.mxu0 %v216
    %341 = vmatprep.subr.mxu0 0.0
    %342 = vmatpush1.msra.mxu0 %v213
    %343 = vmatprep.subr.mxu0 0.0
    %344 = vmatpush1.msra.mxu0 %v210
    %345 = vmatprep.subr.mxu0 0.0
    %346 = vmatpush1.msra.mxu0 %v207
    %347 = vmatprep.subr.mxu0 0.0
    %348 = vmatpush1.msra.mxu0 %v204
    %349 = vmatprep.subr.mxu0 0.0
    %350 = vmatpush1.msra.mxu0 %v201
    %351 = vmatprep.subr.mxu0 0.0
    %352 = vmatpush1.msra.mxu0 %v198
    %353 = vmatprep.subr.mxu0 0.0
    %354 = vmatpush2.msra.mxu0 0.0
    %355 = vmatprep.subr.mxu0 0.0
    %356 = vmatpush2.msra.mxu0 0.0
    %357 = vmatprep.subr.mxu0 0.0
    %358 = vmatpush2.msra.mxu0 0.0
    %359 = vmatprep.subr.mxu0 0.0
    %360 = vmatpush2.msra.mxu0 0.0
    %361 = vmatprep.subr.mxu0 0.0
    %362 = vmatpush2.msra.mxu0 0.0
    %363 = vmatprep.subr.mxu0 0.0
    %364 = vmatpush2.msra.mxu0 0.0
    %365 = vmatprep.subr.mxu0 0.0
    %366 = vmatpush2.msra.mxu0 0.0
    %367 = vmatprep.subr.mxu0 0.0
    %368 = vmatpush2.msra.mxu0 0.0
    %369 = vmatprep.subr.mxu0 0.0
    %370 = vmatpush2.msra.mxu0 0.0
    %371 = vmatprep.subr.mxu0 0.0
    %372 = vmatpush2.msra.mxu0 0.0
    %373 = vmatprep.subr.mxu0 0.0
    %374 = vmatpush2.msra.mxu0 0.0
    %375 = vmatprep.subr.mxu0 0.0
    %376 = vmatpush2.msra.mxu0 0.0
    %377 = vmatprep.subr.mxu0 0.0
    %378 = vmatpush2.msra.mxu0 0.0
    %379 = vmatprep.subr.mxu0 0.0
    %380 = vmatpush2.msra.mxu0 0.0
    %381 = vmatprep.subr.mxu0 0.0
    %382 = vmatpush2.msra.mxu0 0.0
    %383 = vmatprep.subr.mxu0 0.0
    %384 = vmatpush2.msra.mxu0 0.0
    %385 = vmatprep.mubr.f32.mxu0 0.0
    %386 = vmatmul.mubr.f32.gmra.mxu0 %v188
    %v387 = vpop.f32.mrf.mxu0
    %v388 = vadd.f32 0.0, %v387
    %v389 = vpop.f32.mrf.mxu0
    %390 = vmatprep.mubr.f32.mxu0 0.0
    %391 = vmatmul.mubr.f32.gmra.mxu0 %v193
    %v392 = vpop.f32.mrf.mxu0
    %v393 = vadd.f32 0.0, %v392
    %v394 = vpop.f32.mrf.mxu0
    %395 = vdwg.mxu0
    %v396 = vld [vmem:[#allocation5] sm:$0xff]
    %v397 = vld [vmem:[#allocation5 + $0x8] sm:$0xff]
    %v398 = vld [vmem:[#allocation5 + $0x10] sm:$0xff]
    %v399 = vld [vmem:[#allocation5 + $0x18] sm:$0xff]
    %v400 = vld [vmem:[#allocation5 + $0x20] sm:$0xff]
    %v401 = vld [vmem:[#allocation5 + $0x28] sm:$0xff]
    %v402 = vld [vmem:[#allocation5 + $0x30] sm:$0xff]
    %v403 = vld [vmem:[#allocation5 + $0x38] sm:$0xff]
    %v404 = vld [vmem:[#allocation5 + $0x40] sm:$0xff]
    %v405 = vld [vmem:[#allocation5 + $0x48] sm:$0xff]
    %v406 = vld [vmem:[#allocation5 + $0x50] sm:$0xff]
    %v407 = vld [vmem:[#allocation5 + $0x58] sm:$0xff]
    %v408 = vld [vmem:[#allocation5 + $0x60] sm:$0xff]
    %v409 = vld [vmem:[#allocation5 + $0x68] sm:$0xff]
    %v410 = vld [vmem:[#allocation5 + $0x70] sm:$0xff]
    %v411 = vld [vmem:[#allocation5 + $0x78] sm:$0xff]
    %vm412 = vcmask 261120
    %v414 = vsel %vm412, %v311, 0
    %v417 = vsel %vm412, %v313, 0
    %419 = vmatprep.subr.mxu0 0.0
    %420 = vmatpush1.xpose.msra.mxu0 0.0
    %421 = vmatprep.subr.mxu0 0.0
    %422 = vmatpush1.xpose.msra.mxu0 0.0
    %423 = vmatprep.subr.mxu0 0.0
    %424 = vmatpush1.xpose.msra.mxu0 0.0
    %425 = vmatprep.subr.mxu0 0.0
    %426 = vmatpush1.xpose.msra.mxu0 0.0
    %427 = vmatprep.subr.mxu0 0.0
    %428 = vmatpush1.xpose.msra.mxu0 0.0
    %429 = vmatprep.subr.mxu0 0.0
    %430 = vmatpush1.xpose.msra.mxu0 0.0
    %431 = vmatprep.subr.mxu0 0.0
    %432 = vmatpush1.xpose.msra.mxu0 0.0
    %433 = vmatprep.subr.mxu0 0.0
    %434 = vmatpush1.xpose.msra.mxu0 0.0
    %435 = vmatprep.subr.mxu0 0.0
    %436 = vmatpush1.xpose.msra.mxu0 0.0
    %437 = vmatprep.subr.mxu0 0.0
    %438 = vmatpush1.xpose.msra.mxu0 0.0
    %439 = vmatprep.subr.mxu0 0.0
    %440 = vmatpush1.xpose.msra.mxu0 0.0
    %441 = vmatprep.subr.mxu0 0.0
    %442 = vmatpush1.xpose.msra.mxu0 0.0
    %443 = vmatprep.subr.mxu0 0.0
    %444 = vmatpush1.xpose.msra.mxu0 0.0
    %445 = vmatprep.subr.mxu0 0.0
    %446 = vmatpush1.xpose.msra.mxu0 0.0
    %447 = vmatprep.subr.mxu0 0.0
    %448 = vmatpush1.xpose.msra.mxu0 0.0
    %449 = vmatprep.subr.mxu0 0.0
    %450 = vmatpush1.xpose.msra.mxu0 %v417
    %451 = vmatprep.subr.mxu0 0.0
    %452 = vmatpush2.xpose.msra.mxu0 0.0
    %453 = vmatprep.subr.mxu0 0.0
    %454 = vmatpush2.xpose.msra.mxu0 0.0
    %455 = vmatprep.subr.mxu0 0.0
    %456 = vmatpush2.xpose.msra.mxu0 0.0
    %457 = vmatprep.subr.mxu0 0.0
    %458 = vmatpush2.xpose.msra.mxu0 0.0
    %459 = vmatprep.subr.mxu0 0.0
    %460 = vmatpush2.xpose.msra.mxu0 0.0
    %461 = vmatprep.subr.mxu0 0.0
    %462 = vmatpush2.xpose.msra.mxu0 0.0
    %463 = vmatprep.subr.mxu0 0.0
    %464 = vmatpush2.xpose.msra.mxu0 0.0
    %465 = vmatprep.subr.mxu0 0.0
    %466 = vmatpush2.xpose.msra.mxu0 0.0
    %467 = vmatprep.subr.mxu0 0.0
    %468 = vmatpush2.xpose.msra.mxu0 0.0
    %469 = vmatprep.subr.mxu0 0.0
    %470 = vmatpush2.xpose.msra.mxu0 0.0
    %471 = vmatprep.subr.mxu0 0.0
    %472 = vmatpush2.xpose.msra.mxu0 0.0
    %473 = vmatprep.subr.mxu0 0.0
    %474 = vmatpush2.xpose.msra.mxu0 0.0
    %475 = vmatprep.subr.mxu0 0.0
    %476 = vmatpush2.xpose.msra.mxu0 0.0
    %477 = vmatprep.subr.mxu0 0.0
    %478 = vmatpush2.xpose.msra.mxu0 0.0
    %479 = vmatprep.subr.mxu0 0.0
    %480 = vmatpush2.xpose.msra.mxu0 0.0
    %481 = vmatprep.subr.mxu0 0.0
    %482 = vmatpush2.xpose.msra.mxu0 0.0
    %483 = vmatprep.mubr.f32.mxu0 0.0
    %484 = vmatmul.mubr.f32.gmra.mxu0 %v414
    %v485 = vpop.f32.mrf.mxu0
    %v486 = vadd.f32 0.0, %v485
    %v487 = vpop.f32.mrf.mxu0
    %488 = vdwg.mxu0
    %v490 = vsel %vm412, %v317, 0
    %v493 = vsel %vm412, %v319, 0
    %495 = vmatprep.subr.mxu0 0.0
    %496 = vmatpush1.xpose.msra.mxu0 0.0
    %497 = vmatprep.subr.mxu0 0.0
    %498 = vmatpush1.xpose.msra.mxu0 0.0
    %499 = vmatprep.subr.mxu0 0.0
    %500 = vmatpush1.xpose.msra.mxu0 0.0
    %501 = vmatprep.subr.mxu0 0.0
    %502 = vmatpush1.xpose.msra.mxu0 0.0
    %503 = vmatprep.subr.mxu0 0.0
    %504 = vmatpush1.xpose.msra.mxu0 0.0
    %505 = vmatprep.subr.mxu0 0.0
    %506 = vmatpush1.xpose.msra.mxu0 0.0
    %507 = vmatprep.subr.mxu0 0.0
    %508 = vmatpush1.xpose.msra.mxu0 0.0
    %509 = vmatprep.subr.mxu0 0.0
    %510 = vmatpush1.xpose.msra.mxu0 0.0
    %511 = vmatprep.subr.mxu0 0.0
    %512 = vmatpush1.xpose.msra.mxu0 0.0
    %513 = vmatprep.subr.mxu0 0.0
    %514 = vmatpush1.xpose.msra.mxu0 0.0
    %515 = vmatprep.subr.mxu0 0.0
    %516 = vmatpush1.xpose.msra.mxu0 0.0
    %517 = vmatprep.subr.mxu0 0.0
    %518 = vmatpush1.xpose.msra.mxu0 0.0
    %519 = vmatprep.subr.mxu0 0.0
    %520 = vmatpush1.xpose.msra.mxu0 0.0
    %521 = vmatprep.subr.mxu0 0.0
    %522 = vmatpush1.xpose.msra.mxu0 0.0
    %523 = vmatprep.subr.mxu0 0.0
    %524 = vmatpush1.xpose.msra.mxu0 0.0
    %525 = vmatprep.subr.mxu0 0.0
    %526 = vmatpush1.xpose.msra.mxu0 %v493
    %527 = vmatprep.subr.mxu0 0.0
    %528 = vmatpush2.xpose.msra.mxu0 0.0
    %529 = vmatprep.subr.mxu0 0.0
    %530 = vmatpush2.xpose.msra.mxu0 0.0
    %531 = vmatprep.subr.mxu0 0.0
    %532 = vmatpush2.xpose.msra.mxu0 0.0
    %533 = vmatprep.subr.mxu0 0.0
    %534 = vmatpush2.xpose.msra.mxu0 0.0
    %535 = vmatprep.subr.mxu0 0.0
    %536 = vmatpush2.xpose.msra.mxu0 0.0
    %537 = vmatprep.subr.mxu0 0.0
    %538 = vmatpush2.xpose.msra.mxu0 0.0
    %539 = vmatprep.subr.mxu0 0.0
    %540 = vmatpush2.xpose.msra.mxu0 0.0
    %541 = vmatprep.subr.mxu0 0.0
    %542 = vmatpush2.xpose.msra.mxu0 0.0
    %543 = vmatprep.subr.mxu0 0.0
    %544 = vmatpush2.xpose.msra.mxu0 0.0
    %545 = vmatprep.subr.mxu0 0.0
    %546 = vmatpush2.xpose.msra.mxu0 0.0
    %547 = vmatprep.subr.mxu0 0.0
    %548 = vmatpush2.xpose.msra.mxu0 0.0
    %549 = vmatprep.subr.mxu0 0.0
    %550 = vmatpush2.xpose.msra.mxu0 0.0
    %551 = vmatprep.subr.mxu0 0.0
    %552 = vmatpush2.xpose.msra.mxu0 0.0
    %553 = vmatprep.subr.mxu0 0.0
    %554 = vmatpush2.xpose.msra.mxu0 0.0
    %555 = vmatprep.subr.mxu0 0.0
    %556 = vmatpush2.xpose.msra.mxu0 0.0
    %557 = vmatprep.subr.mxu0 0.0
    %558 = vmatpush2.xpose.msra.mxu0 0.0
    %559 = vmatprep.mubr.f32.mxu0 0.0
    %560 = vmatmul.mubr.f32.gmra.mxu0 %v490
    %v561 = vpop.f32.mrf.mxu0
    %v562 = vadd.f32 0.0, %v561
    %v563 = vpop.f32.mrf.mxu0
    %564 = vdwg.mxu0
    %vm565 = vcmask 64512
    %v566 = vsel %vm565, %v486, -inf
    %567 = vmax.xlane.f32.xlu0 %v566
    %v568 = vpop.xlane.xlu0 %567
    %v569 = vsel %vm565, %v562, -inf
    %570 = vmax.xlane.f32.xlu0 %v569
    %v571 = vpop.xlane.xlu0 %570
    %v572 = vsub.f32 %v486, %v568
    %v573 = vsub.f32 %v562, %v571
    %v574 = vmul.f32 %v572, 1.442695
    %v575 = vpow.pop %v574
    %v576 = vmul.f32 %v573, 1.442695
    %v577 = vpow.pop %v576
    %v578 = vsel %vm565, %v575, 0.0
    %579 = vadd.xlane.f32.xlu0 %v578
    %v580 = vpop.xlane.xlu0 %579
    %v581 = vsel %vm565, %v577, 0.0
    %582 = vadd.xlane.f32.xlu0 %v581
    %v583 = vpop.xlane.xlu0 %582
    %v584 = vrcp.pop %v580
    %v585 = vrcp.pop %v583
    %v586 = vmul.f32 %v575, %v584
    %v587 = vmul.f32 %v577, %v585
    %v589 = vsel %vm565, %v586, 0
    %591 = vmatprep.subr.mxu0 0.0
    %592 = vmatpush1.msra.mxu0 0.0
    %593 = vmatprep.subr.mxu0 0.0
    %594 = vmatpush1.msra.mxu0 0.0
    %595 = vmatprep.subr.mxu0 0.0
    %596 = vmatpush1.msra.mxu0 0.0
    %597 = vmatprep.subr.mxu0 0.0
    %598 = vmatpush1.msra.mxu0 0.0
    %599 = vmatprep.subr.mxu0 0.0
    %600 = vmatpush1.msra.mxu0 0.0
    %601 = vmatprep.subr.mxu0 0.0
    %602 = vmatpush1.msra.mxu0 0.0
    %603 = vmatprep.subr.mxu0 0.0
    %604 = vmatpush1.msra.mxu0 0.0
    %605 = vmatprep.subr.mxu0 0.0
    %606 = vmatpush1.msra.mxu0 0.0
    %607 = vmatprep.subr.mxu0 0.0
    %608 = vmatpush1.msra.mxu0 0.0
    %609 = vmatprep.subr.mxu0 0.0
    %610 = vmatpush1.msra.mxu0 0.0
    %611 = vmatprep.subr.mxu0 0.0
    %612 = vmatpush1.msra.mxu0 0.0
    %613 = vmatprep.subr.mxu0 0.0
    %614 = vmatpush1.msra.mxu0 0.0
    %615 = vmatprep.subr.mxu0 0.0
    %616 = vmatpush1.msra.mxu0 0.0
    %617 = vmatprep.subr.mxu0 0.0
    %618 = vmatpush1.msra.mxu0 0.0
    %619 = vmatprep.subr.mxu0 0.0
    %620 = vmatpush1.msra.mxu0 0.0
    %621 = vmatprep.subr.mxu0 0.0
    %622 = vmatpush1.msra.mxu0 %v388
    %623 = vmatprep.subr.mxu0 0.0
    %624 = vmatpush2.msra.mxu0 0.0
    %625 = vmatprep.subr.mxu0 0.0
    %626 = vmatpush2.msra.mxu0 0.0
    %627 = vmatprep.subr.mxu0 0.0
    %628 = vmatpush2.msra.mxu0 0.0
    %629 = vmatprep.subr.mxu0 0.0
    %630 = vmatpush2.msra.mxu0 0.0
    %631 = vmatprep.subr.mxu0 0.0
    %632 = vmatpush2.msra.mxu0 0.0
    %633 = vmatprep.subr.mxu0 0.0
    %634 = vmatpush2.msra.mxu0 0.0
    %635 = vmatprep.subr.mxu0 0.0
    %636 = vmatpush2.msra.mxu0 0.0
    %637 = vmatprep.subr.mxu0 0.0
    %638 = vmatpush2.msra.mxu0 0.0
    %639 = vmatprep.subr.mxu0 0.0
    %640 = vmatpush2.msra.mxu0 0.0
    %641 = vmatprep.subr.mxu0 0.0
    %642 = vmatpush2.msra.mxu0 0.0
    %643 = vmatprep.subr.mxu0 0.0
    %644 = vmatpush2.msra.mxu0 0.0
    %645 = vmatprep.subr.mxu0 0.0
    %646 = vmatpush2.msra.mxu0 0.0
    %647 = vmatprep.subr.mxu0 0.0
    %648 = vmatpush2.msra.mxu0 0.0
    %649 = vmatprep.subr.mxu0 0.0
    %650 = vmatpush2.msra.mxu0 0.0
    %651 = vmatprep.subr.mxu0 0.0
    %652 = vmatpush2.msra.mxu0 0.0
    %653 = vmatprep.subr.mxu0 0.0
    %654 = vmatpush2.msra.mxu0 0.0
    %655 = vmatprep.mubr.f32.mxu0 0.0
    %656 = vmatmul.mubr.f32.gmra.mxu0 %v589
    %v657 = vpop.f32.mrf.mxu0
    %v658 = vadd.f32 0.0, %v657
    %v659 = vpop.f32.mrf.mxu0
    %660 = vdwg.mxu0
    %v662 = vsel %vm565, %v587, 0
    %664 = vmatprep.subr.mxu0 0.0
    %665 = vmatpush1.msra.mxu0 0.0
    %666 = vmatprep.subr.mxu0 0.0
    %667 = vmatpush1.msra.mxu0 0.0
    %668 = vmatprep.subr.mxu0 0.0
    %669 = vmatpush1.msra.mxu0 0.0
    %670 = vmatprep.subr.mxu0 0.0
    %671 = vmatpush1.msra.mxu0 0.0
    %672 = vmatprep.subr.mxu0 0.0
    %673 = vmatpush1.msra.mxu0 0.0
    %674 = vmatprep.subr.mxu0 0.0
    %675 = vmatpush1.msra.mxu0 0.0
    %676 = vmatprep.subr.mxu0 0.0
    %677 = vmatpush1.msra.mxu0 0.0
    %678 = vmatprep.subr.mxu0 0.0
    %679 = vmatpush1.msra.mxu0 0.0
    %680 = vmatprep.subr.mxu0 0.0
    %681 = vmatpush1.msra.mxu0 0.0
    %682 = vmatprep.subr.mxu0 0.0
    %683 = vmatpush1.msra.mxu0 0.0
    %684 = vmatprep.subr.mxu0 0.0
    %685 = vmatpush1.msra.mxu0 0.0
    %686 = vmatprep.subr.mxu0 0.0
    %687 = vmatpush1.msra.mxu0 0.0
    %688 = vmatprep.subr.mxu0 0.0
    %689 = vmatpush1.msra.mxu0 0.0
    %690 = vmatprep.subr.mxu0 0.0
    %691 = vmatpush1.msra.mxu0 0.0
    %692 = vmatprep.subr.mxu0 0.0
    %693 = vmatpush1.msra.mxu0 0.0
    %694 = vmatprep.subr.mxu0 0.0
    %695 = vmatpush1.msra.mxu0 %v393
    %696 = vmatprep.subr.mxu0 0.0
    %697 = vmatpush2.msra.mxu0 0.0
    %698 = vmatprep.subr.mxu0 0.0
    %699 = vmatpush2.msra.mxu0 0.0
    %700 = vmatprep.subr.mxu0 0.0
    %701 = vmatpush2.msra.mxu0 0.0
    %702 = vmatprep.subr.mxu0 0.0
    %703 = vmatpush2.msra.mxu0 0.0
    %704 = vmatprep.subr.mxu0 0.0
    %705 = vmatpush2.msra.mxu0 0.0
    %706 = vmatprep.subr.mxu0 0.0
    %707 = vmatpush2.msra.mxu0 0.0
    %708 = vmatprep.subr.mxu0 0.0
    %709 = vmatpush2.msra.mxu0 0.0
    %710 = vmatprep.subr.mxu0 0.0
    %711 = vmatpush2.msra.mxu0 0.0
    %712 = vmatprep.subr.mxu0 0.0
    %713 = vmatpush2.msra.mxu0 0.0
    %714 = vmatprep.subr.mxu0 0.0
    %715 = vmatpush2.msra.mxu0 0.0
    %716 = vmatprep.subr.mxu0 0.0
    %717 = vmatpush2.msra.mxu0 0.0
    %718 = vmatprep.subr.mxu0 0.0
    %719 = vmatpush2.msra.mxu0 0.0
    %720 = vmatprep.subr.mxu0 0.0
    %721 = vmatpush2.msra.mxu0 0.0
    %722 = vmatprep.subr.mxu0 0.0
    %723 = vmatpush2.msra.mxu0 0.0
    %724 = vmatprep.subr.mxu0 0.0
    %725 = vmatpush2.msra.mxu0 0.0
    %726 = vmatprep.subr.mxu0 0.0
    %727 = vmatpush2.msra.mxu0 0.0
    %728 = vmatprep.mubr.f32.mxu0 0.0
    %729 = vmatmul.mubr.f32.gmra.mxu0 %v662
    %v730 = vpop.f32.mrf.mxu0
    %v731 = vadd.f32 0.0, %v730
    %v732 = vpop.f32.mrf.mxu0
    %733 = vdwg.mxu0
    %734 = vrot.lane.b32.xlu0 %v311, 96
    %v735 = vpop.permute.xlu0 %734
    %736 = vrot.lane.b32.xlu0 %v313, 96
    %v737 = vpop.permute.xlu0 %736
    %v738 = vsel %vm412, %v735, 0
    %v740 = vsel %vm412, %v737, 0
    %742 = vmatprep.subr.mxu0 0.0
    %743 = vmatpush1.xpose.msra.mxu0 0.0
    %744 = vmatprep.subr.mxu0 0.0
    %745 = vmatpush1.xpose.msra.mxu0 0.0
    %746 = vmatprep.subr.mxu0 0.0
    %747 = vmatpush1.xpose.msra.mxu0 0.0
    %748 = vmatprep.subr.mxu0 0.0
    %749 = vmatpush1.xpose.msra.mxu0 0.0
    %750 = vmatprep.subr.mxu0 0.0
    %751 = vmatpush1.xpose.msra.mxu0 0.0
    %752 = vmatprep.subr.mxu0 0.0
    %753 = vmatpush1.xpose.msra.mxu0 0.0
    %754 = vmatprep.subr.mxu0 0.0
    %755 = vmatpush1.xpose.msra.mxu0 0.0
    %756 = vmatprep.subr.mxu0 0.0
    %757 = vmatpush1.xpose.msra.mxu0 0.0
    %758 = vmatprep.subr.mxu0 0.0
    %759 = vmatpush1.xpose.msra.mxu0 0.0
    %760 = vmatprep.subr.mxu0 0.0
    %761 = vmatpush1.xpose.msra.mxu0 0.0
    %762 = vmatprep.subr.mxu0 0.0
    %763 = vmatpush1.xpose.msra.mxu0 0.0
    %764 = vmatprep.subr.mxu0 0.0
    %765 = vmatpush1.xpose.msra.mxu0 0.0
    %766 = vmatprep.subr.mxu0 0.0
    %767 = vmatpush1.xpose.msra.mxu0 0.0
    %768 = vmatprep.subr.mxu0 0.0
    %769 = vmatpush1.xpose.msra.mxu0 0.0
    %770 = vmatprep.subr.mxu0 0.0
    %771 = vmatpush1.xpose.msra.mxu0 0.0
    %772 = vmatprep.subr.mxu0 0.0
    %773 = vmatpush1.xpose.msra.mxu0 %v740
    %774 = vmatprep.subr.mxu0 0.0
    %775 = vmatpush2.xpose.msra.mxu0 0.0
    %776 = vmatprep.subr.mxu0 0.0
    %777 = vmatpush2.xpose.msra.mxu0 0.0
    %778 = vmatprep.subr.mxu0 0.0
    %779 = vmatpush2.xpose.msra.mxu0 0.0
    %780 = vmatprep.subr.mxu0 0.0
    %781 = vmatpush2.xpose.msra.mxu0 0.0
    %782 = vmatprep.subr.mxu0 0.0
    %783 = vmatpush2.xpose.msra.mxu0 0.0
    %784 = vmatprep.subr.mxu0 0.0
    %785 = vmatpush2.xpose.msra.mxu0 0.0
    %786 = vmatprep.subr.mxu0 0.0
    %787 = vmatpush2.xpose.msra.mxu0 0.0
    %788 = vmatprep.subr.mxu0 0.0
    %789 = vmatpush2.xpose.msra.mxu0 0.0
    %790 = vmatprep.subr.mxu0 0.0
    %791 = vmatpush2.xpose.msra.mxu0 0.0
    %792 = vmatprep.subr.mxu0 0.0
    %793 = vmatpush2.xpose.msra.mxu0 0.0
    %794 = vmatprep.subr.mxu0 0.0
    %795 = vmatpush2.xpose.msra.mxu0 0.0
    %796 = vmatprep.subr.mxu0 0.0
    %797 = vmatpush2.xpose.msra.mxu0 0.0
    %798 = vmatprep.subr.mxu0 0.0
    %799 = vmatpush2.xpose.msra.mxu0 0.0
    %800 = vmatprep.subr.mxu0 0.0
    %801 = vmatpush2.xpose.msra.mxu0 0.0
    %802 = vmatprep.subr.mxu0 0.0
    %803 = vmatpush2.xpose.msra.mxu0 0.0
    %804 = vmatprep.subr.mxu0 0.0
    %805 = vmatpush2.xpose.msra.mxu0 0.0
    %806 = vmatprep.mubr.f32.mxu0 0.0
    %807 = vmatmul.mubr.f32.gmra.mxu0 %v738
    %v808 = vpop.f32.mrf.mxu0
    %v809 = vadd.f32 0.0, %v808
    %v810 = vpop.f32.mrf.mxu0
    %811 = vdwg.mxu0
    %812 = vrot.lane.b32.xlu0 %v317, 96
    %v813 = vpop.permute.xlu0 %812
    %814 = vrot.lane.b32.xlu0 %v319, 96
    %v815 = vpop.permute.xlu0 %814
    %v816 = vsel %vm412, %v813, 0
    %v818 = vsel %vm412, %v815, 0
    %820 = vmatprep.subr.mxu0 0.0
    %821 = vmatpush1.xpose.msra.mxu0 0.0
    %822 = vmatprep.subr.mxu0 0.0
    %823 = vmatpush1.xpose.msra.mxu0 0.0
    %824 = vmatprep.subr.mxu0 0.0
    %825 = vmatpush1.xpose.msra.mxu0 0.0
    %826 = vmatprep.subr.mxu0 0.0
    %827 = vmatpush1.xpose.msra.mxu0 0.0
    %828 = vmatprep.subr.mxu0 0.0
    %829 = vmatpush1.xpose.msra.mxu0 0.0
    %830 = vmatprep.subr.mxu0 0.0
    %831 = vmatpush1.xpose.msra.mxu0 0.0
    %832 = vmatprep.subr.mxu0 0.0
    %833 = vmatpush1.xpose.msra.mxu0 0.0
    %834 = vmatprep.subr.mxu0 0.0
    %835 = vmatpush1.xpose.msra.mxu0 0.0
    %836 = vmatprep.subr.mxu0 0.0
    %837 = vmatpush1.xpose.msra.mxu0 0.0
    %838 = vmatprep.subr.mxu0 0.0
    %839 = vmatpush1.xpose.msra.mxu0 0.0
    %840 = vmatprep.subr.mxu0 0.0
    %841 = vmatpush1.xpose.msra.mxu0 0.0
    %842 = vmatprep.subr.mxu0 0.0
    %843 = vmatpush1.xpose.msra.mxu0 0.0
    %844 = vmatprep.subr.mxu0 0.0
    %845 = vmatpush1.xpose.msra.mxu0 0.0
    %846 = vmatprep.subr.mxu0 0.0
    %847 = vmatpush1.xpose.msra.mxu0 0.0
    %848 = vmatprep.subr.mxu0 0.0
    %849 = vmatpush1.xpose.msra.mxu0 0.0
    %850 = vmatprep.subr.mxu0 0.0
    %851 = vmatpush1.xpose.msra.mxu0 %v818
    %852 = vmatprep.subr.mxu0 0.0
    %853 = vmatpush2.xpose.msra.mxu0 0.0
    %854 = vmatprep.subr.mxu0 0.0
    %855 = vmatpush2.xpose.msra.mxu0 0.0
    %856 = vmatprep.subr.mxu0 0.0
    %857 = vmatpush2.xpose.msra.mxu0 0.0
    %858 = vmatprep.subr.mxu0 0.0
    %859 = vmatpush2.xpose.msra.mxu0 0.0
    %860 = vmatprep.subr.mxu0 0.0
    %861 = vmatpush2.xpose.msra.mxu0 0.0
    %862 = vmatprep.subr.mxu0 0.0
    %863 = vmatpush2.xpose.msra.mxu0 0.0
    %864 = vmatprep.subr.mxu0 0.0
    %865 = vmatpush2.xpose.msra.mxu0 0.0
    %866 = vmatprep.subr.mxu0 0.0
    %867 = vmatpush2.xpose.msra.mxu0 0.0
    %868 = vmatprep.subr.mxu0 0.0
    %869 = vmatpush2.xpose.msra.mxu0 0.0
    %870 = vmatprep.subr.mxu0 0.0
    %871 = vmatpush2.xpose.msra.mxu0 0.0
    %872 = vmatprep.subr.mxu0 0.0
    %873 = vmatpush2.xpose.msra.mxu0 0.0
    %874 = vmatprep.subr.mxu0 0.0
    %875 = vmatpush2.xpose.msra.mxu0 0.0
    %876 = vmatprep.subr.mxu0 0.0
    %877 = vmatpush2.xpose.msra.mxu0 0.0
    %878 = vmatprep.subr.mxu0 0.0
    %879 = vmatpush2.xpose.msra.mxu0 0.0
    %880 = vmatprep.subr.mxu0 0.0
    %881 = vmatpush2.xpose.msra.mxu0 0.0
    %882 = vmatprep.subr.mxu0 0.0
    %883 = vmatpush2.xpose.msra.mxu0 0.0
    %884 = vmatprep.mubr.f32.mxu0 0.0
    %885 = vmatmul.mubr.f32.gmra.mxu0 %v816
    %v886 = vpop.f32.mrf.mxu0
    %v887 = vadd.f32 0.0, %v886
    %v888 = vpop.f32.mrf.mxu0
    %889 = vdwg.mxu0
    %v890 = vsel %vm565, %v809, -inf
    %891 = vmax.xlane.f32.xlu0 %v890
    %v892 = vpop.xlane.xlu0 %891
    %v893 = vsel %vm565, %v887, -inf
    %894 = vmax.xlane.f32.xlu0 %v893
    %v895 = vpop.xlane.xlu0 %894
    %v896 = vsub.f32 %v809, %v892
    %v897 = vsub.f32 %v887, %v895
    %v898 = vmul.f32 %v896, 1.442695
    %v899 = vpow.pop %v898
    %v900 = vmul.f32 %v897, 1.442695
    %v901 = vpow.pop %v900
    %v902 = vsel %vm565, %v899, 0.0
    %903 = vadd.xlane.f32.xlu0 %v902
    %v904 = vpop.xlane.xlu0 %903
    %v905 = vsel %vm565, %v901, 0.0
    %906 = vadd.xlane.f32.xlu0 %v905
    %v907 = vpop.xlane.xlu0 %906
    %v908 = vrcp.pop %v904
    %v909 = vrcp.pop %v907
    %v910 = vmul.f32 %v899, %v908
    %v911 = vmul.f32 %v901, %v909
    %913 = vrot.lane.b32.xlu0 %v388, 96
    %v914 = vpop.permute.xlu0 %913
    %v917 = vsel %vm565, %v910, 0
    %919 = vmatprep.subr.mxu0 0.0
    %920 = vmatpush1.msra.mxu0 0.0
    %921 = vmatprep.subr.mxu0 0.0
    %922 = vmatpush1.msra.mxu0 0.0
    %923 = vmatprep.subr.mxu0 0.0
    %924 = vmatpush1.msra.mxu0 0.0
    %925 = vmatprep.subr.mxu0 0.0
    %926 = vmatpush1.msra.mxu0 0.0
    %927 = vmatprep.subr.mxu0 0.0
    %928 = vmatpush1.msra.mxu0 0.0
    %929 = vmatprep.subr.mxu0 0.0
    %930 = vmatpush1.msra.mxu0 0.0
    %931 = vmatprep.subr.mxu0 0.0
    %932 = vmatpush1.msra.mxu0 0.0
    %933 = vmatprep.subr.mxu0 0.0
    %934 = vmatpush1.msra.mxu0 0.0
    %935 = vmatprep.subr.mxu0 0.0
    %936 = vmatpush1.msra.mxu0 0.0
    %937 = vmatprep.subr.mxu0 0.0
    %938 = vmatpush1.msra.mxu0 0.0
    %939 = vmatprep.subr.mxu0 0.0
    %940 = vmatpush1.msra.mxu0 0.0
    %941 = vmatprep.subr.mxu0 0.0
    %942 = vmatpush1.msra.mxu0 0.0
    %943 = vmatprep.subr.mxu0 0.0
    %944 = vmatpush1.msra.mxu0 0.0
    %945 = vmatprep.subr.mxu0 0.0
    %946 = vmatpush1.msra.mxu0 0.0
    %947 = vmatprep.subr.mxu0 0.0
    %948 = vmatpush1.msra.mxu0 0.0
    %949 = vmatprep.subr.mxu0 0.0
    %950 = vmatpush1.msra.mxu0 %v914
    %951 = vmatprep.subr.mxu0 0.0
    %952 = vmatpush2.msra.mxu0 0.0
    %953 = vmatprep.subr.mxu0 0.0
    %954 = vmatpush2.msra.mxu0 0.0
    %955 = vmatprep.subr.mxu0 0.0
    %956 = vmatpush2.msra.mxu0 0.0
    %957 = vmatprep.subr.mxu0 0.0
    %958 = vmatpush2.msra.mxu0 0.0
    %959 = vmatprep.subr.mxu0 0.0
    %960 = vmatpush2.msra.mxu0 0.0
    %961 = vmatprep.subr.mxu0 0.0
    %962 = vmatpush2.msra.mxu0 0.0
    %963 = vmatprep.subr.mxu0 0.0
    %964 = vmatpush2.msra.mxu0 0.0
    %965 = vmatprep.subr.mxu0 0.0
    %966 = vmatpush2.msra.mxu0 0.0
    %967 = vmatprep.subr.mxu0 0.0
    %968 = vmatpush2.msra.mxu0 0.0
    %969 = vmatprep.subr.mxu0 0.0
    %970 = vmatpush2.msra.mxu0 0.0
    %971 = vmatprep.subr.mxu0 0.0
    %972 = vmatpush2.msra.mxu0 0.0
    %973 = vmatprep.subr.mxu0 0.0
    %974 = vmatpush2.msra.mxu0 0.0
    %975 = vmatprep.subr.mxu0 0.0
    %976 = vmatpush2.msra.mxu0 0.0
    %977 = vmatprep.subr.mxu0 0.0
    %978 = vmatpush2.msra.mxu0 0.0
    %979 = vmatprep.subr.mxu0 0.0
    %980 = vmatpush2.msra.mxu0 0.0
    %981 = vmatprep.subr.mxu0 0.0
    %982 = vmatpush2.msra.mxu0 0.0
    %983 = vmatprep.mubr.f32.mxu0 0.0
    %984 = vmatmul.mubr.f32.gmra.mxu0 %v917
    %v985 = vpop.f32.mrf.mxu0
    %v986 = vadd.f32 0.0, %v985
    %v987 = vpop.f32.mrf.mxu0
    %988 = vdwg.mxu0
    %990 = vrot.lane.b32.xlu0 %v393, 96
    %v991 = vpop.permute.xlu0 %990
    %v994 = vsel %vm565, %v911, 0
    %996 = vmatprep.subr.mxu0 0.0
    %997 = vmatpush1.msra.mxu0 0.0
    %998 = vmatprep.subr.mxu0 0.0
    %999 = vmatpush1.msra.mxu0 0.0
    %1000 = vmatprep.subr.mxu0 0.0
    %1001 = vmatpush1.msra.mxu0 0.0
    %1002 = vmatprep.subr.mxu0 0.0
    %1003 = vmatpush1.msra.mxu0 0.0
    %1004 = vmatprep.subr.mxu0 0.0
    %1005 = vmatpush1.msra.mxu0 0.0
    %1006 = vmatprep.subr.mxu0 0.0
    %1007 = vmatpush1.msra.mxu0 0.0
    %1008 = vmatprep.subr.mxu0 0.0
    %1009 = vmatpush1.msra.mxu0 0.0
    %1010 = vmatprep.subr.mxu0 0.0
    %1011 = vmatpush1.msra.mxu0 0.0
    %1012 = vmatprep.subr.mxu0 0.0
    %1013 = vmatpush1.msra.mxu0 0.0
    %1014 = vmatprep.subr.mxu0 0.0
    %1015 = vmatpush1.msra.mxu0 0.0
    %1016 = vmatprep.subr.mxu0 0.0
    %1017 = vmatpush1.msra.mxu0 0.0
    %1018 = vmatprep.subr.mxu0 0.0
    %1019 = vmatpush1.msra.mxu0 0.0
    %1020 = vmatprep.subr.mxu0 0.0
    %1021 = vmatpush1.msra.mxu0 0.0
    %1022 = vmatprep.subr.mxu0 0.0
    %1023 = vmatpush1.msra.mxu0 0.0
    %1024 = vmatprep.subr.mxu0 0.0
    %1025 = vmatpush1.msra.mxu0 0.0
    %1026 = vmatprep.subr.mxu0 0.0
    %1027 = vmatpush1.msra.mxu0 %v991
    %1028 = vmatprep.subr.mxu0 0.0
    %1029 = vmatpush2.msra.mxu0 0.0
    %1030 = vmatprep.subr.mxu0 0.0
    %1031 = vmatpush2.msra.mxu0 0.0
    %1032 = vmatprep.subr.mxu0 0.0
    %1033 = vmatpush2.msra.mxu0 0.0
    %1034 = vmatprep.subr.mxu0 0.0
    %1035 = vmatpush2.msra.mxu0 0.0
    %1036 = vmatprep.subr.mxu0 0.0
    %1037 = vmatpush2.msra.mxu0 0.0
    %1038 = vmatprep.subr.mxu0 0.0
    %1039 = vmatpush2.msra.mxu0 0.0
    %1040 = vmatprep.subr.mxu0 0.0
    %1041 = vmatpush2.msra.mxu0 0.0
    %1042 = vmatprep.subr.mxu0 0.0
    %1043 = vmatpush2.msra.mxu0 0.0
    %1044 = vmatprep.subr.mxu0 0.0
    %1045 = vmatpush2.msra.mxu0 0.0
    %1046 = vmatprep.subr.mxu0 0.0
    %1047 = vmatpush2.msra.mxu0 0.0
    %1048 = vmatprep.subr.mxu0 0.0
    %1049 = vmatpush2.msra.mxu0 0.0
    %1050 = vmatprep.subr.mxu0 0.0
    %1051 = vmatpush2.msra.mxu0 0.0
    %1052 = vmatprep.subr.mxu0 0.0
    %1053 = vmatpush2.msra.mxu0 0.0
    %1054 = vmatprep.subr.mxu0 0.0
    %1055 = vmatpush2.msra.mxu0 0.0
    %1056 = vmatprep.subr.mxu0 0.0
    %1057 = vmatpush2.msra.mxu0 0.0
    %1058 = vmatprep.subr.mxu0 0.0
    %1059 = vmatpush2.msra.mxu0 0.0
    %1060 = vmatprep.mubr.f32.mxu0 0.0
    %1061 = vmatmul.mubr.f32.gmra.mxu0 %v994
    %v1062 = vpop.f32.mrf.mxu0
    %v1063 = vadd.f32 0.0, %v1062
    %v1064 = vpop.f32.mrf.mxu0
    %1065 = vdwg.mxu0
    %v1067 = vsel %vm412, %v986, 0
    %v1070 = vsel %vm412, %v1063, 0
    %1072 = vmatprep.subr.mxu0 0.0
    %1073 = vmatpush1.msra.mxu0 0.0
    %1074 = vmatprep.subr.mxu0 0.0
    %1075 = vmatpush1.msra.mxu0 0.0
    %1076 = vmatprep.subr.mxu0 0.0
    %1077 = vmatpush1.msra.mxu0 0.0
    %1078 = vmatprep.subr.mxu0 0.0
    %1079 = vmatpush1.msra.mxu0 0.0
    %1080 = vmatprep.subr.mxu0 0.0
    %1081 = vmatpush1.msra.mxu0 0.0
    %1082 = vmatprep.subr.mxu0 0.0
    %1083 = vmatpush1.msra.mxu0 0.0
    %1084 = vmatprep.subr.mxu0 0.0
    %1085 = vmatpush1.msra.mxu0 0.0
    %1086 = vmatprep.subr.mxu0 0.0
    %1087 = vmatpush1.msra.mxu0 0.0
    %1088 = vmatprep.subr.mxu0 0.0
    %1089 = vmatpush1.msra.mxu0 0.0
    %1090 = vmatprep.subr.mxu0 0.0
    %1091 = vmatpush1.msra.mxu0 0.0
    %1092 = vmatprep.subr.mxu0 0.0
    %1093 = vmatpush1.msra.mxu0 0.0
    %1094 = vmatprep.subr.mxu0 0.0
    %1095 = vmatpush1.msra.mxu0 0.0
    %1096 = vmatprep.subr.mxu0 0.0
    %1097 = vmatpush1.msra.mxu0 %v403
    %1098 = vmatprep.subr.mxu0 0.0
    %1099 = vmatpush1.msra.mxu0 %v402
    %1100 = vmatprep.subr.mxu0 0.0
    %1101 = vmatpush1.msra.mxu0 %v401
    %1102 = vmatprep.subr.mxu0 0.0
    %1103 = vmatpush1.msra.mxu0 %v400
    %1104 = vmatprep.subr.mxu0 0.0
    %1105 = vmatpush2.msra.mxu0 0.0
    %1106 = vmatprep.subr.mxu0 0.0
    %1107 = vmatpush2.msra.mxu0 0.0
    %1108 = vmatprep.subr.mxu0 0.0
    %1109 = vmatpush2.msra.mxu0 0.0
    %1110 = vmatprep.subr.mxu0 0.0
    %1111 = vmatpush2.msra.mxu0 0.0
    %1112 = vmatprep.subr.mxu0 0.0
    %1113 = vmatpush2.msra.mxu0 0.0
    %1114 = vmatprep.subr.mxu0 0.0
    %1115 = vmatpush2.msra.mxu0 0.0
    %1116 = vmatprep.subr.mxu0 0.0
    %1117 = vmatpush2.msra.mxu0 0.0
    %1118 = vmatprep.subr.mxu0 0.0
    %1119 = vmatpush2.msra.mxu0 0.0
    %1120 = vmatprep.subr.mxu0 0.0
    %1121 = vmatpush2.msra.mxu0 0.0
    %1122 = vmatprep.subr.mxu0 0.0
    %1123 = vmatpush2.msra.mxu0 0.0
    %1124 = vmatprep.subr.mxu0 0.0
    %1125 = vmatpush2.msra.mxu0 0.0
    %1126 = vmatprep.subr.mxu0 0.0
    %1127 = vmatpush2.msra.mxu0 0.0
    %1128 = vmatprep.subr.mxu0 0.0
    %1129 = vmatpush2.msra.mxu0 0.0
    %1130 = vmatprep.subr.mxu0 0.0
    %1131 = vmatpush2.msra.mxu0 0.0
    %1132 = vmatprep.subr.mxu0 0.0
    %1133 = vmatpush2.msra.mxu0 0.0
    %1134 = vmatprep.subr.mxu0 0.0
    %1135 = vmatpush2.msra.mxu0 0.0
    %1136 = vmatprep.mubr.f32.mxu0 0.0
    %1137 = vmatmul.mubr.f32.gmra.mxu0 %v1067
    %v1138 = vpop.f32.mrf.mxu0
    %v1139 = vadd.f32 0.0, %v1138
    %v1140 = vpop.f32.mrf.mxu0
    %1141 = vmatprep.mubr.f32.mxu0 0.0
    %1142 = vmatmul.mubr.f32.gmra.mxu0 %v1070
    %v1143 = vpop.f32.mrf.mxu0
    %v1144 = vadd.f32 0.0, %v1143
    %v1145 = vpop.f32.mrf.mxu0
    %1146 = vdwg.mxu0
    %v1148 = vsel %vm412, %v658, 0
    %v1151 = vsel %vm412, %v731, 0
    %1153 = vmatprep.subr.mxu0 0.0
    %1154 = vmatpush1.msra.mxu0 0.0
    %1155 = vmatprep.subr.mxu0 0.0
    %1156 = vmatpush1.msra.mxu0 0.0
    %1157 = vmatprep.subr.mxu0 0.0
    %1158 = vmatpush1.msra.mxu0 0.0
    %1159 = vmatprep.subr.mxu0 0.0
    %1160 = vmatpush1.msra.mxu0 0.0
    %1161 = vmatprep.subr.mxu0 0.0
    %1162 = vmatpush1.msra.mxu0 0.0
    %1163 = vmatprep.subr.mxu0 0.0
    %1164 = vmatpush1.msra.mxu0 0.0
    %1165 = vmatprep.subr.mxu0 0.0
    %1166 = vmatpush1.msra.mxu0 0.0
    %1167 = vmatprep.subr.mxu0 0.0
    %1168 = vmatpush1.msra.mxu0 0.0
    %1169 = vmatprep.subr.mxu0 0.0
    %1170 = vmatpush1.msra.mxu0 0.0
    %1171 = vmatprep.subr.mxu0 0.0
    %1172 = vmatpush1.msra.mxu0 0.0
    %1173 = vmatprep.subr.mxu0 0.0
    %1174 = vmatpush1.msra.mxu0 0.0
    %1175 = vmatprep.subr.mxu0 0.0
    %1176 = vmatpush1.msra.mxu0 0.0
    %1177 = vmatprep.subr.mxu0 0.0
    %1178 = vmatpush1.msra.mxu0 %v399
    %1179 = vmatprep.subr.mxu0 0.0
    %1180 = vmatpush1.msra.mxu0 %v398
    %1181 = vmatprep.subr.mxu0 0.0
    %1182 = vmatpush1.msra.mxu0 %v397
    %1183 = vmatprep.subr.mxu0 0.0
    %1184 = vmatpush1.msra.mxu0 %v396
    %1185 = vmatprep.subr.mxu0 0.0
    %1186 = vmatpush2.msra.mxu0 0.0
    %1187 = vmatprep.subr.mxu0 0.0
    %1188 = vmatpush2.msra.mxu0 0.0
    %1189 = vmatprep.subr.mxu0 0.0
    %1190 = vmatpush2.msra.mxu0 0.0
    %1191 = vmatprep.subr.mxu0 0.0
    %1192 = vmatpush2.msra.mxu0 0.0
    %1193 = vmatprep.subr.mxu0 0.0
    %1194 = vmatpush2.msra.mxu0 0.0
    %1195 = vmatprep.subr.mxu0 0.0
    %1196 = vmatpush2.msra.mxu0 0.0
    %1197 = vmatprep.subr.mxu0 0.0
    %1198 = vmatpush2.msra.mxu0 0.0
    %1199 = vmatprep.subr.mxu0 0.0
    %1200 = vmatpush2.msra.mxu0 0.0
    %1201 = vmatprep.subr.mxu0 0.0
    %1202 = vmatpush2.msra.mxu0 0.0
    %1203 = vmatprep.subr.mxu0 0.0
    %1204 = vmatpush2.msra.mxu0 0.0
    %1205 = vmatprep.subr.mxu0 0.0
    %1206 = vmatpush2.msra.mxu0 0.0
    %1207 = vmatprep.subr.mxu0 0.0
    %1208 = vmatpush2.msra.mxu0 0.0
    %1209 = vmatprep.subr.mxu0 0.0
    %1210 = vmatpush2.msra.mxu0 0.0
    %1211 = vmatprep.subr.mxu0 0.0
    %1212 = vmatpush2.msra.mxu0 0.0
    %1213 = vmatprep.subr.mxu0 0.0
    %1214 = vmatpush2.msra.mxu0 0.0
    %1215 = vmatprep.subr.mxu0 0.0
    %1216 = vmatpush2.msra.mxu0 0.0
    %1217 = vmatprep.mubr.f32.mxu0 0.0
    %1218 = vmatmul.mubr.f32.gmra.mxu0 %v1148
    %v1219 = vpop.f32.mrf.mxu0
    %v1220 = vadd.f32 %v1139, %v1219
    %v1221 = vpop.f32.mrf.mxu0
    %1222 = vmatprep.mubr.f32.mxu0 0.0
    %1223 = vmatmul.mubr.f32.gmra.mxu0 %v1151
    %v1224 = vpop.f32.mrf.mxu0
    %v1225 = vadd.f32 %v1144, %v1224
    %v1226 = vpop.f32.mrf.mxu0
    %1227 = vdwg.mxu0
    %1228 = vrot.lane.b32.xlu0 %v311, 64
    %v1229 = vpop.permute.xlu0 %1228
    %1230 = vrot.lane.b32.xlu0 %v313, 64
    %v1231 = vpop.permute.xlu0 %1230
    %v1232 = vsel %vm412, %v1229, 0
    %v1234 = vsel %vm412, %v1231, 0
    %1236 = vmatprep.subr.mxu0 0.0
    %1237 = vmatpush1.xpose.msra.mxu0 0.0
    %1238 = vmatprep.subr.mxu0 0.0
    %1239 = vmatpush1.xpose.msra.mxu0 0.0
    %1240 = vmatprep.subr.mxu0 0.0
    %1241 = vmatpush1.xpose.msra.mxu0 0.0
    %1242 = vmatprep.subr.mxu0 0.0
    %1243 = vmatpush1.xpose.msra.mxu0 0.0
    %1244 = vmatprep.subr.mxu0 0.0
    %1245 = vmatpush1.xpose.msra.mxu0 0.0
    %1246 = vmatprep.subr.mxu0 0.0
    %1247 = vmatpush1.xpose.msra.mxu0 0.0
    %1248 = vmatprep.subr.mxu0 0.0
    %1249 = vmatpush1.xpose.msra.mxu0 0.0
    %1250 = vmatprep.subr.mxu0 0.0
    %1251 = vmatpush1.xpose.msra.mxu0 0.0
    %1252 = vmatprep.subr.mxu0 0.0
    %1253 = vmatpush1.xpose.msra.mxu0 0.0
    %1254 = vmatprep.subr.mxu0 0.0
    %1255 = vmatpush1.xpose.msra.mxu0 0.0
    %1256 = vmatprep.subr.mxu0 0.0
    %1257 = vmatpush1.xpose.msra.mxu0 0.0
    %1258 = vmatprep.subr.mxu0 0.0
    %1259 = vmatpush1.xpose.msra.mxu0 0.0
    %1260 = vmatprep.subr.mxu0 0.0
    %1261 = vmatpush1.xpose.msra.mxu0 0.0
    %1262 = vmatprep.subr.mxu0 0.0
    %1263 = vmatpush1.xpose.msra.mxu0 0.0
    %1264 = vmatprep.subr.mxu0 0.0
    %1265 = vmatpush1.xpose.msra.mxu0 0.0
    %1266 = vmatprep.subr.mxu0 0.0
    %1267 = vmatpush1.xpose.msra.mxu0 %v1234
    %1268 = vmatprep.subr.mxu0 0.0
    %1269 = vmatpush2.xpose.msra.mxu0 0.0
    %1270 = vmatprep.subr.mxu0 0.0
    %1271 = vmatpush2.xpose.msra.mxu0 0.0
    %1272 = vmatprep.subr.mxu0 0.0
    %1273 = vmatpush2.xpose.msra.mxu0 0.0
    %1274 = vmatprep.subr.mxu0 0.0
    %1275 = vmatpush2.xpose.msra.mxu0 0.0
    %1276 = vmatprep.subr.mxu0 0.0
    %1277 = vmatpush2.xpose.msra.mxu0 0.0
    %1278 = vmatprep.subr.mxu0 0.0
    %1279 = vmatpush2.xpose.msra.mxu0 0.0
    %1280 = vmatprep.subr.mxu0 0.0
    %1281 = vmatpush2.xpose.msra.mxu0 0.0
    %1282 = vmatprep.subr.mxu0 0.0
    %1283 = vmatpush2.xpose.msra.mxu0 0.0
    %1284 = vmatprep.subr.mxu0 0.0
    %1285 = vmatpush2.xpose.msra.mxu0 0.0
    %1286 = vmatprep.subr.mxu0 0.0
    %1287 = vmatpush2.xpose.msra.mxu0 0.0
    %1288 = vmatprep.subr.mxu0 0.0
    %1289 = vmatpush2.xpose.msra.mxu0 0.0
    %1290 = vmatprep.subr.mxu0 0.0
    %1291 = vmatpush2.xpose.msra.mxu0 0.0
    %1292 = vmatprep.subr.mxu0 0.0
    %1293 = vmatpush2.xpose.msra.mxu0 0.0
    %1294 = vmatprep.subr.mxu0 0.0
    %1295 = vmatpush2.xpose.msra.mxu0 0.0
    %1296 = vmatprep.subr.mxu0 0.0
    %1297 = vmatpush2.xpose.msra.mxu0 0.0
    %1298 = vmatprep.subr.mxu0 0.0
    %1299 = vmatpush2.xpose.msra.mxu0 0.0
    %1300 = vmatprep.mubr.f32.mxu0 0.0
    %1301 = vmatmul.mubr.f32.gmra.mxu0 %v1232
    %v1302 = vpop.f32.mrf.mxu0
    %v1303 = vadd.f32 0.0, %v1302
    %v1304 = vpop.f32.mrf.mxu0
    %1305 = vdwg.mxu0
    %1306 = vrot.lane.b32.xlu0 %v317, 64
    %v1307 = vpop.permute.xlu0 %1306
    %1308 = vrot.lane.b32.xlu0 %v319, 64
    %v1309 = vpop.permute.xlu0 %1308
    %v1310 = vsel %vm412, %v1307, 0
    %v1312 = vsel %vm412, %v1309, 0
    %1314 = vmatprep.subr.mxu0 0.0
    %1315 = vmatpush1.xpose.msra.mxu0 0.0
    %1316 = vmatprep.subr.mxu0 0.0
    %1317 = vmatpush1.xpose.msra.mxu0 0.0
    %1318 = vmatprep.subr.mxu0 0.0
    %1319 = vmatpush1.xpose.msra.mxu0 0.0
    %1320 = vmatprep.subr.mxu0 0.0
    %1321 = vmatpush1.xpose.msra.mxu0 0.0
    %1322 = vmatprep.subr.mxu0 0.0
    %1323 = vmatpush1.xpose.msra.mxu0 0.0
    %1324 = vmatprep.subr.mxu0 0.0
    %1325 = vmatpush1.xpose.msra.mxu0 0.0
    %1326 = vmatprep.subr.mxu0 0.0
    %1327 = vmatpush1.xpose.msra.mxu0 0.0
    %1328 = vmatprep.subr.mxu0 0.0
    %1329 = vmatpush1.xpose.msra.mxu0 0.0
    %1330 = vmatprep.subr.mxu0 0.0
    %1331 = vmatpush1.xpose.msra.mxu0 0.0
    %1332 = vmatprep.subr.mxu0 0.0
    %1333 = vmatpush1.xpose.msra.mxu0 0.0
    %1334 = vmatprep.subr.mxu0 0.0
    %1335 = vmatpush1.xpose.msra.mxu0 0.0
    %1336 = vmatprep.subr.mxu0 0.0
    %1337 = vmatpush1.xpose.msra.mxu0 0.0
    %1338 = vmatprep.subr.mxu0 0.0
    %1339 = vmatpush1.xpose.msra.mxu0 0.0
    %1340 = vmatprep.subr.mxu0 0.0
    %1341 = vmatpush1.xpose.msra.mxu0 0.0
    %1342 = vmatprep.subr.mxu0 0.0
    %1343 = vmatpush1.xpose.msra.mxu0 0.0
    %1344 = vmatprep.subr.mxu0 0.0
    %1345 = vmatpush1.xpose.msra.mxu0 %v1312
    %1346 = vmatprep.subr.mxu0 0.0
    %1347 = vmatpush2.xpose.msra.mxu0 0.0
    %1348 = vmatprep.subr.mxu0 0.0
    %1349 = vmatpush2.xpose.msra.mxu0 0.0
    %1350 = vmatprep.subr.mxu0 0.0
    %1351 = vmatpush2.xpose.msra.mxu0 0.0
    %1352 = vmatprep.subr.mxu0 0.0
    %1353 = vmatpush2.xpose.msra.mxu0 0.0
    %1354 = vmatprep.subr.mxu0 0.0
    %1355 = vmatpush2.xpose.msra.mxu0 0.0
    %1356 = vmatprep.subr.mxu0 0.0
    %1357 = vmatpush2.xpose.msra.mxu0 0.0
    %1358 = vmatprep.subr.mxu0 0.0
    %1359 = vmatpush2.xpose.msra.mxu0 0.0
    %1360 = vmatprep.subr.mxu0 0.0
    %1361 = vmatpush2.xpose.msra.mxu0 0.0
    %1362 = vmatprep.subr.mxu0 0.0
    %1363 = vmatpush2.xpose.msra.mxu0 0.0
    %1364 = vmatprep.subr.mxu0 0.0
    %1365 = vmatpush2.xpose.msra.mxu0 0.0
    %1366 = vmatprep.subr.mxu0 0.0
    %1367 = vmatpush2.xpose.msra.mxu0 0.0
    %1368 = vmatprep.subr.mxu0 0.0
    %1369 = vmatpush2.xpose.msra.mxu0 0.0
    %1370 = vmatprep.subr.mxu0 0.0
    %1371 = vmatpush2.xpose.msra.mxu0 0.0
    %1372 = vmatprep.subr.mxu0 0.0
    %1373 = vmatpush2.xpose.msra.mxu0 0.0
    %1374 = vmatprep.subr.mxu0 0.0
    %1375 = vmatpush2.xpose.msra.mxu0 0.0
    %1376 = vmatprep.subr.mxu0 0.0
    %1377 = vmatpush2.xpose.msra.mxu0 0.0
    %1378 = vmatprep.mubr.f32.mxu0 0.0
    %1379 = vmatmul.mubr.f32.gmra.mxu0 %v1310
    %v1380 = vpop.f32.mrf.mxu0
    %v1381 = vadd.f32 0.0, %v1380
    %v1382 = vpop.f32.mrf.mxu0
    %1383 = vdwg.mxu0
    %v1384 = vsel %vm565, %v1303, -inf
    %1385 = vmax.xlane.f32.xlu0 %v1384
    %v1386 = vpop.xlane.xlu0 %1385
    %v1387 = vsel %vm565, %v1381, -inf
    %1388 = vmax.xlane.f32.xlu0 %v1387
    %v1389 = vpop.xlane.xlu0 %1388
    %v1390 = vsub.f32 %v1303, %v1386
    %v1391 = vsub.f32 %v1381, %v1389
    %v1392 = vmul.f32 %v1390, 1.442695
    %v1393 = vpow.pop %v1392
    %v1394 = vmul.f32 %v1391, 1.442695
    %v1395 = vpow.pop %v1394
    %v1396 = vsel %vm565, %v1393, 0.0
    %1397 = vadd.xlane.f32.xlu0 %v1396
    %v1398 = vpop.xlane.xlu0 %1397
    %v1399 = vsel %vm565, %v1395, 0.0
    %1400 = vadd.xlane.f32.xlu0 %v1399
    %v1401 = vpop.xlane.xlu0 %1400
    %v1402 = vrcp.pop %v1398
    %v1403 = vrcp.pop %v1401
    %v1404 = vmul.f32 %v1393, %v1402
    %v1405 = vmul.f32 %v1395, %v1403
    %1406 = vrot.lane.b32.xlu0 %v388, 64
    %v1407 = vpop.permute.xlu0 %1406
    %v1410 = vsel %vm565, %v1404, 0
    %1412 = vmatprep.subr.mxu0 0.0
    %1413 = vmatpush1.msra.mxu0 0.0
    %1414 = vmatprep.subr.mxu0 0.0
    %1415 = vmatpush1.msra.mxu0 0.0
    %1416 = vmatprep.subr.mxu0 0.0
    %1417 = vmatpush1.msra.mxu0 0.0
    %1418 = vmatprep.subr.mxu0 0.0
    %1419 = vmatpush1.msra.mxu0 0.0
    %1420 = vmatprep.subr.mxu0 0.0
    %1421 = vmatpush1.msra.mxu0 0.0
    %1422 = vmatprep.subr.mxu0 0.0
    %1423 = vmatpush1.msra.mxu0 0.0
    %1424 = vmatprep.subr.mxu0 0.0
    %1425 = vmatpush1.msra.mxu0 0.0
    %1426 = vmatprep.subr.mxu0 0.0
    %1427 = vmatpush1.msra.mxu0 0.0
    %1428 = vmatprep.subr.mxu0 0.0
    %1429 = vmatpush1.msra.mxu0 0.0
    %1430 = vmatprep.subr.mxu0 0.0
    %1431 = vmatpush1.msra.mxu0 0.0
    %1432 = vmatprep.subr.mxu0 0.0
    %1433 = vmatpush1.msra.mxu0 0.0
    %1434 = vmatprep.subr.mxu0 0.0
    %1435 = vmatpush1.msra.mxu0 0.0
    %1436 = vmatprep.subr.mxu0 0.0
    %1437 = vmatpush1.msra.mxu0 0.0
    %1438 = vmatprep.subr.mxu0 0.0
    %1439 = vmatpush1.msra.mxu0 0.0
    %1440 = vmatprep.subr.mxu0 0.0
    %1441 = vmatpush1.msra.mxu0 0.0
    %1442 = vmatprep.subr.mxu0 0.0
    %1443 = vmatpush1.msra.mxu0 %v1407
    %1444 = vmatprep.subr.mxu0 0.0
    %1445 = vmatpush2.msra.mxu0 0.0
    %1446 = vmatprep.subr.mxu0 0.0
    %1447 = vmatpush2.msra.mxu0 0.0
    %1448 = vmatprep.subr.mxu0 0.0
    %1449 = vmatpush2.msra.mxu0 0.0
    %1450 = vmatprep.subr.mxu0 0.0
    %1451 = vmatpush2.msra.mxu0 0.0
    %1452 = vmatprep.subr.mxu0 0.0
    %1453 = vmatpush2.msra.mxu0 0.0
    %1454 = vmatprep.subr.mxu0 0.0
    %1455 = vmatpush2.msra.mxu0 0.0
    %1456 = vmatprep.subr.mxu0 0.0
    %1457 = vmatpush2.msra.mxu0 0.0
    %1458 = vmatprep.subr.mxu0 0.0
    %1459 = vmatpush2.msra.mxu0 0.0
    %1460 = vmatprep.subr.mxu0 0.0
    %1461 = vmatpush2.msra.mxu0 0.0
    %1462 = vmatprep.subr.mxu0 0.0
    %1463 = vmatpush2.msra.mxu0 0.0
    %1464 = vmatprep.subr.mxu0 0.0
    %1465 = vmatpush2.msra.mxu0 0.0
    %1466 = vmatprep.subr.mxu0 0.0
    %1467 = vmatpush2.msra.mxu0 0.0
    %1468 = vmatprep.subr.mxu0 0.0
    %1469 = vmatpush2.msra.mxu0 0.0
    %1470 = vmatprep.subr.mxu0 0.0
    %1471 = vmatpush2.msra.mxu0 0.0
    %1472 = vmatprep.subr.mxu0 0.0
    %1473 = vmatpush2.msra.mxu0 0.0
    %1474 = vmatprep.subr.mxu0 0.0
    %1475 = vmatpush2.msra.mxu0 0.0
    %1476 = vmatprep.mubr.f32.mxu0 0.0
    %1477 = vmatmul.mubr.f32.gmra.mxu0 %v1410
    %v1478 = vpop.f32.mrf.mxu0
    %v1479 = vadd.f32 0.0, %v1478
    %v1480 = vpop.f32.mrf.mxu0
    %1481 = vdwg.mxu0
    %1482 = vrot.lane.b32.xlu0 %v393, 64
    %v1483 = vpop.permute.xlu0 %1482
    %v1486 = vsel %vm565, %v1405, 0
    %1488 = vmatprep.subr.mxu0 0.0
    %1489 = vmatpush1.msra.mxu0 0.0
    %1490 = vmatprep.subr.mxu0 0.0
    %1491 = vmatpush1.msra.mxu0 0.0
    %1492 = vmatprep.subr.mxu0 0.0
    %1493 = vmatpush1.msra.mxu0 0.0
    %1494 = vmatprep.subr.mxu0 0.0
    %1495 = vmatpush1.msra.mxu0 0.0
    %1496 = vmatprep.subr.mxu0 0.0
    %1497 = vmatpush1.msra.mxu0 0.0
    %1498 = vmatprep.subr.mxu0 0.0
    %1499 = vmatpush1.msra.mxu0 0.0
    %1500 = vmatprep.subr.mxu0 0.0
    %1501 = vmatpush1.msra.mxu0 0.0
    %1502 = vmatprep.subr.mxu0 0.0
    %1503 = vmatpush1.msra.mxu0 0.0
    %1504 = vmatprep.subr.mxu0 0.0
    %1505 = vmatpush1.msra.mxu0 0.0
    %1506 = vmatprep.subr.mxu0 0.0
    %1507 = vmatpush1.msra.mxu0 0.0
    %1508 = vmatprep.subr.mxu0 0.0
    %1509 = vmatpush1.msra.mxu0 0.0
    %1510 = vmatprep.subr.mxu0 0.0
    %1511 = vmatpush1.msra.mxu0 0.0
    %1512 = vmatprep.subr.mxu0 0.0
    %1513 = vmatpush1.msra.mxu0 0.0
    %1514 = vmatprep.subr.mxu0 0.0
    %1515 = vmatpush1.msra.mxu0 0.0
    %1516 = vmatprep.subr.mxu0 0.0
    %1517 = vmatpush1.msra.mxu0 0.0
    %1518 = vmatprep.subr.mxu0 0.0
    %1519 = vmatpush1.msra.mxu0 %v1483
    %1520 = vmatprep.subr.mxu0 0.0
    %1521 = vmatpush2.msra.mxu0 0.0
    %1522 = vmatprep.subr.mxu0 0.0
    %1523 = vmatpush2.msra.mxu0 0.0
    %1524 = vmatprep.subr.mxu0 0.0
    %1525 = vmatpush2.msra.mxu0 0.0
    %1526 = vmatprep.subr.mxu0 0.0
    %1527 = vmatpush2.msra.mxu0 0.0
    %1528 = vmatprep.subr.mxu0 0.0
    %1529 = vmatpush2.msra.mxu0 0.0
    %1530 = vmatprep.subr.mxu0 0.0
    %1531 = vmatpush2.msra.mxu0 0.0
    %1532 = vmatprep.subr.mxu0 0.0
    %1533 = vmatpush2.msra.mxu0 0.0
    %1534 = vmatprep.subr.mxu0 0.0
    %1535 = vmatpush2.msra.mxu0 0.0
    %1536 = vmatprep.subr.mxu0 0.0
    %1537 = vmatpush2.msra.mxu0 0.0
    %1538 = vmatprep.subr.mxu0 0.0
    %1539 = vmatpush2.msra.mxu0 0.0
    %1540 = vmatprep.subr.mxu0 0.0
    %1541 = vmatpush2.msra.mxu0 0.0
    %1542 = vmatprep.subr.mxu0 0.0
    %1543 = vmatpush2.msra.mxu0 0.0
    %1544 = vmatprep.subr.mxu0 0.0
    %1545 = vmatpush2.msra.mxu0 0.0
    %1546 = vmatprep.subr.mxu0 0.0
    %1547 = vmatpush2.msra.mxu0 0.0
    %1548 = vmatprep.subr.mxu0 0.0
    %1549 = vmatpush2.msra.mxu0 0.0
    %1550 = vmatprep.subr.mxu0 0.0
    %1551 = vmatpush2.msra.mxu0 0.0
    %1552 = vmatprep.mubr.f32.mxu0 0.0
    %1553 = vmatmul.mubr.f32.gmra.mxu0 %v1486
    %v1554 = vpop.f32.mrf.mxu0
    %v1555 = vadd.f32 0.0, %v1554
    %v1556 = vpop.f32.mrf.mxu0
    %1557 = vdwg.mxu0
    %v1559 = vsel %vm412, %v1479, 0
    %v1562 = vsel %vm412, %v1555, 0
    %1564 = vmatprep.subr.mxu0 0.0
    %1565 = vmatpush1.msra.mxu0 0.0
    %1566 = vmatprep.subr.mxu0 0.0
    %1567 = vmatpush1.msra.mxu0 0.0
    %1568 = vmatprep.subr.mxu0 0.0
    %1569 = vmatpush1.msra.mxu0 0.0
    %1570 = vmatprep.subr.mxu0 0.0
    %1571 = vmatpush1.msra.mxu0 0.0
    %1572 = vmatprep.subr.mxu0 0.0
    %1573 = vmatpush1.msra.mxu0 0.0
    %1574 = vmatprep.subr.mxu0 0.0
    %1575 = vmatpush1.msra.mxu0 0.0
    %1576 = vmatprep.subr.mxu0 0.0
    %1577 = vmatpush1.msra.mxu0 0.0
    %1578 = vmatprep.subr.mxu0 0.0
    %1579 = vmatpush1.msra.mxu0 0.0
    %1580 = vmatprep.subr.mxu0 0.0
    %1581 = vmatpush1.msra.mxu0 0.0
    %1582 = vmatprep.subr.mxu0 0.0
    %1583 = vmatpush1.msra.mxu0 0.0
    %1584 = vmatprep.subr.mxu0 0.0
    %1585 = vmatpush1.msra.mxu0 0.0
    %1586 = vmatprep.subr.mxu0 0.0
    %1587 = vmatpush1.msra.mxu0 0.0
    %1588 = vmatprep.subr.mxu0 0.0
    %1589 = vmatpush1.msra.mxu0 %v407
    %1590 = vmatprep.subr.mxu0 0.0
    %1591 = vmatpush1.msra.mxu0 %v406
    %1592 = vmatprep.subr.mxu0 0.0
    %1593 = vmatpush1.msra.mxu0 %v405
    %1594 = vmatprep.subr.mxu0 0.0
    %1595 = vmatpush1.msra.mxu0 %v404
    %1596 = vmatprep.subr.mxu0 0.0
    %1597 = vmatpush2.msra.mxu0 0.0
    %1598 = vmatprep.subr.mxu0 0.0
    %1599 = vmatpush2.msra.mxu0 0.0
    %1600 = vmatprep.subr.mxu0 0.0
    %1601 = vmatpush2.msra.mxu0 0.0
    %1602 = vmatprep.subr.mxu0 0.0
    %1603 = vmatpush2.msra.mxu0 0.0
    %1604 = vmatprep.subr.mxu0 0.0
    %1605 = vmatpush2.msra.mxu0 0.0
    %1606 = vmatprep.subr.mxu0 0.0
    %1607 = vmatpush2.msra.mxu0 0.0
    %1608 = vmatprep.subr.mxu0 0.0
    %1609 = vmatpush2.msra.mxu0 0.0
    %1610 = vmatprep.subr.mxu0 0.0
    %1611 = vmatpush2.msra.mxu0 0.0
    %1612 = vmatprep.subr.mxu0 0.0
    %1613 = vmatpush2.msra.mxu0 0.0
    %1614 = vmatprep.subr.mxu0 0.0
    %1615 = vmatpush2.msra.mxu0 0.0
    %1616 = vmatprep.subr.mxu0 0.0
    %1617 = vmatpush2.msra.mxu0 0.0
    %1618 = vmatprep.subr.mxu0 0.0
    %1619 = vmatpush2.msra.mxu0 0.0
    %1620 = vmatprep.subr.mxu0 0.0
    %1621 = vmatpush2.msra.mxu0 0.0
    %1622 = vmatprep.subr.mxu0 0.0
    %1623 = vmatpush2.msra.mxu0 0.0
    %1624 = vmatprep.subr.mxu0 0.0
    %1625 = vmatpush2.msra.mxu0 0.0
    %1626 = vmatprep.subr.mxu0 0.0
    %1627 = vmatpush2.msra.mxu0 0.0
    %1628 = vmatprep.mubr.f32.mxu0 0.0
    %1629 = vmatmul.mubr.f32.gmra.mxu0 %v1559
    %v1630 = vpop.f32.mrf.mxu0
    %v1631 = vadd.f32 0.0, %v1630
    %v1632 = vpop.f32.mrf.mxu0
    %1633 = vmatprep.mubr.f32.mxu0 0.0
    %1634 = vmatmul.mubr.f32.gmra.mxu0 %v1562
    %v1635 = vpop.f32.mrf.mxu0
    %v1636 = vadd.f32 0.0, %v1635
    %v1637 = vpop.f32.mrf.mxu0
    %1638 = vdwg.mxu0
    %v1639 = vadd.f32 %v1220, %v1631
    %v1640 = vadd.f32 %v1225, %v1636
    %1641 = vrot.lane.b32.xlu0 %v311, 32
    %v1642 = vpop.permute.xlu0 %1641
    %1643 = vrot.lane.b32.xlu0 %v313, 32
    %v1644 = vpop.permute.xlu0 %1643
    %v1645 = vsel %vm412, %v1642, 0
    %v1647 = vsel %vm412, %v1644, 0
    %1649 = vmatprep.subr.mxu0 0.0
    %1650 = vmatpush1.xpose.msra.mxu0 0.0
    %1651 = vmatprep.subr.mxu0 0.0
    %1652 = vmatpush1.xpose.msra.mxu0 0.0
    %1653 = vmatprep.subr.mxu0 0.0
    %1654 = vmatpush1.xpose.msra.mxu0 0.0
    %1655 = vmatprep.subr.mxu0 0.0
    %1656 = vmatpush1.xpose.msra.mxu0 0.0
    %1657 = vmatprep.subr.mxu0 0.0
    %1658 = vmatpush1.xpose.msra.mxu0 0.0
    %1659 = vmatprep.subr.mxu0 0.0
    %1660 = vmatpush1.xpose.msra.mxu0 0.0
    %1661 = vmatprep.subr.mxu0 0.0
    %1662 = vmatpush1.xpose.msra.mxu0 0.0
    %1663 = vmatprep.subr.mxu0 0.0
    %1664 = vmatpush1.xpose.msra.mxu0 0.0
    %1665 = vmatprep.subr.mxu0 0.0
    %1666 = vmatpush1.xpose.msra.mxu0 0.0
    %1667 = vmatprep.subr.mxu0 0.0
    %1668 = vmatpush1.xpose.msra.mxu0 0.0
    %1669 = vmatprep.subr.mxu0 0.0
    %1670 = vmatpush1.xpose.msra.mxu0 0.0
    %1671 = vmatprep.subr.mxu0 0.0
    %1672 = vmatpush1.xpose.msra.mxu0 0.0
    %1673 = vmatprep.subr.mxu0 0.0
    %1674 = vmatpush1.xpose.msra.mxu0 0.0
    %1675 = vmatprep.subr.mxu0 0.0
    %1676 = vmatpush1.xpose.msra.mxu0 0.0
    %1677 = vmatprep.subr.mxu0 0.0
    %1678 = vmatpush1.xpose.msra.mxu0 0.0
    %1679 = vmatprep.subr.mxu0 0.0
    %1680 = vmatpush1.xpose.msra.mxu0 %v1647
    %1681 = vmatprep.subr.mxu0 0.0
    %1682 = vmatpush2.xpose.msra.mxu0 0.0
    %1683 = vmatprep.subr.mxu0 0.0
    %1684 = vmatpush2.xpose.msra.mxu0 0.0
    %1685 = vmatprep.subr.mxu0 0.0
    %1686 = vmatpush2.xpose.msra.mxu0 0.0
    %1687 = vmatprep.subr.mxu0 0.0
    %1688 = vmatpush2.xpose.msra.mxu0 0.0
    %1689 = vmatprep.subr.mxu0 0.0
    %1690 = vmatpush2.xpose.msra.mxu0 0.0
    %1691 = vmatprep.subr.mxu0 0.0
    %1692 = vmatpush2.xpose.msra.mxu0 0.0
    %1693 = vmatprep.subr.mxu0 0.0
    %1694 = vmatpush2.xpose.msra.mxu0 0.0
    %1695 = vmatprep.subr.mxu0 0.0
    %1696 = vmatpush2.xpose.msra.mxu0 0.0
    %1697 = vmatprep.subr.mxu0 0.0
    %1698 = vmatpush2.xpose.msra.mxu0 0.0
    %1699 = vmatprep.subr.mxu0 0.0
    %1700 = vmatpush2.xpose.msra.mxu0 0.0
    %1701 = vmatprep.subr.mxu0 0.0
    %1702 = vmatpush2.xpose.msra.mxu0 0.0
    %1703 = vmatprep.subr.mxu0 0.0
    %1704 = vmatpush2.xpose.msra.mxu0 0.0
    %1705 = vmatprep.subr.mxu0 0.0
    %1706 = vmatpush2.xpose.msra.mxu0 0.0
    %1707 = vmatprep.subr.mxu0 0.0
    %1708 = vmatpush2.xpose.msra.mxu0 0.0
    %1709 = vmatprep.subr.mxu0 0.0
    %1710 = vmatpush2.xpose.msra.mxu0 0.0
    %1711 = vmatprep.subr.mxu0 0.0
    %1712 = vmatpush2.xpose.msra.mxu0 0.0
    %1713 = vmatprep.mubr.f32.mxu0 0.0
    %1714 = vmatmul.mubr.f32.gmra.mxu0 %v1645
    %v1715 = vpop.f32.mrf.mxu0
    %v1716 = vadd.f32 0.0, %v1715
    %v1717 = vpop.f32.mrf.mxu0
    %1718 = vdwg.mxu0
    %1719 = vrot.lane.b32.xlu0 %v317, 32
    %v1720 = vpop.permute.xlu0 %1719
    %1721 = vrot.lane.b32.xlu0 %v319, 32
    %v1722 = vpop.permute.xlu0 %1721
    %v1723 = vsel %vm412, %v1720, 0
    %v1725 = vsel %vm412, %v1722, 0
    %1727 = vmatprep.subr.mxu0 0.0
    %1728 = vmatpush1.xpose.msra.mxu0 0.0
    %1729 = vmatprep.subr.mxu0 0.0
    %1730 = vmatpush1.xpose.msra.mxu0 0.0
    %1731 = vmatprep.subr.mxu0 0.0
    %1732 = vmatpush1.xpose.msra.mxu0 0.0
    %1733 = vmatprep.subr.mxu0 0.0
    %1734 = vmatpush1.xpose.msra.mxu0 0.0
    %1735 = vmatprep.subr.mxu0 0.0
    %1736 = vmatpush1.xpose.msra.mxu0 0.0
    %1737 = vmatprep.subr.mxu0 0.0
    %1738 = vmatpush1.xpose.msra.mxu0 0.0
    %1739 = vmatprep.subr.mxu0 0.0
    %1740 = vmatpush1.xpose.msra.mxu0 0.0
    %1741 = vmatprep.subr.mxu0 0.0
    %1742 = vmatpush1.xpose.msra.mxu0 0.0
    %1743 = vmatprep.subr.mxu0 0.0
    %1744 = vmatpush1.xpose.msra.mxu0 0.0
    %1745 = vmatprep.subr.mxu0 0.0
    %1746 = vmatpush1.xpose.msra.mxu0 0.0
    %1747 = vmatprep.subr.mxu0 0.0
    %1748 = vmatpush1.xpose.msra.mxu0 0.0
    %1749 = vmatprep.subr.mxu0 0.0
    %1750 = vmatpush1.xpose.msra.mxu0 0.0
    %1751 = vmatprep.subr.mxu0 0.0
    %1752 = vmatpush1.xpose.msra.mxu0 0.0
    %1753 = vmatprep.subr.mxu0 0.0
    %1754 = vmatpush1.xpose.msra.mxu0 0.0
    %1755 = vmatprep.subr.mxu0 0.0
    %1756 = vmatpush1.xpose.msra.mxu0 0.0
    %1757 = vmatprep.subr.mxu0 0.0
    %1758 = vmatpush1.xpose.msra.mxu0 %v1725
    %1759 = vmatprep.subr.mxu0 0.0
    %1760 = vmatpush2.xpose.msra.mxu0 0.0
    %1761 = vmatprep.subr.mxu0 0.0
    %1762 = vmatpush2.xpose.msra.mxu0 0.0
    %1763 = vmatprep.subr.mxu0 0.0
    %1764 = vmatpush2.xpose.msra.mxu0 0.0
    %1765 = vmatprep.subr.mxu0 0.0
    %1766 = vmatpush2.xpose.msra.mxu0 0.0
    %1767 = vmatprep.subr.mxu0 0.0
    %1768 = vmatpush2.xpose.msra.mxu0 0.0
    %1769 = vmatprep.subr.mxu0 0.0
    %1770 = vmatpush2.xpose.msra.mxu0 0.0
    %1771 = vmatprep.subr.mxu0 0.0
    %1772 = vmatpush2.xpose.msra.mxu0 0.0
    %1773 = vmatprep.subr.mxu0 0.0
    %1774 = vmatpush2.xpose.msra.mxu0 0.0
    %1775 = vmatprep.subr.mxu0 0.0
    %1776 = vmatpush2.xpose.msra.mxu0 0.0
    %1777 = vmatprep.subr.mxu0 0.0
    %1778 = vmatpush2.xpose.msra.mxu0 0.0
    %1779 = vmatprep.subr.mxu0 0.0
    %1780 = vmatpush2.xpose.msra.mxu0 0.0
    %1781 = vmatprep.subr.mxu0 0.0
    %1782 = vmatpush2.xpose.msra.mxu0 0.0
    %1783 = vmatprep.subr.mxu0 0.0
    %1784 = vmatpush2.xpose.msra.mxu0 0.0
    %1785 = vmatprep.subr.mxu0 0.0
    %1786 = vmatpush2.xpose.msra.mxu0 0.0
    %1787 = vmatprep.subr.mxu0 0.0
    %1788 = vmatpush2.xpose.msra.mxu0 0.0
    %1789 = vmatprep.subr.mxu0 0.0
    %1790 = vmatpush2.xpose.msra.mxu0 0.0
    %1791 = vmatprep.mubr.f32.mxu0 0.0
    %1792 = vmatmul.mubr.f32.gmra.mxu0 %v1723
    %v1793 = vpop.f32.mrf.mxu0
    %v1794 = vadd.f32 0.0, %v1793
    %v1795 = vpop.f32.mrf.mxu0
    %1796 = vdwg.mxu0
    %v1797 = vsel %vm565, %v1716, -inf
    %1798 = vmax.xlane.f32.xlu0 %v1797
    %v1799 = vpop.xlane.xlu0 %1798
    %v1800 = vsel %vm565, %v1794, -inf
    %1801 = vmax.xlane.f32.xlu0 %v1800
    %v1802 = vpop.xlane.xlu0 %1801
    %v1803 = vsub.f32 %v1716, %v1799
    %v1804 = vsub.f32 %v1794, %v1802
    %v1805 = vmul.f32 %v1803, 1.442695
    %v1806 = vpow.pop %v1805
    %v1807 = vmul.f32 %v1804, 1.442695
    %v1808 = vpow.pop %v1807
    %v1809 = vsel %vm565, %v1806, 0.0
    %1810 = vadd.xlane.f32.xlu0 %v1809
    %v1811 = vpop.xlane.xlu0 %1810
    %v1812 = vsel %vm565, %v1808, 0.0
    %1813 = vadd.xlane.f32.xlu0 %v1812
    %v1814 = vpop.xlane.xlu0 %1813
    %v1815 = vrcp.pop %v1811
    %v1816 = vrcp.pop %v1814
    %v1817 = vmul.f32 %v1806, %v1815
    %v1818 = vmul.f32 %v1808, %v1816
    %1819 = vrot.lane.b32.xlu0 %v388, 32
    %v1820 = vpop.permute.xlu0 %1819
    %v1823 = vsel %vm565, %v1817, 0
    %1825 = vmatprep.subr.mxu0 0.0
    %1826 = vmatpush1.msra.mxu0 0.0
    %1827 = vmatprep.subr.mxu0 0.0
    %1828 = vmatpush1.msra.mxu0 0.0
    %1829 = vmatprep.subr.mxu0 0.0
    %1830 = vmatpush1.msra.mxu0 0.0
    %1831 = vmatprep.subr.mxu0 0.0
    %1832 = vmatpush1.msra.mxu0 0.0
    %1833 = vmatprep.subr.mxu0 0.0
    %1834 = vmatpush1.msra.mxu0 0.0
    %1835 = vmatprep.subr.mxu0 0.0
    %1836 = vmatpush1.msra.mxu0 0.0
    %1837 = vmatprep.subr.mxu0 0.0
    %1838 = vmatpush1.msra.mxu0 0.0
    %1839 = vmatprep.subr.mxu0 0.0
    %1840 = vmatpush1.msra.mxu0 0.0
    %1841 = vmatprep.subr.mxu0 0.0
    %1842 = vmatpush1.msra.mxu0 0.0
    %1843 = vmatprep.subr.mxu0 0.0
    %1844 = vmatpush1.msra.mxu0 0.0
    %1845 = vmatprep.subr.mxu0 0.0
    %1846 = vmatpush1.msra.mxu0 0.0
    %1847 = vmatprep.subr.mxu0 0.0
    %1848 = vmatpush1.msra.mxu0 0.0
    %1849 = vmatprep.subr.mxu0 0.0
    %1850 = vmatpush1.msra.mxu0 0.0
    %1851 = vmatprep.subr.mxu0 0.0
    %1852 = vmatpush1.msra.mxu0 0.0
    %1853 = vmatprep.subr.mxu0 0.0
    %1854 = vmatpush1.msra.mxu0 0.0
    %1855 = vmatprep.subr.mxu0 0.0
    %1856 = vmatpush1.msra.mxu0 %v1820
    %1857 = vmatprep.subr.mxu0 0.0
    %1858 = vmatpush2.msra.mxu0 0.0
    %1859 = vmatprep.subr.mxu0 0.0
    %1860 = vmatpush2.msra.mxu0 0.0
    %1861 = vmatprep.subr.mxu0 0.0
    %1862 = vmatpush2.msra.mxu0 0.0
    %1863 = vmatprep.subr.mxu0 0.0
    %1864 = vmatpush2.msra.mxu0 0.0
    %1865 = vmatprep.subr.mxu0 0.0
    %1866 = vmatpush2.msra.mxu0 0.0
    %1867 = vmatprep.subr.mxu0 0.0
    %1868 = vmatpush2.msra.mxu0 0.0
    %1869 = vmatprep.subr.mxu0 0.0
    %1870 = vmatpush2.msra.mxu0 0.0
    %1871 = vmatprep.subr.mxu0 0.0
    %1872 = vmatpush2.msra.mxu0 0.0
    %1873 = vmatprep.subr.mxu0 0.0
    %1874 = vmatpush2.msra.mxu0 0.0
    %1875 = vmatprep.subr.mxu0 0.0
    %1876 = vmatpush2.msra.mxu0 0.0
    %1877 = vmatprep.subr.mxu0 0.0
    %1878 = vmatpush2.msra.mxu0 0.0
    %1879 = vmatprep.subr.mxu0 0.0
    %1880 = vmatpush2.msra.mxu0 0.0
    %1881 = vmatprep.subr.mxu0 0.0
    %1882 = vmatpush2.msra.mxu0 0.0
    %1883 = vmatprep.subr.mxu0 0.0
    %1884 = vmatpush2.msra.mxu0 0.0
    %1885 = vmatprep.subr.mxu0 0.0
    %1886 = vmatpush2.msra.mxu0 0.0
    %1887 = vmatprep.subr.mxu0 0.0
    %1888 = vmatpush2.msra.mxu0 0.0
    %1889 = vmatprep.mubr.f32.mxu0 0.0
    %1890 = vmatmul.mubr.f32.gmra.mxu0 %v1823
    %v1891 = vpop.f32.mrf.mxu0
    %v1892 = vadd.f32 0.0, %v1891
    %v1893 = vpop.f32.mrf.mxu0
    %1894 = vdwg.mxu0
    %1895 = vrot.lane.b32.xlu0 %v393, 32
    %v1896 = vpop.permute.xlu0 %1895
    %v1899 = vsel %vm565, %v1818, 0
    %1901 = vmatprep.subr.mxu0 0.0
    %1902 = vmatpush1.msra.mxu0 0.0
    %1903 = vmatprep.subr.mxu0 0.0
    %1904 = vmatpush1.msra.mxu0 0.0
    %1905 = vmatprep.subr.mxu0 0.0
    %1906 = vmatpush1.msra.mxu0 0.0
    %1907 = vmatprep.subr.mxu0 0.0
    %1908 = vmatpush1.msra.mxu0 0.0
    %1909 = vmatprep.subr.mxu0 0.0
    %1910 = vmatpush1.msra.mxu0 0.0
    %1911 = vmatprep.subr.mxu0 0.0
    %1912 = vmatpush1.msra.mxu0 0.0
    %1913 = vmatprep.subr.mxu0 0.0
    %1914 = vmatpush1.msra.mxu0 0.0
    %1915 = vmatprep.subr.mxu0 0.0
    %1916 = vmatpush1.msra.mxu0 0.0
    %1917 = vmatprep.subr.mxu0 0.0
    %1918 = vmatpush1.msra.mxu0 0.0
    %1919 = vmatprep.subr.mxu0 0.0
    %1920 = vmatpush1.msra.mxu0 0.0
    %1921 = vmatprep.subr.mxu0 0.0
    %1922 = vmatpush1.msra.mxu0 0.0
    %1923 = vmatprep.subr.mxu0 0.0
    %1924 = vmatpush1.msra.mxu0 0.0
    %1925 = vmatprep.subr.mxu0 0.0
    %1926 = vmatpush1.msra.mxu0 0.0
    %1927 = vmatprep.subr.mxu0 0.0
    %1928 = vmatpush1.msra.mxu0 0.0
    %1929 = vmatprep.subr.mxu0 0.0
    %1930 = vmatpush1.msra.mxu0 0.0
    %1931 = vmatprep.subr.mxu0 0.0
    %1932 = vmatpush1.msra.mxu0 %v1896
    %1933 = vmatprep.subr.mxu0 0.0
    %1934 = vmatpush2.msra.mxu0 0.0
    %1935 = vmatprep.subr.mxu0 0.0
    %1936 = vmatpush2.msra.mxu0 0.0
    %1937 = vmatprep.subr.mxu0 0.0
    %1938 = vmatpush2.msra.mxu0 0.0
    %1939 = vmatprep.subr.mxu0 0.0
    %1940 = vmatpush2.msra.mxu0 0.0
    %1941 = vmatprep.subr.mxu0 0.0
    %1942 = vmatpush2.msra.mxu0 0.0
    %1943 = vmatprep.subr.mxu0 0.0
    %1944 = vmatpush2.msra.mxu0 0.0
    %1945 = vmatprep.subr.mxu0 0.0
    %1946 = vmatpush2.msra.mxu0 0.0
    %1947 = vmatprep.subr.mxu0 0.0
    %1948 = vmatpush2.msra.mxu0 0.0
    %1949 = vmatprep.subr.mxu0 0.0
    %1950 = vmatpush2.msra.mxu0 0.0
    %1951 = vmatprep.subr.mxu0 0.0
    %1952 = vmatpush2.msra.mxu0 0.0
    %1953 = vmatprep.subr.mxu0 0.0
    %1954 = vmatpush2.msra.mxu0 0.0
    %1955 = vmatprep.subr.mxu0 0.0
    %1956 = vmatpush2.msra.mxu0 0.0
    %1957 = vmatprep.subr.mxu0 0.0
    %1958 = vmatpush2.msra.mxu0 0.0
    %1959 = vmatprep.subr.mxu0 0.0
    %1960 = vmatpush2.msra.mxu0 0.0
    %1961 = vmatprep.subr.mxu0 0.0
    %1962 = vmatpush2.msra.mxu0 0.0
    %1963 = vmatprep.subr.mxu0 0.0
    %1964 = vmatpush2.msra.mxu0 0.0
    %1965 = vmatprep.mubr.f32.mxu0 0.0
    %1966 = vmatmul.mubr.f32.gmra.mxu0 %v1899
    %v1967 = vpop.f32.mrf.mxu0
    %v1968 = vadd.f32 0.0, %v1967
    %v1969 = vpop.f32.mrf.mxu0
    %1970 = vdwg.mxu0
    %v1972 = vsel %vm412, %v1892, 0
    %v1975 = vsel %vm412, %v1968, 0
    %1977 = vmatprep.subr.mxu0 0.0
    %1978 = vmatpush1.msra.mxu0 0.0
    %1979 = vmatprep.subr.mxu0 0.0
    %1980 = vmatpush1.msra.mxu0 0.0
    %1981 = vmatprep.subr.mxu0 0.0
    %1982 = vmatpush1.msra.mxu0 0.0
    %1983 = vmatprep.subr.mxu0 0.0
    %1984 = vmatpush1.msra.mxu0 0.0
    %1985 = vmatprep.subr.mxu0 0.0
    %1986 = vmatpush1.msra.mxu0 0.0
    %1987 = vmatprep.subr.mxu0 0.0
    %1988 = vmatpush1.msra.mxu0 0.0
    %1989 = vmatprep.subr.mxu0 0.0
    %1990 = vmatpush1.msra.mxu0 0.0
    %1991 = vmatprep.subr.mxu0 0.0
    %1992 = vmatpush1.msra.mxu0 0.0
    %1993 = vmatprep.subr.mxu0 0.0
    %1994 = vmatpush1.msra.mxu0 0.0
    %1995 = vmatprep.subr.mxu0 0.0
    %1996 = vmatpush1.msra.mxu0 0.0
    %1997 = vmatprep.subr.mxu0 0.0
    %1998 = vmatpush1.msra.mxu0 0.0
    %1999 = vmatprep.subr.mxu0 0.0
    %2000 = vmatpush1.msra.mxu0 0.0
    %2001 = vmatprep.subr.mxu0 0.0
    %2002 = vmatpush1.msra.mxu0 %v411
    %2003 = vmatprep.subr.mxu0 0.0
    %2004 = vmatpush1.msra.mxu0 %v410
    %2005 = vmatprep.subr.mxu0 0.0
    %2006 = vmatpush1.msra.mxu0 %v409
    %2007 = vmatprep.subr.mxu0 0.0
    %2008 = vmatpush1.msra.mxu0 %v408
    %2009 = vmatprep.subr.mxu0 0.0
    %2010 = vmatpush2.msra.mxu0 0.0
    %2011 = vmatprep.subr.mxu0 0.0
    %2012 = vmatpush2.msra.mxu0 0.0
    %2013 = vmatprep.subr.mxu0 0.0
    %2014 = vmatpush2.msra.mxu0 0.0
    %2015 = vmatprep.subr.mxu0 0.0
    %2016 = vmatpush2.msra.mxu0 0.0
    %2017 = vmatprep.subr.mxu0 0.0
    %2018 = vmatpush2.msra.mxu0 0.0
    %2019 = vmatprep.subr.mxu0 0.0
    %2020 = vmatpush2.msra.mxu0 0.0
    %2021 = vmatprep.subr.mxu0 0.0
    %2022 = vmatpush2.msra.mxu0 0.0
    %2023 = vmatprep.subr.mxu0 0.0
    %2024 = vmatpush2.msra.mxu0 0.0
    %2025 = vmatprep.subr.mxu0 0.0
    %2026 = vmatpush2.msra.mxu0 0.0
    %2027 = vmatprep.subr.mxu0 0.0
    %2028 = vmatpush2.msra.mxu0 0.0
    %2029 = vmatprep.subr.mxu0 0.0
    %2030 = vmatpush2.msra.mxu0 0.0
    %2031 = vmatprep.subr.mxu0 0.0
    %2032 = vmatpush2.msra.mxu0 0.0
    %2033 = vmatprep.subr.mxu0 0.0
    %2034 = vmatpush2.msra.mxu0 0.0
    %2035 = vmatprep.subr.mxu0 0.0
    %2036 = vmatpush2.msra.mxu0 0.0
    %2037 = vmatprep.subr.mxu0 0.0
    %2038 = vmatpush2.msra.mxu0 0.0
    %2039 = vmatprep.subr.mxu0 0.0
    %2040 = vmatpush2.msra.mxu0 0.0
    %2041 = vmatprep.mubr.f32.mxu0 0.0
    %2042 = vmatmul.mubr.f32.gmra.mxu0 %v1972
    %v2043 = vpop.f32.mrf.mxu0
    %v2044 = vadd.f32 0.0, %v2043
    %v2045 = vpop.f32.mrf.mxu0
    %2046 = vmatprep.mubr.f32.mxu0 0.0
    %2047 = vmatmul.mubr.f32.gmra.mxu0 %v1975
    %v2048 = vpop.f32.mrf.mxu0
    %v2049 = vadd.f32 0.0, %v2048
    %v2050 = vpop.f32.mrf.mxu0
    %2051 = vdwg.mxu0
    %v2052 = vadd.f32 %v1639, %v2044
    %v2053 = vadd.f32 %v1640, %v2049
    %v2054 = vadd.f32 %v188, %v2052
    %v2055 = vadd.f32 %v193, %v2053
    %v2056 = vld [vmem:[%s5] sm:$0x1]
    %v2057 = vld [vmem:[%s6] sm:$0x1]
    %v2058 = vadd.f32 %v2054, %v2055
    %v2059 = vrot.slane %v2058, 4
    %v2060 = vadd.f32 %v2058, %v2059
    %v2061 = vrot.slane %v2060, 2
    %v2062 = vadd.f32 %v2060, %v2061
    %v2063 = vrot.slane %v2062, 1
    %v2064 = vadd.f32 %v2062, %v2063
    %v2065 = vrcp.pop 16.0
    %v2066 = vmul.f32 %v2064, %v2065
    %v2067 = vsub.f32 %v2054, %v2066
    %v2068 = vsub.f32 %v2055, %v2066
    %v2069 = vmul.f32 %v2067, %v2067
    %v2070 = vmul.f32 %v2068, %v2068
    %v2071 = vadd.f32 %v2069, %v2070
    %v2072 = vrot.slane %v2071, 4
    %v2073 = vadd.f32 %v2071, %v2072
    %v2074 = vrot.slane %v2073, 2
    %v2075 = vadd.f32 %v2073, %v2074
    %v2076 = vrot.slane %v2075, 1
    %v2077 = vadd.f32 %v2075, %v2076
    %v2078 = vmul.f32 %v2077, %v2065
    %v2079 = vadd.f32 %v2078, 1e-05
    %v2080 = vrsqrt.pop %v2079
    %v2081 = vmul.f32 %v2067, %v2080
    %v2082 = vmul.f32 %v2068, %v2080
    %v2084 = vlaneseq
    %v2085 = vshrl.u32 %v2084, 7
    %v2086 = vsub.s32 0, %v2085
    %v2087 = vrot.slane %v2056, %v2086
    %v2089 = vmul.f32 %v2081, %v2087
    %v2090 = vmul.f32 %v2082, %v2087
    %v2092 = vlaneseq
    %v2093 = vshrl.u32 %v2092, 7
    %v2094 = vsub.s32 0, %v2093
    %v2095 = vrot.slane %v2057, %v2094
    %v2097 = vadd.f32 %v2089, %v2095
    %v2098 = vadd.f32 %v2090, %v2095
    %v2099 = vld [vmem:[#allocation7] sm:$0xff]
    %v2100 = vld [vmem:[#allocation7 + $0x8] sm:$0xff]
    %v2101 = vld [vmem:[#allocation7 + $0x10] sm:$0xff]
    %v2102 = vld [vmem:[#allocation7 + $0x18] sm:$0xff]
    %v2103 = vld [vmem:[#allocation7 + $0x20] sm:$0xff]
    %v2104 = vld [vmem:[#allocation7 + $0x28] sm:$0xff]
    %v2105 = vld [vmem:[#allocation7 + $0x30] sm:$0xff]
    %v2106 = vld [vmem:[#allocation7 + $0x38] sm:$0xff]
    %v2107 = vld [vmem:[#allocation7 + $0x40] sm:$0xff]
    %v2108 = vld [vmem:[#allocation7 + $0x48] sm:$0xff]
    %v2109 = vld [vmem:[#allocation7 + $0x50] sm:$0xff]
    %v2110 = vld [vmem:[#allocation7 + $0x58] sm:$0xff]
    %v2111 = vld [vmem:[#allocation7 + $0x60] sm:$0xff]
    %v2112 = vld [vmem:[#allocation7 + $0x68] sm:$0xff]
    %v2113 = vld [vmem:[#allocation7 + $0x70] sm:$0xff]
    %v2114 = vld [vmem:[#allocation7 + $0x78] sm:$0xff]
    %v2115 = vld [vmem:[#allocation7 + $0x80] sm:$0xff]
    %v2116 = vld [vmem:[#allocation7 + $0x88] sm:$0xff]
    %v2117 = vld [vmem:[#allocation7 + $0x90] sm:$0xff]
    %v2118 = vld [vmem:[#allocation7 + $0x98] sm:$0xff]
    %v2119 = vld [vmem:[#allocation7 + $0xa0] sm:$0xff]
    %v2120 = vld [vmem:[#allocation7 + $0xa8] sm:$0xff]
    %v2121 = vld [vmem:[#allocation7 + $0xb0] sm:$0xff]
    %v2122 = vld [vmem:[#allocation7 + $0xb8] sm:$0xff]
    %v2123 = vld [vmem:[#allocation7 + $0xc0] sm:$0xff]
    %v2124 = vld [vmem:[#allocation7 + $0xc8] sm:$0xff]
    %v2125 = vld [vmem:[#allocation7 + $0xd0] sm:$0xff]
    %v2126 = vld [vmem:[#allocation7 + $0xd8] sm:$0xff]
    %v2127 = vld [vmem:[#allocation7 + $0xe0] sm:$0xff]
    %v2128 = vld [vmem:[#allocation7 + $0xe8] sm:$0xff]
    %v2129 = vld [vmem:[#allocation7 + $0xf0] sm:$0xff]
    %v2130 = vld [vmem:[#allocation7 + $0xf8] sm:$0xff]
    %v2131 = vld [vmem:[%s8] sm:$0x3]
    %v2133 = vlaneseq
    %v2134 = vshrl.u32 %v2133, 7
    %v2135 = vsub.s32 0, %v2134
    %v2136 = vrot.slane %v2131, %v2135
    %v2137 = vlaneseq
    %v2138 = vshrl.u32 %v2137, 7
    %v2139 = vsub.s32 1, %v2138
    %v2140 = vrot.slane %v2131, %v2139
    %2143 = vmatprep.subr.mxu0 %v2130
    %2144 = vmatpush1.msra.mxu0 %v2129
    %2145 = vmatprep.subr.mxu0 %v2128
    %2146 = vmatpush1.msra.mxu0 %v2127
    %2147 = vmatprep.subr.mxu0 %v2126
    %2148 = vmatpush1.msra.mxu0 %v2125
    %2149 = vmatprep.subr.mxu0 %v2124
    %2150 = vmatpush1.msra.mxu0 %v2123
    %2151 = vmatprep.subr.mxu0 %v2122
    %2152 = vmatpush1.msra.mxu0 %v2121
    %2153 = vmatprep.subr.mxu0 %v2120
    %2154 = vmatpush1.msra.mxu0 %v2119
    %2155 = vmatprep.subr.mxu0 %v2118
    %2156 = vmatpush1.msra.mxu0 %v2117
    %2157 = vmatprep.subr.mxu0 %v2116
    %2158 = vmatpush1.msra.mxu0 %v2115
    %2159 = vmatprep.subr.mxu0 %v2114
    %2160 = vmatpush1.msra.mxu0 %v2113
    %2161 = vmatprep.subr.mxu0 %v2112
    %2162 = vmatpush1.msra.mxu0 %v2111
    %2163 = vmatprep.subr.mxu0 %v2110
    %2164 = vmatpush1.msra.mxu0 %v2109
    %2165 = vmatprep.subr.mxu0 %v2108
    %2166 = vmatpush1.msra.mxu0 %v2107
    %2167 = vmatprep.subr.mxu0 %v2106
    %2168 = vmatpush1.msra.mxu0 %v2105
    %2169 = vmatprep.subr.mxu0 %v2104
    %2170 = vmatpush1.msra.mxu0 %v2103
    %2171 = vmatprep.subr.mxu0 %v2102
    %2172 = vmatpush1.msra.mxu0 %v2101
    %2173 = vmatprep.subr.mxu0 %v2100
    %2174 = vmatpush1.msra.mxu0 %v2099
    %2175 = vmatprep.subr.mxu0 0.0
    %2176 = vmatpush2.msra.mxu0 0.0
    %2177 = vmatprep.subr.mxu0 0.0
    %2178 = vmatpush2.msra.mxu0 0.0
    %2179 = vmatprep.subr.mxu0 0.0
    %2180 = vmatpush2.msra.mxu0 0.0
    %2181 = vmatprep.subr.mxu0 0.0
    %2182 = vmatpush2.msra.mxu0 0.0
    %2183 = vmatprep.subr.mxu0 0.0
    %2184 = vmatpush2.msra.mxu0 0.0
    %2185 = vmatprep.subr.mxu0 0.0
    %2186 = vmatpush2.msra.mxu0 0.0
    %2187 = vmatprep.subr.mxu0 0.0
    %2188 = vmatpush2.msra.mxu0 0.0
    %2189 = vmatprep.subr.mxu0 0.0
    %2190 = vmatpush2.msra.mxu0 0.0
    %2191 = vmatprep.subr.mxu0 0.0
    %2192 = vmatpush2.msra.mxu0 0.0
    %2193 = vmatprep.subr.mxu0 0.0
    %2194 = vmatpush2.msra.mxu0 0.0
    %2195 = vmatprep.subr.mxu0 0.0
    %2196 = vmatpush2.msra.mxu0 0.0
    %2197 = vmatprep.subr.mxu0 0.0
    %2198 = vmatpush2.msra.mxu0 0.0
    %2199 = vmatprep.subr.mxu0 0.0
    %2200 = vmatpush2.msra.mxu0 0.0
    %2201 = vmatprep.subr.mxu0 0.0
    %2202 = vmatpush2.msra.mxu0 0.0
    %2203 = vmatprep.subr.mxu0 0.0
    %2204 = vmatpush2.msra.mxu0 0.0
    %2205 = vmatprep.subr.mxu0 0.0
    %2206 = vmatpush2.msra.mxu0 0.0
    %2207 = vmatprep.mubr.f32.mxu0 0.0
    %2208 = vmatmul.mubr.f32.gmra.mxu0 %v2097
    %v2209 = vpop.f32.mrf.mxu0
    %v2210 = vadd.f32 %v2136, %v2209
    %v2211 = vpop.f32.mrf.mxu0
    %v2212 = vadd.f32 %v2140, %v2211
    %2213 = vmatprep.mubr.f32.mxu0 0.0
    %2214 = vmatmul.mubr.f32.gmra.mxu0 %v2098
    %v2215 = vpop.f32.mrf.mxu0
    %v2216 = vadd.f32 %v2136, %v2215
    %v2217 = vpop.f32.mrf.mxu0
    %v2218 = vadd.f32 %v2140, %v2217
    %2219 = vdwg.mxu0
    %v2220 = vmax.f32 %v2210, 0.0
    %v2221 = vmax.f32 %v2212, 0.0
    %v2222 = vmax.f32 %v2216, 0.0
    %v2223 = vmax.f32 %v2218, 0.0
    %v2224 = vld [vmem:[#allocation8] sm:$0xff]
    %v2225 = vld [vmem:[#allocation8 + $0x8] sm:$0xff]
    %v2226 = vld [vmem:[#allocation8 + $0x10] sm:$0xff]
    %v2227 = vld [vmem:[#allocation8 + $0x18] sm:$0xff]
    %v2228 = vld [vmem:[#allocation8 + $0x20] sm:$0xff]
    %v2229 = vld [vmem:[#allocation8 + $0x28] sm:$0xff]
    %v2230 = vld [vmem:[#allocation8 + $0x30] sm:$0xff]
    %v2231 = vld [vmem:[#allocation8 + $0x38] sm:$0xff]
    %v2232 = vld [vmem:[#allocation8 + $0x40] sm:$0xff]
    %v2233 = vld [vmem:[#allocation8 + $0x48] sm:$0xff]
    %v2234 = vld [vmem:[#allocation8 + $0x50] sm:$0xff]
    %v2235 = vld [vmem:[#allocation8 + $0x58] sm:$0xff]
    %v2236 = vld [vmem:[#allocation8 + $0x60] sm:$0xff]
    %v2237 = vld [vmem:[#allocation8 + $0x68] sm:$0xff]
    %v2238 = vld [vmem:[#allocation8 + $0x70] sm:$0xff]
    %v2239 = vld [vmem:[#allocation8 + $0x78] sm:$0xff]
    %v2240 = vld [vmem:[#allocation8 + $0x80] sm:$0xff]
    %v2241 = vld [vmem:[#allocation8 + $0x88] sm:$0xff]
    %v2242 = vld [vmem:[#allocation8 + $0x90] sm:$0xff]
    %v2243 = vld [vmem:[#allocation8 + $0x98] sm:$0xff]
    %v2244 = vld [vmem:[#allocation8 + $0xa0] sm:$0xff]
    %v2245 = vld [vmem:[#allocation8 + $0xa8] sm:$0xff]
    %v2246 = vld [vmem:[#allocation8 + $0xb0] sm:$0xff]
    %v2247 = vld [vmem:[#allocation8 + $0xb8] sm:$0xff]
    %v2248 = vld [vmem:[#allocation8 + $0xc0] sm:$0xff]
    %v2249 = vld [vmem:[#allocation8 + $0xc8] sm:$0xff]
    %v2250 = vld [vmem:[#allocation8 + $0xd0] sm:$0xff]
    %v2251 = vld [vmem:[#allocation8 + $0xd8] sm:$0xff]
    %v2252 = vld [vmem:[#allocation8 + $0xe0] sm:$0xff]
    %v2253 = vld [vmem:[#allocation8 + $0xe8] sm:$0xff]
    %v2254 = vld [vmem:[#allocation8 + $0xf0] sm:$0xff]
    %v2255 = vld [vmem:[#allocation8 + $0xf8] sm:$0xff]
    %v2256 = vld [vmem:[%s10] sm:$0x1]
    %v2258 = vlaneseq
    %v2259 = vshrl.u32 %v2258, 7
    %v2260 = vsub.s32 0, %v2259
    %v2261 = vrot.slane %v2256, %v2260
    %2263 = vmatprep.subr.mxu0 0.0
    %2264 = vmatpush1.msra.mxu0 %v2239
    %2265 = vmatprep.subr.mxu0 0.0
    %2266 = vmatpush1.msra.mxu0 %v2238
    %2267 = vmatprep.subr.mxu0 0.0
    %2268 = vmatpush1.msra.mxu0 %v2237
    %2269 = vmatprep.subr.mxu0 0.0
    %2270 = vmatpush1.msra.mxu0 %v2236
    %2271 = vmatprep.subr.mxu0 0.0
    %2272 = vmatpush1.msra.mxu0 %v2235
    %2273 = vmatprep.subr.mxu0 0.0
    %2274 = vmatpush1.msra.mxu0 %v2234
    %2275 = vmatprep.subr.mxu0 0.0
    %2276 = vmatpush1.msra.mxu0 %v2233
    %2277 = vmatprep.subr.mxu0 0.0
    %2278 = vmatpush1.msra.mxu0 %v2232
    %2279 = vmatprep.subr.mxu0 0.0
    %2280 = vmatpush1.msra.mxu0 %v2231
    %2281 = vmatprep.subr.mxu0 0.0
    %2282 = vmatpush1.msra.mxu0 %v2230
    %2283 = vmatprep.subr.mxu0 0.0
    %2284 = vmatpush1.msra.mxu0 %v2229
    %2285 = vmatprep.subr.mxu0 0.0
    %2286 = vmatpush1.msra.mxu0 %v2228
    %2287 = vmatprep.subr.mxu0 0.0
    %2288 = vmatpush1.msra.mxu0 %v2227
    %2289 = vmatprep.subr.mxu0 0.0
    %2290 = vmatpush1.msra.mxu0 %v2226
    %2291 = vmatprep.subr.mxu0 0.0
    %2292 = vmatpush1.msra.mxu0 %v2225
    %2293 = vmatprep.subr.mxu0 0.0
    %2294 = vmatpush1.msra.mxu0 %v2224
    %2295 = vmatprep.subr.mxu0 0.0
    %2296 = vmatpush2.msra.mxu0 %v2255
    %2297 = vmatprep.subr.mxu0 0.0
    %2298 = vmatpush2.msra.mxu0 %v2254
    %2299 = vmatprep.subr.mxu0 0.0
    %2300 = vmatpush2.msra.mxu0 %v2253
    %2301 = vmatprep.subr.mxu0 0.0
    %2302 = vmatpush2.msra.mxu0 %v2252
    %2303 = vmatprep.subr.mxu0 0.0
    %2304 = vmatpush2.msra.mxu0 %v2251
    %2305 = vmatprep.subr.mxu0 0.0
    %2306 = vmatpush2.msra.mxu0 %v2250
    %2307 = vmatprep.subr.mxu0 0.0
    %2308 = vmatpush2.msra.mxu0 %v2249
    %2309 = vmatprep.subr.mxu0 0.0
    %2310 = vmatpush2.msra.mxu0 %v2248
    %2311 = vmatprep.subr.mxu0 0.0
    %2312 = vmatpush2.msra.mxu0 %v2247
    %2313 = vmatprep.subr.mxu0 0.0
    %2314 = vmatpush2.msra.mxu0 %v2246
    %2315 = vmatprep.subr.mxu0 0.0
    %2316 = vmatpush2.msra.mxu0 %v2245
    %2317 = vmatprep.subr.mxu0 0.0
    %2318 = vmatpush2.msra.mxu0 %v2244
    %2319 = vmatprep.subr.mxu0 0.0
    %2320 = vmatpush2.msra.mxu0 %v2243
    %2321 = vmatprep.subr.mxu0 0.0
    %2322 = vmatpush2.msra.mxu0 %v2242
    %2323 = vmatprep.subr.mxu0 0.0
    %2324 = vmatpush2.msra.mxu0 %v2241
    %2325 = vmatprep.subr.mxu0 0.0
    %2326 = vmatpush2.msra.mxu0 %v2240
    %2327 = vmatprep.mubr.f32.mxu0 %v2221
    %2328 = vmatmul.mubr.f32.gmra.mxu0 %v2220
    %v2329 = vpop.f32.mrf.mxu0
    %v2330 = vadd.f32 %v2261, %v2329
    %v2331 = vpop.f32.mrf.mxu0
    %2332 = vmatprep.mubr.f32.mxu0 %v2223
    %2333 = vmatmul.mubr.f32.gmra.mxu0 %v2222
    %v2334 = vpop.f32.mrf.mxu0
    %v2335 = vadd.f32 %v2261, %v2334
    %v2336 = vpop.f32.mrf.mxu0
    %2337 = vdwg.mxu0
    %v2338 = vadd.f32 %v2097, %v2330
    %v2339 = vadd.f32 %v2098, %v2335
    %v2340 = vld [vmem:[%s11] sm:$0x1]
    %v2341 = vld [vmem:[%s12] sm:$0x1]
    %v2342 = vadd.f32 %v2338, %v2339
    %v2343 = vrot.slane %v2342, 4
    %v2344 = vadd.f32 %v2342, %v2343
    %v2345 = vrot.slane %v2344, 2
    %v2346 = vadd.f32 %v2344, %v2345
    %v2347 = vrot.slane %v2346, 1
    %v2348 = vadd.f32 %v2346, %v2347
    %v2349 = vmul.f32 %v2348, %v2065
    %v2350 = vsub.f32 %v2338, %v2349
    %v2351 = vsub.f32 %v2339, %v2349
    %v2352 = vmul.f32 %v2350, %v2350
    %v2353 = vmul.f32 %v2351, %v2351
    %v2354 = vadd.f32 %v2352, %v2353
    %v2355 = vrot.slane %v2354, 4
    %v2356 = vadd.f32 %v2354, %v2355
    %v2357 = vrot.slane %v2356, 2
    %v2358 = vadd.f32 %v2356, %v2357
    %v2359 = vrot.slane %v2358, 1
    %v2360 = vadd.f32 %v2358, %v2359
    %v2361 = vmul.f32 %v2360, %v2065
    %v2362 = vadd.f32 %v2361, 1e-05
    %v2363 = vrsqrt.pop %v2362
    %v2364 = vmul.f32 %v2350, %v2363
    %v2365 = vmul.f32 %v2351, %v2363
    %v2367 = vlaneseq
    %v2368 = vshrl.u32 %v2367, 7
    %v2369 = vsub.s32 0, %v2368
    %v2370 = vrot.slane %v2340, %v2369
    %v2372 = vmul.f32 %v2364, %v2370
    %v2373 = vmul.f32 %v2365, %v2370
    %v2375 = vlaneseq
    %v2376 = vshrl.u32 %v2375, 7
    %v2377 = vsub.s32 0, %v2376
    %v2378 = vrot.slane %v2341, %v2377
    %v2380 = vadd.f32 %v2372, %v2378
    %v2381 = vadd.f32 %v2373, %v2378
    %s2382 = scalar_lea.vmem [#allocation2], 384
    %v2383 = vld [vmem:[%s2382] sm:$0xff]
    %v2384 = vld [vmem:[%s2382 + $0x8] sm:$0xff]
    %v2385 = vld [vmem:[%s2382 + $0x10] sm:$0xff]
    %v2386 = vld [vmem:[%s2382 + $0x18] sm:$0xff]
    %v2387 = vld [vmem:[%s2382 + $0x20] sm:$0xff]
    %v2388 = vld [vmem:[%s2382 + $0x28] sm:$0xff]
    %v2389 = vld [vmem:[%s2382 + $0x30] sm:$0xff]
    %v2390 = vld [vmem:[%s2382 + $0x38] sm:$0xff]
    %v2391 = vld [vmem:[%s2382 + $0x40] sm:$0xff]
    %v2392 = vld [vmem:[%s2382 + $0x48] sm:$0xff]
    %v2393 = vld [vmem:[%s2382 + $0x50] sm:$0xff]
    %v2394 = vld [vmem:[%s2382 + $0x58] sm:$0xff]
    %v2395 = vld [vmem:[%s2382 + $0x60] sm:$0xff]
    %v2396 = vld [vmem:[%s2382 + $0x68] sm:$0xff]
    %v2397 = vld [vmem:[%s2382 + $0x70] sm:$0xff]
    %v2398 = vld [vmem:[%s2382 + $0x78] sm:$0xff]
    %v2399 = vld [vmem:[%s2382 + $0x80] sm:$0xff]
    %v2400 = vld [vmem:[%s2382 + $0x88] sm:$0xff]
    %v2401 = vld [vmem:[%s2382 + $0x90] sm:$0xff]
    %v2402 = vld [vmem:[%s2382 + $0x98] sm:$0xff]
    %v2403 = vld [vmem:[%s2382 + $0xa0] sm:$0xff]
    %v2404 = vld [vmem:[%s2382 + $0xa8] sm:$0xff]
    %v2405 = vld [vmem:[%s2382 + $0xb0] sm:$0xff]
    %v2406 = vld [vmem:[%s2382 + $0xb8] sm:$0xff]
    %v2407 = vld [vmem:[%s2382 + $0xc0] sm:$0xff]
    %v2408 = vld [vmem:[%s2382 + $0xc8] sm:$0xff]
    %v2409 = vld [vmem:[%s2382 + $0xd0] sm:$0xff]
    %v2410 = vld [vmem:[%s2382 + $0xd8] sm:$0xff]
    %v2411 = vld [vmem:[%s2382 + $0xe0] sm:$0xff]
    %v2412 = vld [vmem:[%s2382 + $0xe8] sm:$0xff]
    %v2413 = vld [vmem:[%s2382 + $0xf0] sm:$0xff]
    %v2414 = vld [vmem:[%s2382 + $0xf8] sm:$0xff]
    %v2415 = vld [vmem:[%s2382 + $0x100] sm:$0xff]
    %v2416 = vld [vmem:[%s2382 + $0x108] sm:$0xff]
    %v2417 = vld [vmem:[%s2382 + $0x110] sm:$0xff]
    %v2418 = vld [vmem:[%s2382 + $0x118] sm:$0xff]
    %v2419 = vld [vmem:[%s2382 + $0x120] sm:$0xff]
    %v2420 = vld [vmem:[%s2382 + $0x128] sm:$0xff]
    %v2421 = vld [vmem:[%s2382 + $0x130] sm:$0xff]
    %v2422 = vld [vmem:[%s2382 + $0x138] sm:$0xff]
    %v2423 = vld [vmem:[%s2382 + $0x140] sm:$0xff]
    %v2424 = vld [vmem:[%s2382 + $0x148] sm:$0xff]
    %v2425 = vld [vmem:[%s2382 + $0x150] sm:$0xff]
    %v2426 = vld [vmem:[%s2382 + $0x158] sm:$0xff]
    %v2427 = vld [vmem:[%s2382 + $0x160] sm:$0xff]
    %v2428 = vld [vmem:[%s2382 + $0x168] sm:$0xff]
    %v2429 = vld [vmem:[%s2382 + $0x170] sm:$0xff]
    %v2430 = vld [vmem:[%s2382 + $0x178] sm:$0xff]
    %2431 = vmatprep.subr.mxu0 %v2429
    %2432 = vmatpush1.msra.mxu0 %v2428
    %2433 = vmatprep.subr.mxu0 %v2426
    %2434 = vmatpush1.msra.mxu0 %v2425
    %2435 = vmatprep.subr.mxu0 %v2423
    %2436 = vmatpush1.msra.mxu0 %v2422
    %2437 = vmatprep.subr.mxu0 %v2420
    %2438 = vmatpush1.msra.mxu0 %v2419
    %2439 = vmatprep.subr.mxu0 %v2417
    %2440 = vmatpush1.msra.mxu0 %v2416
    %2441 = vmatprep.subr.mxu0 %v2414
    %2442 = vmatpush1.msra.mxu0 %v2413
    %2443 = vmatprep.subr.mxu0 %v2411
    %2444 = vmatpush1.msra.mxu0 %v2410
    %2445 = vmatprep.subr.mxu0 %v2408
    %2446 = vmatpush1.msra.mxu0 %v2407
    %2447 = vmatprep.subr.mxu0 %v2405
    %2448 = vmatpush1.msra.mxu0 %v2404
    %2449 = vmatprep.subr.mxu0 %v2402
    %2450 = vmatpush1.msra.mxu0 %v2401
    %2451 = vmatprep.subr.mxu0 %v2399
    %2452 = vmatpush1.msra.mxu0 %v2398
    %2453 = vmatprep.subr.mxu0 %v2396
    %2454 = vmatpush1.msra.mxu0 %v2395
    %2455 = vmatprep.subr.mxu0 %v2393
    %2456 = vmatpush1.msra.mxu0 %v2392
    %2457 = vmatprep.subr.mxu0 %v2390
    %2458 = vmatpush1.msra.mxu0 %v2389
    %2459 = vmatprep.subr.mxu0 %v2387
    %2460 = vmatpush1.msra.mxu0 %v2386
    %2461 = vmatprep.subr.mxu0 %v2384
    %2462 = vmatpush1.msra.mxu0 %v2383
    %2463 = vmatprep.subr.mxu0 0.0
    %2464 = vmatpush2.msra.mxu0 0.0
    %2465 = vmatprep.subr.mxu0 0.0
    %2466 = vmatpush2.msra.mxu0 0.0
    %2467 = vmatprep.subr.mxu0 0.0
    %2468 = vmatpush2.msra.mxu0 0.0
    %2469 = vmatprep.subr.mxu0 0.0
    %2470 = vmatpush2.msra.mxu0 0.0
    %2471 = vmatprep.subr.mxu0 0.0
    %2472 = vmatpush2.msra.mxu0 0.0
    %2473 = vmatprep.subr.mxu0 0.0
    %2474 = vmatpush2.msra.mxu0 0.0
    %2475 = vmatprep.subr.mxu0 0.0
    %2476 = vmatpush2.msra.mxu0 0.0
    %2477 = vmatprep.subr.mxu0 0.0
    %2478 = vmatpush2.msra.mxu0 0.0
    %2479 = vmatprep.subr.mxu0 0.0
    %2480 = vmatpush2.msra.mxu0 0.0
    %2481 = vmatprep.subr.mxu0 0.0
    %2482 = vmatpush2.msra.mxu0 0.0
    %2483 = vmatprep.subr.mxu0 0.0
    %2484 = vmatpush2.msra.mxu0 0.0
    %2485 = vmatprep.subr.mxu0 0.0
    %2486 = vmatpush2.msra.mxu0 0.0
    %2487 = vmatprep.subr.mxu0 0.0
    %2488 = vmatpush2.msra.mxu0 0.0
    %2489 = vmatprep.subr.mxu0 0.0
    %2490 = vmatpush2.msra.mxu0 0.0
    %2491 = vmatprep.subr.mxu0 0.0
    %2492 = vmatpush2.msra.mxu0 0.0
    %2493 = vmatprep.subr.mxu0 0.0
    %2494 = vmatpush2.msra.mxu0 0.0
    %2495 = vmatprep.mubr.f32.mxu0 0.0
    %2496 = vmatmul.mubr.f32.gmra.mxu0 %v2380
    %v2497 = vpop.f32.mrf.mxu0
    %v2498 = vadd.f32 0.0, %v2497
    %v2499 = vpop.f32.mrf.mxu0
    %v2500 = vadd.f32 0.0, %v2499
    %2501 = vmatprep.mubr.f32.mxu0 0.0
    %2502 = vmatmul.mubr.f32.gmra.mxu0 %v2381
    %v2503 = vpop.f32.mrf.mxu0
    %v2504 = vadd.f32 0.0, %v2503
    %v2505 = vpop.f32.mrf.mxu0
    %v2506 = vadd.f32 0.0, %v2505
    %2507 = vdwg.mxu0
    %2508 = vmatprep.subr.mxu0 0.0
    %2509 = vmatpush1.msra.mxu0 %v2430
    %2510 = vmatprep.subr.mxu0 0.0
    %2511 = vmatpush1.msra.mxu0 %v2427
    %2512 = vmatprep.subr.mxu0 0.0
    %2513 = vmatpush1.msra.mxu0 %v2424
    %2514 = vmatprep.subr.mxu0 0.0
    %2515 = vmatpush1.msra.mxu0 %v2421
    %2516 = vmatprep.subr.mxu0 0.0
    %2517 = vmatpush1.msra.mxu0 %v2418
    %2518 = vmatprep.subr.mxu0 0.0
    %2519 = vmatpush1.msra.mxu0 %v2415
    %2520 = vmatprep.subr.mxu0 0.0
    %2521 = vmatpush1.msra.mxu0 %v2412
    %2522 = vmatprep.subr.mxu0 0.0
    %2523 = vmatpush1.msra.mxu0 %v2409
    %2524 = vmatprep.subr.mxu0 0.0
    %2525 = vmatpush1.msra.mxu0 %v2406
    %2526 = vmatprep.subr.mxu0 0.0
    %2527 = vmatpush1.msra.mxu0 %v2403
    %2528 = vmatprep.subr.mxu0 0.0
    %2529 = vmatpush1.msra.mxu0 %v2400
    %2530 = vmatprep.subr.mxu0 0.0
    %2531 = vmatpush1.msra.mxu0 %v2397
    %2532 = vmatprep.subr.mxu0 0.0
    %2533 = vmatpush1.msra.mxu0 %v2394
    %2534 = vmatprep.subr.mxu0 0.0
    %2535 = vmatpush1.msra.mxu0 %v2391
    %2536 = vmatprep.subr.mxu0 0.0
    %2537 = vmatpush1.msra.mxu0 %v2388
    %2538 = vmatprep.subr.mxu0 0.0
    %2539 = vmatpush1.msra.mxu0 %v2385
    %2540 = vmatprep.subr.mxu0 0.0
    %2541 = vmatpush2.msra.mxu0 0.0
    %2542 = vmatprep.subr.mxu0 0.0
    %2543 = vmatpush2.msra.mxu0 0.0
    %2544 = vmatprep.subr.mxu0 0.0
    %2545 = vmatpush2.msra.mxu0 0.0
    %2546 = vmatprep.subr.mxu0 0.0
    %2547 = vmatpush2.msra.mxu0 0.0
    %2548 = vmatprep.subr.mxu0 0.0
    %2549 = vmatpush2.msra.mxu0 0.0
    %2550 = vmatprep.subr.mxu0 0.0
    %2551 = vmatpush2.msra.mxu0 0.0
    %2552 = vmatprep.subr.mxu0 0.0
    %2553 = vmatpush2.msra.mxu0 0.0
    %2554 = vmatprep.subr.mxu0 0.0
    %2555 = vmatpush2.msra.mxu0 0.0
    %2556 = vmatprep.subr.mxu0 0.0
    %2557 = vmatpush2.msra.mxu0 0.0
    %2558 = vmatprep.subr.mxu0 0.0
    %2559 = vmatpush2.msra.mxu0 0.0
    %2560 = vmatprep.subr.mxu0 0.0
    %2561 = vmatpush2.msra.mxu0 0.0
    %2562 = vmatprep.subr.mxu0 0.0
    %2563 = vmatpush2.msra.mxu0 0.0
    %2564 = vmatprep.subr.mxu0 0.0
    %2565 = vmatpush2.msra.mxu0 0.0
    %2566 = vmatprep.subr.mxu0 0.0
    %2567 = vmatpush2.msra.mxu0 0.0
    %2568 = vmatprep.subr.mxu0 0.0
    %2569 = vmatpush2.msra.mxu0 0.0
    %2570 = vmatprep.subr.mxu0 0.0
    %2571 = vmatpush2.msra.mxu0 0.0
    %2572 = vmatprep.mubr.f32.mxu0 0.0
    %2573 = vmatmul.mubr.f32.gmra.mxu0 %v2380
    %v2574 = vpop.f32.mrf.mxu0
    %v2575 = vadd.f32 0.0, %v2574
    %v2576 = vpop.f32.mrf.mxu0
    %2577 = vmatprep.mubr.f32.mxu0 0.0
    %2578 = vmatmul.mubr.f32.gmra.mxu0 %v2381
    %v2579 = vpop.f32.mrf.mxu0
    %v2580 = vadd.f32 0.0, %v2579
    %v2581 = vpop.f32.mrf.mxu0
    %2582 = vdwg.mxu0
    %s2583 = scalar_lea.vmem [#allocation5], 128
    %v2584 = vld [vmem:[%s2583] sm:$0xff]
    %v2585 = vld [vmem:[%s2583 + $0x8] sm:$0xff]
    %v2586 = vld [vmem:[%s2583 + $0x10] sm:$0xff]
    %v2587 = vld [vmem:[%s2583 + $0x18] sm:$0xff]
    %v2588 = vld [vmem:[%s2583 + $0x20] sm:$0xff]
    %v2589 = vld [vmem:[%s2583 + $0x28] sm:$0xff]
    %v2590 = vld [vmem:[%s2583 + $0x30] sm:$0xff]
    %v2591 = vld [vmem:[%s2583 + $0x38] sm:$0xff]
    %v2592 = vld [vmem:[%s2583 + $0x40] sm:$0xff]
    %v2593 = vld [vmem:[%s2583 + $0x48] sm:$0xff]
    %v2594 = vld [vmem:[%s2583 + $0x50] sm:$0xff]
    %v2595 = vld [vmem:[%s2583 + $0x58] sm:$0xff]
    %v2596 = vld [vmem:[%s2583 + $0x60] sm:$0xff]
    %v2597 = vld [vmem:[%s2583 + $0x68] sm:$0xff]
    %v2598 = vld [vmem:[%s2583 + $0x70] sm:$0xff]
    %v2599 = vld [vmem:[%s2583 + $0x78] sm:$0xff]
    %v2601 = vsel %vm412, %v2498, 0
    %v2604 = vsel %vm412, %v2500, 0
    %2606 = vmatprep.subr.mxu0 0.0
    %2607 = vmatpush1.xpose.msra.mxu0 0.0
    %2608 = vmatprep.subr.mxu0 0.0
    %2609 = vmatpush1.xpose.msra.mxu0 0.0
    %2610 = vmatprep.subr.mxu0 0.0
    %2611 = vmatpush1.xpose.msra.mxu0 0.0
    %2612 = vmatprep.subr.mxu0 0.0
    %2613 = vmatpush1.xpose.msra.mxu0 0.0
    %2614 = vmatprep.subr.mxu0 0.0
    %2615 = vmatpush1.xpose.msra.mxu0 0.0
    %2616 = vmatprep.subr.mxu0 0.0
    %2617 = vmatpush1.xpose.msra.mxu0 0.0
    %2618 = vmatprep.subr.mxu0 0.0
    %2619 = vmatpush1.xpose.msra.mxu0 0.0
    %2620 = vmatprep.subr.mxu0 0.0
    %2621 = vmatpush1.xpose.msra.mxu0 0.0
    %2622 = vmatprep.subr.mxu0 0.0
    %2623 = vmatpush1.xpose.msra.mxu0 0.0
    %2624 = vmatprep.subr.mxu0 0.0
    %2625 = vmatpush1.xpose.msra.mxu0 0.0
    %2626 = vmatprep.subr.mxu0 0.0
    %2627 = vmatpush1.xpose.msra.mxu0 0.0
    %2628 = vmatprep.subr.mxu0 0.0
    %2629 = vmatpush1.xpose.msra.mxu0 0.0
    %2630 = vmatprep.subr.mxu0 0.0
    %2631 = vmatpush1.xpose.msra.mxu0 0.0
    %2632 = vmatprep.subr.mxu0 0.0
    %2633 = vmatpush1.xpose.msra.mxu0 0.0
    %2634 = vmatprep.subr.mxu0 0.0
    %2635 = vmatpush1.xpose.msra.mxu0 0.0
    %2636 = vmatprep.subr.mxu0 0.0
    %2637 = vmatpush1.xpose.msra.mxu0 %v2604
    %2638 = vmatprep.subr.mxu0 0.0
    %2639 = vmatpush2.xpose.msra.mxu0 0.0
    %2640 = vmatprep.subr.mxu0 0.0
    %2641 = vmatpush2.xpose.msra.mxu0 0.0
    %2642 = vmatprep.subr.mxu0 0.0
    %2643 = vmatpush2.xpose.msra.mxu0 0.0
    %2644 = vmatprep.subr.mxu0 0.0
    %2645 = vmatpush2.xpose.msra.mxu0 0.0
    %2646 = vmatprep.subr.mxu0 0.0
    %2647 = vmatpush2.xpose.msra.mxu0 0.0
    %2648 = vmatprep.subr.mxu0 0.0
    %2649 = vmatpush2.xpose.msra.mxu0 0.0
    %2650 = vmatprep.subr.mxu0 0.0
    %2651 = vmatpush2.xpose.msra.mxu0 0.0
    %2652 = vmatprep.subr.mxu0 0.0
    %2653 = vmatpush2.xpose.msra.mxu0 0.0
    %2654 = vmatprep.subr.mxu0 0.0
    %2655 = vmatpush2.xpose.msra.mxu0 0.0
    %2656 = vmatprep.subr.mxu0 0.0
    %2657 = vmatpush2.xpose.msra.mxu0 0.0
    %2658 = vmatprep.subr.mxu0 0.0
    %2659 = vmatpush2.xpose.msra.mxu0 0.0
    %2660 = vmatprep.subr.mxu0 0.0
    %2661 = vmatpush2.xpose.msra.mxu0 0.0
    %2662 = vmatprep.subr.mxu0 0.0
    %2663 = vmatpush2.xpose.msra.mxu0 0.0
    %2664 = vmatprep.subr.mxu0 0.0
    %2665 = vmatpush2.xpose.msra.mxu0 0.0
    %2666 = vmatprep.subr.mxu0 0.0
    %2667 = vmatpush2.xpose.msra.mxu0 0.0
    %2668 = vmatprep.subr.mxu0 0.0
    %2669 = vmatpush2.xpose.msra.mxu0 0.0
    %2670 = vmatprep.mubr.f32.mxu0 0.0
    %2671 = vmatmul.mubr.f32.gmra.mxu0 %v2601
    %v2672 = vpop.f32.mrf.mxu0
    %v2673 = vadd.f32 0.0, %v2672
    %v2674 = vpop.f32.mrf.mxu0
    %2675 = vdwg.mxu0
    %v2677 = vsel %vm412, %v2504, 0
    %v2680 = vsel %vm412, %v2506, 0
    %2682 = vmatprep.subr.mxu0 0.0
    %2683 = vmatpush1.xpose.msra.mxu0 0.0
    %2684 = vmatprep.subr.mxu0 0.0
    %2685 = vmatpush1.xpose.msra.mxu0 0.0
    %2686 = vmatprep.subr.mxu0 0.0
    %2687 = vmatpush1.xpose.msra.mxu0 0.0
    %2688 = vmatprep.subr.mxu0 0.0
    %2689 = vmatpush1.xpose.msra.mxu0 0.0
    %2690 = vmatprep.subr.mxu0 0.0
    %2691 = vmatpush1.xpose.msra.mxu0 0.0
    %2692 = vmatprep.subr.mxu0 0.0
    %2693 = vmatpush1.xpose.msra.mxu0 0.0
    %2694 = vmatprep.subr.mxu0 0.0
    %2695 = vmatpush1.xpose.msra.mxu0 0.0
    %2696 = vmatprep.subr.mxu0 0.0
    %2697 = vmatpush1.xpose.msra.mxu0 0.0
    %2698 = vmatprep.subr.mxu0 0.0
    %2699 = vmatpush1.xpose.msra.mxu0 0.0
    %2700 = vmatprep.subr.mxu0 0.0
    %2701 = vmatpush1.xpose.msra.mxu0 0.0
    %2702 = vmatprep.subr.mxu0 0.0
    %2703 = vmatpush1.xpose.msra.mxu0 0.0
    %2704 = vmatprep.subr.mxu0 0.0
    %2705 = vmatpush1.xpose.msra.mxu0 0.0
    %2706 = vmatprep.subr.mxu0 0.0
    %2707 = vmatpush1.xpose.msra.mxu0 0.0
    %2708 = vmatprep.subr.mxu0 0.0
    %2709 = vmatpush1.xpose.msra.mxu0 0.0
    %2710 = vmatprep.subr.mxu0 0.0
    %2711 = vmatpush1.xpose.msra.mxu0 0.0
    %2712 = vmatprep.subr.mxu0 0.0
    %2713 = vmatpush1.xpose.msra.mxu0 %v2680
    %2714 = vmatprep.subr.mxu0 0.0
    %2715 = vmatpush2.xpose.msra.mxu0 0.0
    %2716 = vmatprep.subr.mxu0 0.0
    %2717 = vmatpush2.xpose.msra.mxu0 0.0
    %2718 = vmatprep.subr.mxu0 0.0
    %2719 = vmatpush2.xpose.msra.mxu0 0.0
    %2720 = vmatprep.subr.mxu0 0.0
    %2721 = vmatpush2.xpose.msra.mxu0 0.0
    %2722 = vmatprep.subr.mxu0 0.0
    %2723 = vmatpush2.xpose.msra.mxu0 0.0
    %2724 = vmatprep.subr.mxu0 0.0
    %2725 = vmatpush2.xpose.msra.mxu0 0.0
    %2726 = vmatprep.subr.mxu0 0.0
    %2727 = vmatpush2.xpose.msra.mxu0 0.0
    %2728 = vmatprep.subr.mxu0 0.0
    %2729 = vmatpush2.xpose.msra.mxu0 0.0
    %2730 = vmatprep.subr.mxu0 0.0
    %2731 = vmatpush2.xpose.msra.mxu0 0.0
    %2732 = vmatprep.subr.mxu0 0.0
    %2733 = vmatpush2.xpose.msra.mxu0 0.0
    %2734 = vmatprep.subr.mxu0 0.0
    %2735 = vmatpush2.xpose.msra.mxu0 0.0
    %2736 = vmatprep.subr.mxu0 0.0
    %2737 = vmatpush2.xpose.msra.mxu0 0.0
    %2738 = vmatprep.subr.mxu0 0.0
    %2739 = vmatpush2.xpose.msra.mxu0 0.0
    %2740 = vmatprep.subr.mxu0 0.0
    %2741 = vmatpush2.xpose.msra.mxu0 0.0
    %2742 = vmatprep.subr.mxu0 0.0
    %2743 = vmatpush2.xpose.msra.mxu0 0.0
    %2744 = vmatprep.subr.mxu0 0.0
    %2745 = vmatpush2.xpose.msra.mxu0 0.0
    %2746 = vmatprep.mubr.f32.mxu0 0.0
    %2747 = vmatmul.mubr.f32.gmra.mxu0 %v2677
    %v2748 = vpop.f32.mrf.mxu0
    %v2749 = vadd.f32 0.0, %v2748
    %v2750 = vpop.f32.mrf.mxu0
    %2751 = vdwg.mxu0
    %v2752 = vsel %vm565, %v2673, -inf
    %2753 = vmax.xlane.f32.xlu0 %v2752
    %v2754 = vpop.xlane.xlu0 %2753
    %v2755 = vsel %vm565, %v2749, -inf
    %2756 = vmax.xlane.f32.xlu0 %v2755
    %v2757 = vpop.xlane.xlu0 %2756
    %v2758 = vsub.f32 %v2673, %v2754
    %v2759 = vsub.f32 %v2749, %v2757
    %v2760 = vmul.f32 %v2758, 1.442695
    %v2761 = vpow.pop %v2760
    %v2762 = vmul.f32 %v2759, 1.442695
    %v2763 = vpow.pop %v2762
    %v2764 = vsel %vm565, %v2761, 0.0
    %2765 = vadd.xlane.f32.xlu0 %v2764
    %v2766 = vpop.xlane.xlu0 %2765
    %v2767 = vsel %vm565, %v2763, 0.0
    %2768 = vadd.xlane.f32.xlu0 %v2767
    %v2769 = vpop.xlane.xlu0 %2768
    %v2770 = vrcp.pop %v2766
    %v2771 = vrcp.pop %v2769
    %v2772 = vmul.f32 %v2761, %v2770
    %v2773 = vmul.f32 %v2763, %v2771
    %v2775 = vsel %vm565, %v2772, 0
    %2777 = vmatprep.subr.mxu0 0.0
    %2778 = vmatpush1.msra.mxu0 0.0
    %2779 = vmatprep.subr.mxu0 0.0
    %2780 = vmatpush1.msra.mxu0 0.0
    %2781 = vmatprep.subr.mxu0 0.0
    %2782 = vmatpush1.msra.mxu0 0.0
    %2783 = vmatprep.subr.mxu0 0.0
    %2784 = vmatpush1.msra.mxu0 0.0
    %2785 = vmatprep.subr.mxu0 0.0
    %2786 = vmatpush1.msra.mxu0 0.0
    %2787 = vmatprep.subr.mxu0 0.0
    %2788 = vmatpush1.msra.mxu0 0.0
    %2789 = vmatprep.subr.mxu0 0.0
    %2790 = vmatpush1.msra.mxu0 0.0
    %2791 = vmatprep.subr.mxu0 0.0
    %2792 = vmatpush1.msra.mxu0 0.0
    %2793 = vmatprep.subr.mxu0 0.0
    %2794 = vmatpush1.msra.mxu0 0.0
    %2795 = vmatprep.subr.mxu0 0.0
    %2796 = vmatpush1.msra.mxu0 0.0
    %2797 = vmatprep.subr.mxu0 0.0
    %2798 = vmatpush1.msra.mxu0 0.0
    %2799 = vmatprep.subr.mxu0 0.0
    %2800 = vmatpush1.msra.mxu0 0.0
    %2801 = vmatprep.subr.mxu0 0.0
    %2802 = vmatpush1.msra.mxu0 0.0
    %2803 = vmatprep.subr.mxu0 0.0
    %2804 = vmatpush1.msra.mxu0 0.0
    %2805 = vmatprep.subr.mxu0 0.0
    %2806 = vmatpush1.msra.mxu0 0.0
    %2807 = vmatprep.subr.mxu0 0.0
    %2808 = vmatpush1.msra.mxu0 %v2575
    %2809 = vmatprep.subr.mxu0 0.0
    %2810 = vmatpush2.msra.mxu0 0.0
    %2811 = vmatprep.subr.mxu0 0.0
    %2812 = vmatpush2.msra.mxu0 0.0
    %2813 = vmatprep.subr.mxu0 0.0
    %2814 = vmatpush2.msra.mxu0 0.0
    %2815 = vmatprep.subr.mxu0 0.0
    %2816 = vmatpush2.msra.mxu0 0.0
    %2817 = vmatprep.subr.mxu0 0.0
    %2818 = vmatpush2.msra.mxu0 0.0
    %2819 = vmatprep.subr.mxu0 0.0
    %2820 = vmatpush2.msra.mxu0 0.0
    %2821 = vmatprep.subr.mxu0 0.0
    %2822 = vmatpush2.msra.mxu0 0.0
    %2823 = vmatprep.subr.mxu0 0.0
    %2824 = vmatpush2.msra.mxu0 0.0
    %2825 = vmatprep.subr.mxu0 0.0
    %2826 = vmatpush2.msra.mxu0 0.0
    %2827 = vmatprep.subr.mxu0 0.0
    %2828 = vmatpush2.msra.mxu0 0.0
    %2829 = vmatprep.subr.mxu0 0.0
    %2830 = vmatpush2.msra.mxu0 0.0
    %2831 = vmatprep.subr.mxu0 0.0
    %2832 = vmatpush2.msra.mxu0 0.0
    %2833 = vmatprep.subr.mxu0 0.0
    %2834 = vmatpush2.msra.mxu0 0.0
    %2835 = vmatprep.subr.mxu0 0.0
    %2836 = vmatpush2.msra.mxu0 0.0
    %2837 = vmatprep.subr.mxu0 0.0
    %2838 = vmatpush2.msra.mxu0 0.0
    %2839 = vmatprep.subr.mxu0 0.0
    %2840 = vmatpush2.msra.mxu0 0.0
    %2841 = vmatprep.mubr.f32.mxu0 0.0
    %2842 = vmatmul.mubr.f32.gmra.mxu0 %v2775
    %v2843 = vpop.f32.mrf.mxu0
    %v2844 = vadd.f32 0.0, %v2843
    %v2845 = vpop.f32.mrf.mxu0
    %2846 = vdwg.mxu0
    %v2848 = vsel %vm565, %v2773, 0
    %2850 = vmatprep.subr.mxu0 0.0
    %2851 = vmatpush1.msra.mxu0 0.0
    %2852 = vmatprep.subr.mxu0 0.0
    %2853 = vmatpush1.msra.mxu0 0.0
    %2854 = vmatprep.subr.mxu0 0.0
    %2855 = vmatpush1.msra.mxu0 0.0
    %2856 = vmatprep.subr.mxu0 0.0
    %2857 = vmatpush1.msra.mxu0 0.0
    %2858 = vmatprep.subr.mxu0 0.0
    %2859 = vmatpush1.msra.mxu0 0.0
    %2860 = vmatprep.subr.mxu0 0.0
    %2861 = vmatpush1.msra.mxu0 0.0
    %2862 = vmatprep.subr.mxu0 0.0
    %2863 = vmatpush1.msra.mxu0 0.0
    %2864 = vmatprep.subr.mxu0 0.0
    %2865 = vmatpush1.msra.mxu0 0.0
    %2866 = vmatprep.subr.mxu0 0.0
    %2867 = vmatpush1.msra.mxu0 0.0
    %2868 = vmatprep.subr.mxu0 0.0
    %2869 = vmatpush1.msra.mxu0 0.0
    %2870 = vmatprep.subr.mxu0 0.0
    %2871 = vmatpush1.msra.mxu0 0.0
    %2872 = vmatprep.subr.mxu0 0.0
    %2873 = vmatpush1.msra.mxu0 0.0
    %2874 = vmatprep.subr.mxu0 0.0
    %2875 = vmatpush1.msra.mxu0 0.0
    %2876 = vmatprep.subr.mxu0 0.0
    %2877 = vmatpush1.msra.mxu0 0.0
    %2878 = vmatprep.subr.mxu0 0.0
    %2879 = vmatpush1.msra.mxu0 0.0
    %2880 = vmatprep.subr.mxu0 0.0
    %2881 = vmatpush1.msra.mxu0 %v2580
    %2882 = vmatprep.subr.mxu0 0.0
    %2883 = vmatpush2.msra.mxu0 0.0
    %2884 = vmatprep.subr.mxu0 0.0
    %2885 = vmatpush2.msra.mxu0 0.0
    %2886 = vmatprep.subr.mxu0 0.0
    %2887 = vmatpush2.msra.mxu0 0.0
    %2888 = vmatprep.subr.mxu0 0.0
    %2889 = vmatpush2.msra.mxu0 0.0
    %2890 = vmatprep.subr.mxu0 0.0
    %2891 = vmatpush2.msra.mxu0 0.0
    %2892 = vmatprep.subr.mxu0 0.0
    %2893 = vmatpush2.msra.mxu0 0.0
    %2894 = vmatprep.subr.mxu0 0.0
    %2895 = vmatpush2.msra.mxu0 0.0
    %2896 = vmatprep.subr.mxu0 0.0
    %2897 = vmatpush2.msra.mxu0 0.0
    %2898 = vmatprep.subr.mxu0 0.0
    %2899 = vmatpush2.msra.mxu0 0.0
    %2900 = vmatprep.subr.mxu0 0.0
    %2901 = vmatpush2.msra.mxu0 0.0
    %2902 = vmatprep.subr.mxu0 0.0
    %2903 = vmatpush2.msra.mxu0 0.0
    %2904 = vmatprep.subr.mxu0 0.0
    %2905 = vmatpush2.msra.mxu0 0.0
    %2906 = vmatprep.subr.mxu0 0.0
    %2907 = vmatpush2.msra.mxu0 0.0
    %2908 = vmatprep.subr.mxu0 0.0
    %2909 = vmatpush2.msra.mxu0 0.0
    %2910 = vmatprep.subr.mxu0 0.0
    %2911 = vmatpush2.msra.mxu0 0.0
    %2912 = vmatprep.subr.mxu0 0.0
    %2913 = vmatpush2.msra.mxu0 0.0
    %2914 = vmatprep.mubr.f32.mxu0 0.0
    %2915 = vmatmul.mubr.f32.gmra.mxu0 %v2848
    %v2916 = vpop.f32.mrf.mxu0
    %v2917 = vadd.f32 0.0, %v2916
    %v2918 = vpop.f32.mrf.mxu0
    %2919 = vdwg.mxu0
    %2920 = vrot.lane.b32.xlu0 %v2498, 96
    %v2921 = vpop.permute.xlu0 %2920
    %2922 = vrot.lane.b32.xlu0 %v2500, 96
    %v2923 = vpop.permute.xlu0 %2922
    %v2924 = vsel %vm412, %v2921, 0
    %v2926 = vsel %vm412, %v2923, 0
    %2928 = vmatprep.subr.mxu0 0.0
    %2929 = vmatpush1.xpose.msra.mxu0 0.0
    %2930 = vmatprep.subr.mxu0 0.0
    %2931 = vmatpush1.xpose.msra.mxu0 0.0
    %2932 = vmatprep.subr.mxu0 0.0
    %2933 = vmatpush1.xpose.msra.mxu0 0.0
    %2934 = vmatprep.subr.mxu0 0.0
    %2935 = vmatpush1.xpose.msra.mxu0 0.0
    %2936 = vmatprep.subr.mxu0 0.0
    %2937 = vmatpush1.xpose.msra.mxu0 0.0
    %2938 = vmatprep.subr.mxu0 0.0
    %2939 = vmatpush1.xpose.msra.mxu0 0.0
    %2940 = vmatprep.subr.mxu0 0.0
    %2941 = vmatpush1.xpose.msra.mxu0 0.0
    %2942 = vmatprep.subr.mxu0 0.0
    %2943 = vmatpush1.xpose.msra.mxu0 0.0
    %2944 = vmatprep.subr.mxu0 0.0
    %2945 = vmatpush1.xpose.msra.mxu0 0.0
    %2946 = vmatprep.subr.mxu0 0.0
    %2947 = vmatpush1.xpose.msra.mxu0 0.0
    %2948 = vmatprep.subr.mxu0 0.0
    %2949 = vmatpush1.xpose.msra.mxu0 0.0
    %2950 = vmatprep.subr.mxu0 0.0
    %2951 = vmatpush1.xpose.msra.mxu0 0.0
    %2952 = vmatprep.subr.mxu0 0.0
    %2953 = vmatpush1.xpose.msra.mxu0 0.0
    %2954 = vmatprep.subr.mxu0 0.0
    %2955 = vmatpush1.xpose.msra.mxu0 0.0
    %2956 = vmatprep.subr.mxu0 0.0
    %2957 = vmatpush1.xpose.msra.mxu0 0.0
    %2958 = vmatprep.subr.mxu0 0.0
    %2959 = vmatpush1.xpose.msra.mxu0 %v2926
    %2960 = vmatprep.subr.mxu0 0.0
    %2961 = vmatpush2.xpose.msra.mxu0 0.0
    %2962 = vmatprep.subr.mxu0 0.0
    %2963 = vmatpush2.xpose.msra.mxu0 0.0
    %2964 = vmatprep.subr.mxu0 0.0
    %2965 = vmatpush2.xpose.msra.mxu0 0.0
    %2966 = vmatprep.subr.mxu0 0.0
    %2967 = vmatpush2.xpose.msra.mxu0 0.0
    %2968 = vmatprep.subr.mxu0 0.0
    %2969 = vmatpush2.xpose.msra.mxu0 0.0
    %2970 = vmatprep.subr.mxu0 0.0
    %2971 = vmatpush2.xpose.msra.mxu0 0.0
    %2972 = vmatprep.subr.mxu0 0.0
    %2973 = vmatpush2.xpose.msra.mxu0 0.0
    %2974 = vmatprep.subr.mxu0 0.0
    %2975 = vmatpush2.xpose.msra.mxu0 0.0
    %2976 = vmatprep.subr.mxu0 0.0
    %2977 = vmatpush2.xpose.msra.mxu0 0.0
    %2978 = vmatprep.subr.mxu0 0.0
    %2979 = vmatpush2.xpose.msra.mxu0 0.0
    %2980 = vmatprep.subr.mxu0 0.0
    %2981 = vmatpush2.xpose.msra.mxu0 0.0
    %2982 = vmatprep.subr.mxu0 0.0
    %2983 = vmatpush2.xpose.msra.mxu0 0.0
    %2984 = vmatprep.subr.mxu0 0.0
    %2985 = vmatpush2.xpose.msra.mxu0 0.0
    %2986 = vmatprep.subr.mxu0 0.0
    %2987 = vmatpush2.xpose.msra.mxu0 0.0
    %2988 = vmatprep.subr.mxu0 0.0
    %2989 = vmatpush2.xpose.msra.mxu0 0.0
    %2990 = vmatprep.subr.mxu0 0.0
    %2991 = vmatpush2.xpose.msra.mxu0 0.0
    %2992 = vmatprep.mubr.f32.mxu0 0.0
    %2993 = vmatmul.mubr.f32.gmra.mxu0 %v2924
    %v2994 = vpop.f32.mrf.mxu0
    %v2995 = vadd.f32 0.0, %v2994
    %v2996 = vpop.f32.mrf.mxu0
    %2997 = vdwg.mxu0
    %2998 = vrot.lane.b32.xlu0 %v2504, 96
    %v2999 = vpop.permute.xlu0 %2998
    %3000 = vrot.lane.b32.xlu0 %v2506, 96
    %v3001 = vpop.permute.xlu0 %3000
    %v3002 = vsel %vm412, %v2999, 0
    %v3004 = vsel %vm412, %v3001, 0
    %3006 = vmatprep.subr.mxu0 0.0
    %3007 = vmatpush1.xpose.msra.mxu0 0.0
    %3008 = vmatprep.subr.mxu0 0.0
    %3009 = vmatpush1.xpose.msra.mxu0 0.0
    %3010 = vmatprep.subr.mxu0 0.0
    %3011 = vmatpush1.xpose.msra.mxu0 0.0
    %3012 = vmatprep.subr.mxu0 0.0
    %3013 = vmatpush1.xpose.msra.mxu0 0.0
    %3014 = vmatprep.subr.mxu0 0.0
    %3015 = vmatpush1.xpose.msra.mxu0 0.0
    %3016 = vmatprep.subr.mxu0 0.0
    %3017 = vmatpush1.xpose.msra.mxu0 0.0
    %3018 = vmatprep.subr.mxu0 0.0
    %3019 = vmatpush1.xpose.msra.mxu0 0.0
    %3020 = vmatprep.subr.mxu0 0.0
    %3021 = vmatpush1.xpose.msra.mxu0 0.0
    %3022 = vmatprep.subr.mxu0 0.0
    %3023 = vmatpush1.xpose.msra.mxu0 0.0
    %3024 = vmatprep.subr.mxu0 0.0
    %3025 = vmatpush1.xpose.msra.mxu0 0.0
    %3026 = vmatprep.subr.mxu0 0.0
    %3027 = vmatpush1.xpose.msra.mxu0 0.0
    %3028 = vmatprep.subr.mxu0 0.0
    %3029 = vmatpush1.xpose.msra.mxu0 0.0
    %3030 = vmatprep.subr.mxu0 0.0
    %3031 = vmatpush1.xpose.msra.mxu0 0.0
    %3032 = vmatprep.subr.mxu0 0.0
    %3033 = vmatpush1.xpose.msra.mxu0 0.0
    %3034 = vmatprep.subr.mxu0 0.0
    %3035 = vmatpush1.xpose.msra.mxu0 0.0
    %3036 = vmatprep.subr.mxu0 0.0
    %3037 = vmatpush1.xpose.msra.mxu0 %v3004
    %3038 = vmatprep.subr.mxu0 0.0
    %3039 = vmatpush2.xpose.msra.mxu0 0.0
    %3040 = vmatprep.subr.mxu0 0.0
    %3041 = vmatpush2.xpose.msra.mxu0 0.0
    %3042 = vmatprep.subr.mxu0 0.0
    %3043 = vmatpush2.xpose.msra.mxu0 0.0
    %3044 = vmatprep.subr.mxu0 0.0
    %3045 = vmatpush2.xpose.msra.mxu0 0.0
    %3046 = vmatprep.subr.mxu0 0.0
    %3047 = vmatpush2.xpose.msra.mxu0 0.0
    %3048 = vmatprep.subr.mxu0 0.0
    %3049 = vmatpush2.xpose.msra.mxu0 0.0
    %3050 = vmatprep.subr.mxu0 0.0
    %3051 = vmatpush2.xpose.msra.mxu0 0.0
    %3052 = vmatprep.subr.mxu0 0.0
    %3053 = vmatpush2.xpose.msra.mxu0 0.0
    %3054 = vmatprep.subr.mxu0 0.0
    %3055 = vmatpush2.xpose.msra.mxu0 0.0
    %3056 = vmatprep.subr.mxu0 0.0
    %3057 = vmatpush2.xpose.msra.mxu0 0.0
    %3058 = vmatprep.subr.mxu0 0.0
    %3059 = vmatpush2.xpose.msra.mxu0 0.0
    %3060 = vmatprep.subr.mxu0 0.0
    %3061 = vmatpush2.xpose.msra.mxu0 0.0
    %3062 = vmatprep.subr.mxu0 0.0
    %3063 = vmatpush2.xpose.msra.mxu0 0.0
    %3064 = vmatprep.subr.mxu0 0.0
    %3065 = vmatpush2.xpose.msra.mxu0 0.0
    %3066 = vmatprep.subr.mxu0 0.0
    %3067 = vmatpush2.xpose.msra.mxu0 0.0
    %3068 = vmatprep.subr.mxu0 0.0
    %3069 = vmatpush2.xpose.msra.mxu0 0.0
    %3070 = vmatprep.mubr.f32.mxu0 0.0
    %3071 = vmatmul.mubr.f32.gmra.mxu0 %v3002
    %v3072 = vpop.f32.mrf.mxu0
    %v3073 = vadd.f32 0.0, %v3072
    %v3074 = vpop.f32.mrf.mxu0
    %3075 = vdwg.mxu0
    %v3076 = vsel %vm565, %v2995, -inf
    %3077 = vmax.xlane.f32.xlu0 %v3076
    %v3078 = vpop.xlane.xlu0 %3077
    %v3079 = vsel %vm565, %v3073, -inf
    %3080 = vmax.xlane.f32.xlu0 %v3079
    %v3081 = vpop.xlane.xlu0 %3080
    %v3082 = vsub.f32 %v2995, %v3078
    %v3083 = vsub.f32 %v3073, %v3081
    %v3084 = vmul.f32 %v3082, 1.442695
    %v3085 = vpow.pop %v3084
    %v3086 = vmul.f32 %v3083, 1.442695
    %v3087 = vpow.pop %v3086
    %v3088 = vsel %vm565, %v3085, 0.0
    %3089 = vadd.xlane.f32.xlu0 %v3088
    %v3090 = vpop.xlane.xlu0 %3089
    %v3091 = vsel %vm565, %v3087, 0.0
    %3092 = vadd.xlane.f32.xlu0 %v3091
    %v3093 = vpop.xlane.xlu0 %3092
    %v3094 = vrcp.pop %v3090
    %v3095 = vrcp.pop %v3093
    %v3096 = vmul.f32 %v3085, %v3094
    %v3097 = vmul.f32 %v3087, %v3095
    %3099 = vrot.lane.b32.xlu0 %v2575, 96
    %v3100 = vpop.permute.xlu0 %3099
    %v3103 = vsel %vm565, %v3096, 0
    %3105 = vmatprep.subr.mxu0 0.0
    %3106 = vmatpush1.msra.mxu0 0.0
    %3107 = vmatprep.subr.mxu0 0.0
    %3108 = vmatpush1.msra.mxu0 0.0
    %3109 = vmatprep.subr.mxu0 0.0
    %3110 = vmatpush1.msra.mxu0 0.0
    %3111 = vmatprep.subr.mxu0 0.0
    %3112 = vmatpush1.msra.mxu0 0.0
    %3113 = vmatprep.subr.mxu0 0.0
    %3114 = vmatpush1.msra.mxu0 0.0
    %3115 = vmatprep.subr.mxu0 0.0
    %3116 = vmatpush1.msra.mxu0 0.0
    %3117 = vmatprep.subr.mxu0 0.0
    %3118 = vmatpush1.msra.mxu0 0.0
    %3119 = vmatprep.subr.mxu0 0.0
    %3120 = vmatpush1.msra.mxu0 0.0
    %3121 = vmatprep.subr.mxu0 0.0
    %3122 = vmatpush1.msra.mxu0 0.0
    %3123 = vmatprep.subr.mxu0 0.0
    %3124 = vmatpush1.msra.mxu0 0.0
    %3125 = vmatprep.subr.mxu0 0.0
    %3126 = vmatpush1.msra.mxu0 0.0
    %3127 = vmatprep.subr.mxu0 0.0
    %3128 = vmatpush1.msra.mxu0 0.0
    %3129 = vmatprep.subr.mxu0 0.0
    %3130 = vmatpush1.msra.mxu0 0.0
    %3131 = vmatprep.subr.mxu0 0.0
    %3132 = vmatpush1.msra.mxu0 0.0
    %3133 = vmatprep.subr.mxu0 0.0
    %3134 = vmatpush1.msra.mxu0 0.0
    %3135 = vmatprep.subr.mxu0 0.0
    %3136 = vmatpush1.msra.mxu0 %v3100
    %3137 = vmatprep.subr.mxu0 0.0
    %3138 = vmatpush2.msra.mxu0 0.0
    %3139 = vmatprep.subr.mxu0 0.0
    %3140 = vmatpush2.msra.mxu0 0.0
    %3141 = vmatprep.subr.mxu0 0.0
    %3142 = vmatpush2.msra.mxu0 0.0
    %3143 = vmatprep.subr.mxu0 0.0
    %3144 = vmatpush2.msra.mxu0 0.0
    %3145 = vmatprep.subr.mxu0 0.0
    %3146 = vmatpush2.msra.mxu0 0.0
    %3147 = vmatprep.subr.mxu0 0.0
    %3148 = vmatpush2.msra.mxu0 0.0
    %3149 = vmatprep.subr.mxu0 0.0
    %3150 = vmatpush2.msra.mxu0 0.0
    %3151 = vmatprep.subr.mxu0 0.0
    %3152 = vmatpush2.msra.mxu0 0.0
    %3153 = vmatprep.subr.mxu0 0.0
    %3154 = vmatpush2.msra.mxu0 0.0
    %3155 = vmatprep.subr.mxu0 0.0
    %3156 = vmatpush2.msra.mxu0 0.0
    %3157 = vmatprep.subr.mxu0 0.0
    %3158 = vmatpush2.msra.mxu0 0.0
    %3159 = vmatprep.subr.mxu0 0.0
    %3160 = vmatpush2.msra.mxu0 0.0
    %3161 = vmatprep.subr.mxu0 0.0
    %3162 = vmatpush2.msra.mxu0 0.0
    %3163 = vmatprep.subr.mxu0 0.0
    %3164 = vmatpush2.msra.mxu0 0.0
    %3165 = vmatprep.subr.mxu0 0.0
    %3166 = vmatpush2.msra.mxu0 0.0
    %3167 = vmatprep.subr.mxu0 0.0
    %3168 = vmatpush2.msra.mxu0 0.0
    %3169 = vmatprep.mubr.f32.mxu0 0.0
    %3170 = vmatmul.mubr.f32.gmra.mxu0 %v3103
    %v3171 = vpop.f32.mrf.mxu0
    %v3172 = vadd.f32 0.0, %v3171
    %v3173 = vpop.f32.mrf.mxu0
    %3174 = vdwg.mxu0
    %3176 = vrot.lane.b32.xlu0 %v2580, 96
    %v3177 = vpop.permute.xlu0 %3176
    %v3180 = vsel %vm565, %v3097, 0
    %3182 = vmatprep.subr.mxu0 0.0
    %3183 = vmatpush1.msra.mxu0 0.0
    %3184 = vmatprep.subr.mxu0 0.0
    %3185 = vmatpush1.msra.mxu0 0.0
    %3186 = vmatprep.subr.mxu0 0.0
    %3187 = vmatpush1.msra.mxu0 0.0
    %3188 = vmatprep.subr.mxu0 0.0
    %3189 = vmatpush1.msra.mxu0 0.0
    %3190 = vmatprep.subr.mxu0 0.0
    %3191 = vmatpush1.msra.mxu0 0.0
    %3192 = vmatprep.subr.mxu0 0.0
    %3193 = vmatpush1.msra.mxu0 0.0
    %3194 = vmatprep.subr.mxu0 0.0
    %3195 = vmatpush1.msra.mxu0 0.0
    %3196 = vmatprep.subr.mxu0 0.0
    %3197 = vmatpush1.msra.mxu0 0.0
    %3198 = vmatprep.subr.mxu0 0.0
    %3199 = vmatpush1.msra.mxu0 0.0
    %3200 = vmatprep.subr.mxu0 0.0
    %3201 = vmatpush1.msra.mxu0 0.0
    %3202 = vmatprep.subr.mxu0 0.0
    %3203 = vmatpush1.msra.mxu0 0.0
    %3204 = vmatprep.subr.mxu0 0.0
    %3205 = vmatpush1.msra.mxu0 0.0
    %3206 = vmatprep.subr.mxu0 0.0
    %3207 = vmatpush1.msra.mxu0 0.0
    %3208 = vmatprep.subr.mxu0 0.0
    %3209 = vmatpush1.msra.mxu0 0.0
    %3210 = vmatprep.subr.mxu0 0.0
    %3211 = vmatpush1.msra.mxu0 0.0
    %3212 = vmatprep.subr.mxu0 0.0
    %3213 = vmatpush1.msra.mxu0 %v3177
    %3214 = vmatprep.subr.mxu0 0.0
    %3215 = vmatpush2.msra.mxu0 0.0
    %3216 = vmatprep.subr.mxu0 0.0
    %3217 = vmatpush2.msra.mxu0 0.0
    %3218 = vmatprep.subr.mxu0 0.0
    %3219 = vmatpush2.msra.mxu0 0.0
    %3220 = vmatprep.subr.mxu0 0.0
    %3221 = vmatpush2.msra.mxu0 0.0
    %3222 = vmatprep.subr.mxu0 0.0
    %3223 = vmatpush2.msra.mxu0 0.0
    %3224 = vmatprep.subr.mxu0 0.0
    %3225 = vmatpush2.msra.mxu0 0.0
    %3226 = vmatprep.subr.mxu0 0.0
    %3227 = vmatpush2.msra.mxu0 0.0
    %3228 = vmatprep.subr.mxu0 0.0
    %3229 = vmatpush2.msra.mxu0 0.0
    %3230 = vmatprep.subr.mxu0 0.0
    %3231 = vmatpush2.msra.mxu0 0.0
    %3232 = vmatprep.subr.mxu0 0.0
    %3233 = vmatpush2.msra.mxu0 0.0
    %3234 = vmatprep.subr.mxu0 0.0
    %3235 = vmatpush2.msra.mxu0 0.0
    %3236 = vmatprep.subr.mxu0 0.0
    %3237 = vmatpush2.msra.mxu0 0.0
    %3238 = vmatprep.subr.mxu0 0.0
    %3239 = vmatpush2.msra.mxu0 0.0
    %3240 = vmatprep.subr.mxu0 0.0
    %3241 = vmatpush2.msra.mxu0 0.0
    %3242 = vmatprep.subr.mxu0 0.0
    %3243 = vmatpush2.msra.mxu0 0.0
    %3244 = vmatprep.subr.mxu0 0.0
    %3245 = vmatpush2.msra.mxu0 0.0
    %3246 = vmatprep.mubr.f32.mxu0 0.0
    %3247 = vmatmul.mubr.f32.gmra.mxu0 %v3180
    %v3248 = vpop.f32.mrf.mxu0
    %v3249 = vadd.f32 0.0, %v3248
    %v3250 = vpop.f32.mrf.mxu0
    %3251 = vdwg.mxu0
    %v3253 = vsel %vm412, %v3172, 0
    %v3256 = vsel %vm412, %v3249, 0
    %3258 = vmatprep.subr.mxu0 0.0
    %3259 = vmatpush1.msra.mxu0 0.0
    %3260 = vmatprep.subr.mxu0 0.0
    %3261 = vmatpush1.msra.mxu0 0.0
    %3262 = vmatprep.subr.mxu0 0.0
    %3263 = vmatpush1.msra.mxu0 0.0
    %3264 = vmatprep.subr.mxu0 0.0
    %3265 = vmatpush1.msra.mxu0 0.0
    %3266 = vmatprep.subr.mxu0 0.0
    %3267 = vmatpush1.msra.mxu0 0.0
    %3268 = vmatprep.subr.mxu0 0.0
    %3269 = vmatpush1.msra.mxu0 0.0
    %3270 = vmatprep.subr.mxu0 0.0
    %3271 = vmatpush1.msra.mxu0 0.0
    %3272 = vmatprep.subr.mxu0 0.0
    %3273 = vmatpush1.msra.mxu0 0.0
    %3274 = vmatprep.subr.mxu0 0.0
    %3275 = vmatpush1.msra.mxu0 0.0
    %3276 = vmatprep.subr.mxu0 0.0
    %3277 = vmatpush1.msra.mxu0 0.0
    %3278 = vmatprep.subr.mxu0 0.0
    %3279 = vmatpush1.msra.mxu0 0.0
    %3280 = vmatprep.subr.mxu0 0.0
    %3281 = vmatpush1.msra.mxu0 0.0
    %3282 = vmatprep.subr.mxu0 0.0
    %3283 = vmatpush1.msra.mxu0 %v2591
    %3284 = vmatprep.subr.mxu0 0.0
    %3285 = vmatpush1.msra.mxu0 %v2590
    %3286 = vmatprep.subr.mxu0 0.0
    %3287 = vmatpush1.msra.mxu0 %v2589
    %3288 = vmatprep.subr.mxu0 0.0
    %3289 = vmatpush1.msra.mxu0 %v2588
    %3290 = vmatprep.subr.mxu0 0.0
    %3291 = vmatpush2.msra.mxu0 0.0
    %3292 = vmatprep.subr.mxu0 0.0
    %3293 = vmatpush2.msra.mxu0 0.0
    %3294 = vmatprep.subr.mxu0 0.0
    %3295 = vmatpush2.msra.mxu0 0.0
    %3296 = vmatprep.subr.mxu0 0.0
    %3297 = vmatpush2.msra.mxu0 0.0
    %3298 = vmatprep.subr.mxu0 0.0
    %3299 = vmatpush2.msra.mxu0 0.0
    %3300 = vmatprep.subr.mxu0 0.0
    %3301 = vmatpush2.msra.mxu0 0.0
    %3302 = vmatprep.subr.mxu0 0.0
    %3303 = vmatpush2.msra.mxu0 0.0
    %3304 = vmatprep.subr.mxu0 0.0
    %3305 = vmatpush2.msra.mxu0 0.0
    %3306 = vmatprep.subr.mxu0 0.0
    %3307 = vmatpush2.msra.mxu0 0.0
    %3308 = vmatprep.subr.mxu0 0.0
    %3309 = vmatpush2.msra.mxu0 0.0
    %3310 = vmatprep.subr.mxu0 0.0
    %3311 = vmatpush2.msra.mxu0 0.0
    %3312 = vmatprep.subr.mxu0 0.0
    %3313 = vmatpush2.msra.mxu0 0.0
    %3314 = vmatprep.subr.mxu0 0.0
    %3315 = vmatpush2.msra.mxu0 0.0
    %3316 = vmatprep.subr.mxu0 0.0
    %3317 = vmatpush2.msra.mxu0 0.0
    %3318 = vmatprep.subr.mxu0 0.0
    %3319 = vmatpush2.msra.mxu0 0.0
    %3320 = vmatprep.subr.mxu0 0.0
    %3321 = vmatpush2.msra.mxu0 0.0
    %3322 = vmatprep.mubr.f32.mxu0 0.0
    %3323 = vmatmul.mubr.f32.gmra.mxu0 %v3253
    %v3324 = vpop.f32.mrf.mxu0
    %v3325 = vadd.f32 0.0, %v3324
    %v3326 = vpop.f32.mrf.mxu0
    %3327 = vmatprep.mubr.f32.mxu0 0.0
    %3328 = vmatmul.mubr.f32.gmra.mxu0 %v3256
    %v3329 = vpop.f32.mrf.mxu0
    %v3330 = vadd.f32 0.0, %v3329
    %v3331 = vpop.f32.mrf.mxu0
    %3332 = vdwg.mxu0
    %v3334 = vsel %vm412, %v2844, 0
    %v3337 = vsel %vm412, %v2917, 0
    %3339 = vmatprep.subr.mxu0 0.0
    %3340 = vmatpush1.msra.mxu0 0.0
    %3341 = vmatprep.subr.mxu0 0.0
    %3342 = vmatpush1.msra.mxu0 0.0
    %3343 = vmatprep.subr.mxu0 0.0
    %3344 = vmatpush1.msra.mxu0 0.0
    %3345 = vmatprep.subr.mxu0 0.0
    %3346 = vmatpush1.msra.mxu0 0.0
    %3347 = vmatprep.subr.mxu0 0.0
    %3348 = vmatpush1.msra.mxu0 0.0
    %3349 = vmatprep.subr.mxu0 0.0
    %3350 = vmatpush1.msra.mxu0 0.0
    %3351 = vmatprep.subr.mxu0 0.0
    %3352 = vmatpush1.msra.mxu0 0.0
    %3353 = vmatprep.subr.mxu0 0.0
    %3354 = vmatpush1.msra.mxu0 0.0
    %3355 = vmatprep.subr.mxu0 0.0
    %3356 = vmatpush1.msra.mxu0 0.0
    %3357 = vmatprep.subr.mxu0 0.0
    %3358 = vmatpush1.msra.mxu0 0.0
    %3359 = vmatprep.subr.mxu0 0.0
    %3360 = vmatpush1.msra.mxu0 0.0
    %3361 = vmatprep.subr.mxu0 0.0
    %3362 = vmatpush1.msra.mxu0 0.0
    %3363 = vmatprep.subr.mxu0 0.0
    %3364 = vmatpush1.msra.mxu0 %v2587
    %3365 = vmatprep.subr.mxu0 0.0
    %3366 = vmatpush1.msra.mxu0 %v2586
    %3367 = vmatprep.subr.mxu0 0.0
    %3368 = vmatpush1.msra.mxu0 %v2585
    %3369 = vmatprep.subr.mxu0 0.0
    %3370 = vmatpush1.msra.mxu0 %v2584
    %3371 = vmatprep.subr.mxu0 0.0
    %3372 = vmatpush2.msra.mxu0 0.0
    %3373 = vmatprep.subr.mxu0 0.0
    %3374 = vmatpush2.msra.mxu0 0.0
    %3375 = vmatprep.subr.mxu0 0.0
    %3376 = vmatpush2.msra.mxu0 0.0
    %3377 = vmatprep.subr.mxu0 0.0
    %3378 = vmatpush2.msra.mxu0 0.0
    %3379 = vmatprep.subr.mxu0 0.0
    %3380 = vmatpush2.msra.mxu0 0.0
    %3381 = vmatprep.subr.mxu0 0.0
    %3382 = vmatpush2.msra.mxu0 0.0
    %3383 = vmatprep.subr.mxu0 0.0
    %3384 = vmatpush2.msra.mxu0 0.0
    %3385 = vmatprep.subr.mxu0 0.0
    %3386 = vmatpush2.msra.mxu0 0.0
    %3387 = vmatprep.subr.mxu0 0.0
    %3388 = vmatpush2.msra.mxu0 0.0
    %3389 = vmatprep.subr.mxu0 0.0
    %3390 = vmatpush2.msra.mxu0 0.0
    %3391 = vmatprep.subr.mxu0 0.0
    %3392 = vmatpush2.msra.mxu0 0.0
    %3393 = vmatprep.subr.mxu0 0.0
    %3394 = vmatpush2.msra.mxu0 0.0
    %3395 = vmatprep.subr.mxu0 0.0
    %3396 = vmatpush2.msra.mxu0 0.0
    %3397 = vmatprep.subr.mxu0 0.0
    %3398 = vmatpush2.msra.mxu0 0.0
    %3399 = vmatprep.subr.mxu0 0.0
    %3400 = vmatpush2.msra.mxu0 0.0
    %3401 = vmatprep.subr.mxu0 0.0
    %3402 = vmatpush2.msra.mxu0 0.0
    %3403 = vmatprep.mubr.f32.mxu0 0.0
    %3404 = vmatmul.mubr.f32.gmra.mxu0 %v3334
    %v3405 = vpop.f32.mrf.mxu0
    %v3406 = vadd.f32 %v3325, %v3405
    %v3407 = vpop.f32.mrf.mxu0
    %3408 = vmatprep.mubr.f32.mxu0 0.0
    %3409 = vmatmul.mubr.f32.gmra.mxu0 %v3337
    %v3410 = vpop.f32.mrf.mxu0
    %v3411 = vadd.f32 %v3330, %v3410
    %v3412 = vpop.f32.mrf.mxu0
    %3413 = vdwg.mxu0
    %3414 = vrot.lane.b32.xlu0 %v2498, 64
    %v3415 = vpop.permute.xlu0 %3414
    %3416 = vrot.lane.b32.xlu0 %v2500, 64
    %v3417 = vpop.permute.xlu0 %3416
    %v3418 = vsel %vm412, %v3415, 0
    %v3420 = vsel %vm412, %v3417, 0
    %3422 = vmatprep.subr.mxu0 0.0
    %3423 = vmatpush1.xpose.msra.mxu0 0.0
    %3424 = vmatprep.subr.mxu0 0.0
    %3425 = vmatpush1.xpose.msra.mxu0 0.0
    %3426 = vmatprep.subr.mxu0 0.0
    %3427 = vmatpush1.xpose.msra.mxu0 0.0
    %3428 = vmatprep.subr.mxu0 0.0
    %3429 = vmatpush1.xpose.msra.mxu0 0.0
    %3430 = vmatprep.subr.mxu0 0.0
    %3431 = vmatpush1.xpose.msra.mxu0 0.0
    %3432 = vmatprep.subr.mxu0 0.0
    %3433 = vmatpush1.xpose.msra.mxu0 0.0
    %3434 = vmatprep.subr.mxu0 0.0
    %3435 = vmatpush1.xpose.msra.mxu0 0.0
    %3436 = vmatprep.subr.mxu0 0.0
    %3437 = vmatpush1.xpose.msra.mxu0 0.0
    %3438 = vmatprep.subr.mxu0 0.0
    %3439 = vmatpush1.xpose.msra.mxu0 0.0
    %3440 = vmatprep.subr.mxu0 0.0
    %3441 = vmatpush1.xpose.msra.mxu0 0.0
    %3442 = vmatprep.subr.mxu0 0.0
    %3443 = vmatpush1.xpose.msra.mxu0 0.0
    %3444 = vmatprep.subr.mxu0 0.0
    %3445 = vmatpush1.xpose.msra.mxu0 0.0
    %3446 = vmatprep.subr.mxu0 0.0
    %3447 = vmatpush1.xpose.msra.mxu0 0.0
    %3448 = vmatprep.subr.mxu0 0.0
    %3449 = vmatpush1.xpose.msra.mxu0 0.0
    %3450 = vmatprep.subr.mxu0 0.0
    %3451 = vmatpush1.xpose.msra.mxu0 0.0
    %3452 = vmatprep.subr.mxu0 0.0
    %3453 = vmatpush1.xpose.msra.mxu0 %v3420
    %3454 = vmatprep.subr.mxu0 0.0
    %3455 = vmatpush2.xpose.msra.mxu0 0.0
    %3456 = vmatprep.subr.mxu0 0.0
    %3457 = vmatpush2.xpose.msra.mxu0 0.0
    %3458 = vmatprep.subr.mxu0 0.0
    %3459 = vmatpush2.xpose.msra.mxu0 0.0
    %3460 = vmatprep.subr.mxu0 0.0
    %3461 = vmatpush2.xpose.msra.mxu0 0.0
    %3462 = vmatprep.subr.mxu0 0.0
    %3463 = vmatpush2.xpose.msra.mxu0 0.0
    %3464 = vmatprep.subr.mxu0 0.0
    %3465 = vmatpush2.xpose.msra.mxu0 0.0
    %3466 = vmatprep.subr.mxu0 0.0
    %3467 = vmatpush2.xpose.msra.mxu0 0.0
    %3468 = vmatprep.subr.mxu0 0.0
    %3469 = vmatpush2.xpose.msra.mxu0 0.0
    %3470 = vmatprep.subr.mxu0 0.0
    %3471 = vmatpush2.xpose.msra.mxu0 0.0
    %3472 = vmatprep.subr.mxu0 0.0
    %3473 = vmatpush2.xpose.msra.mxu0 0.0
    %3474 = vmatprep.subr.mxu0 0.0
    %3475 = vmatpush2.xpose.msra.mxu0 0.0
    %3476 = vmatprep.subr.mxu0 0.0
    %3477 = vmatpush2.xpose.msra.mxu0 0.0
    %3478 = vmatprep.subr.mxu0 0.0
    %3479 = vmatpush2.xpose.msra.mxu0 0.0
    %3480 = vmatprep.subr.mxu0 0.0
    %3481 = vmatpush2.xpose.msra.mxu0 0.0
    %3482 = vmatprep.subr.mxu0 0.0
    %3483 = vmatpush2.xpose.msra.mxu0 0.0
    %3484 = vmatprep.subr.mxu0 0.0
    %3485 = vmatpush2.xpose.msra.mxu0 0.0
    %3486 = vmatprep.mubr.f32.mxu0 0.0
    %3487 = vmatmul.mubr.f32.gmra.mxu0 %v3418
    %v3488 = vpop.f32.mrf.mxu0
    %v3489 = vadd.f32 0.0, %v3488
    %v3490 = vpop.f32.mrf.mxu0
    %3491 = vdwg.mxu0
    %3492 = vrot.lane.b32.xlu0 %v2504, 64
    %v3493 = vpop.permute.xlu0 %3492
    %3494 = vrot.lane.b32.xlu0 %v2506, 64
    %v3495 = vpop.permute.xlu0 %3494
    %v3496 = vsel %vm412, %v3493, 0
    %v3498 = vsel %vm412, %v3495, 0
    %3500 = vmatprep.subr.mxu0 0.0
    %3501 = vmatpush1.xpose.msra.mxu0 0.0
    %3502 = vmatprep.subr.mxu0 0.0
    %3503 = vmatpush1.xpose.msra.mxu0 0.0
    %3504 = vmatprep.subr.mxu0 0.0
    %3505 = vmatpush1.xpose.msra.mxu0 0.0
    %3506 = vmatprep.subr.mxu0 0.0
    %3507 = vmatpush1.xpose.msra.mxu0 0.0
    %3508 = vmatprep.subr.mxu0 0.0
    %3509 = vmatpush1.xpose.msra.mxu0 0.0
    %3510 = vmatprep.subr.mxu0 0.0
    %3511 = vmatpush1.xpose.msra.mxu0 0.0
    %3512 = vmatprep.subr.mxu0 0.0
    %3513 = vmatpush1.xpose.msra.mxu0 0.0
    %3514 = vmatprep.subr.mxu0 0.0
    %3515 = vmatpush1.xpose.msra.mxu0 0.0
    %3516 = vmatprep.subr.mxu0 0.0
    %3517 = vmatpush1.xpose.msra.mxu0 0.0
    %3518 = vmatprep.subr.mxu0 0.0
    %3519 = vmatpush1.xpose.msra.mxu0 0.0
    %3520 = vmatprep.subr.mxu0 0.0
    %3521 = vmatpush1.xpose.msra.mxu0 0.0
    %3522 = vmatprep.subr.mxu0 0.0
    %3523 = vmatpush1.xpose.msra.mxu0 0.0
    %3524 = vmatprep.subr.mxu0 0.0
    %3525 = vmatpush1.xpose.msra.mxu0 0.0
    %3526 = vmatprep.subr.mxu0 0.0
    %3527 = vmatpush1.xpose.msra.mxu0 0.0
    %3528 = vmatprep.subr.mxu0 0.0
    %3529 = vmatpush1.xpose.msra.mxu0 0.0
    %3530 = vmatprep.subr.mxu0 0.0
    %3531 = vmatpush1.xpose.msra.mxu0 %v3498
    %3532 = vmatprep.subr.mxu0 0.0
    %3533 = vmatpush2.xpose.msra.mxu0 0.0
    %3534 = vmatprep.subr.mxu0 0.0
    %3535 = vmatpush2.xpose.msra.mxu0 0.0
    %3536 = vmatprep.subr.mxu0 0.0
    %3537 = vmatpush2.xpose.msra.mxu0 0.0
    %3538 = vmatprep.subr.mxu0 0.0
    %3539 = vmatpush2.xpose.msra.mxu0 0.0
    %3540 = vmatprep.subr.mxu0 0.0
    %3541 = vmatpush2.xpose.msra.mxu0 0.0
    %3542 = vmatprep.subr.mxu0 0.0
    %3543 = vmatpush2.xpose.msra.mxu0 0.0
    %3544 = vmatprep.subr.mxu0 0.0
    %3545 = vmatpush2.xpose.msra.mxu0 0.0
    %3546 = vmatprep.subr.mxu0 0.0
    %3547 = vmatpush2.xpose.msra.mxu0 0.0
    %3548 = vmatprep.subr.mxu0 0.0
    %3549 = vmatpush2.xpose.msra.mxu0 0.0
    %3550 = vmatprep.subr.mxu0 0.0
    %3551 = vmatpush2.xpose.msra.mxu0 0.0
    %3552 = vmatprep.subr.mxu0 0.0
    %3553 = vmatpush2.xpose.msra.mxu0 0.0
    %3554 = vmatprep.subr.mxu0 0.0
    %3555 = vmatpush2.xpose.msra.mxu0 0.0
    %3556 = vmatprep.subr.mxu0 0.0
    %3557 = vmatpush2.xpose.msra.mxu0 0.0
    %3558 = vmatprep.subr.mxu0 0.0
    %3559 = vmatpush2.xpose.msra.mxu0 0.0
    %3560 = vmatprep.subr.mxu0 0.0
    %3561 = vmatpush2.xpose.msra.mxu0 0.0
    %3562 = vmatprep.subr.mxu0 0.0
    %3563 = vmatpush2.xpose.msra.mxu0 0.0
    %3564 = vmatprep.mubr.f32.mxu0 0.0
    %3565 = vmatmul.mubr.f32.gmra.mxu0 %v3496
    %v3566 = vpop.f32.mrf.mxu0
    %v3567 = vadd.f32 0.0, %v3566
    %v3568 = vpop.f32.mrf.mxu0
    %3569 = vdwg.mxu0
    %v3570 = vsel %vm565, %v3489, -inf
    %3571 = vmax.xlane.f32.xlu0 %v3570
    %v3572 = vpop.xlane.xlu0 %3571
    %v3573 = vsel %vm565, %v3567, -inf
    %3574 = vmax.xlane.f32.xlu0 %v3573
    %v3575 = vpop.xlane.xlu0 %3574
    %v3576 = vsub.f32 %v3489, %v3572
    %v3577 = vsub.f32 %v3567, %v3575
    %v3578 = vmul.f32 %v3576, 1.442695
    %v3579 = vpow.pop %v3578
    %v3580 = vmul.f32 %v3577, 1.442695
    %v3581 = vpow.pop %v3580
    %v3582 = vsel %vm565, %v3579, 0.0
    %3583 = vadd.xlane.f32.xlu0 %v3582
    %v3584 = vpop.xlane.xlu0 %3583
    %v3585 = vsel %vm565, %v3581, 0.0
    %3586 = vadd.xlane.f32.xlu0 %v3585
    %v3587 = vpop.xlane.xlu0 %3586
    %v3588 = vrcp.pop %v3584
    %v3589 = vrcp.pop %v3587
    %v3590 = vmul.f32 %v3579, %v3588
    %v3591 = vmul.f32 %v3581, %v3589
    %3592 = vrot.lane.b32.xlu0 %v2575, 64
    %v3593 = vpop.permute.xlu0 %3592
    %v3596 = vsel %vm565, %v3590, 0
    %3598 = vmatprep.subr.mxu0 0.0
    %3599 = vmatpush1.msra.mxu0 0.0
    %3600 = vmatprep.subr.mxu0 0.0
    %3601 = vmatpush1.msra.mxu0 0.0
    %3602 = vmatprep.subr.mxu0 0.0
    %3603 = vmatpush1.msra.mxu0 0.0
    %3604 = vmatprep.subr.mxu0 0.0
    %3605 = vmatpush1.msra.mxu0 0.0
    %3606 = vmatprep.subr.mxu0 0.0
    %3607 = vmatpush1.msra.mxu0 0.0
    %3608 = vmatprep.subr.mxu0 0.0
    %3609 = vmatpush1.msra.mxu0 0.0
    %3610 = vmatprep.subr.mxu0 0.0
    %3611 = vmatpush1.msra.mxu0 0.0
    %3612 = vmatprep.subr.mxu0 0.0
    %3613 = vmatpush1.msra.mxu0 0.0
    %3614 = vmatprep.subr.mxu0 0.0
    %3615 = vmatpush1.msra.mxu0 0.0
    %3616 = vmatprep.subr.mxu0 0.0
    %3617 = vmatpush1.msra.mxu0 0.0
    %3618 = vmatprep.subr.mxu0 0.0
    %3619 = vmatpush1.msra.mxu0 0.0
    %3620 = vmatprep.subr.mxu0 0.0
    %3621 = vmatpush1.msra.mxu0 0.0
    %3622 = vmatprep.subr.mxu0 0.0
    %3623 = vmatpush1.msra.mxu0 0.0
    %3624 = vmatprep.subr.mxu0 0.0
    %3625 = vmatpush1.msra.mxu0 0.0
    %3626 = vmatprep.subr.mxu0 0.0
    %3627 = vmatpush1.msra.mxu0 0.0
    %3628 = vmatprep.subr.mxu0 0.0
    %3629 = vmatpush1.msra.mxu0 %v3593
    %3630 = vmatprep.subr.mxu0 0.0
    %3631 = vmatpush2.msra.mxu0 0.0
    %3632 = vmatprep.subr.mxu0 0.0
    %3633 = vmatpush2.msra.mxu0 0.0
    %3634 = vmatprep.subr.mxu0 0.0
    %3635 = vmatpush2.msra.mxu0 0.0
    %3636 = vmatprep.subr.mxu0 0.0
    %3637 = vmatpush2.msra.mxu0 0.0
    %3638 = vmatprep.subr.mxu0 0.0
    %3639 = vmatpush2.msra.mxu0 0.0
    %3640 = vmatprep.subr.mxu0 0.0
    %3641 = vmatpush2.msra.mxu0 0.0
    %3642 = vmatprep.subr.mxu0 0.0
    %3643 = vmatpush2.msra.mxu0 0.0
    %3644 = vmatprep.subr.mxu0 0.0
    %3645 = vmatpush2.msra.mxu0 0.0
    %3646 = vmatprep.subr.mxu0 0.0
    %3647 = vmatpush2.msra.mxu0 0.0
    %3648 = vmatprep.subr.mxu0 0.0
    %3649 = vmatpush2.msra.mxu0 0.0
    %3650 = vmatprep.subr.mxu0 0.0
    %3651 = vmatpush2.msra.mxu0 0.0
    %3652 = vmatprep.subr.mxu0 0.0
    %3653 = vmatpush2.msra.mxu0 0.0
    %3654 = vmatprep.subr.mxu0 0.0
    %3655 = vmatpush2.msra.mxu0 0.0
    %3656 = vmatprep.subr.mxu0 0.0
    %3657 = vmatpush2.msra.mxu0 0.0
    %3658 = vmatprep.subr.mxu0 0.0
    %3659 = vmatpush2.msra.mxu0 0.0
    %3660 = vmatprep.subr.mxu0 0.0
    %3661 = vmatpush2.msra.mxu0 0.0
    %3662 = vmatprep.mubr.f32.mxu0 0.0
    %3663 = vmatmul.mubr.f32.gmra.mxu0 %v3596
    %v3664 = vpop.f32.mrf.mxu0
    %v3665 = vadd.f32 0.0, %v3664
    %v3666 = vpop.f32.mrf.mxu0
    %3667 = vdwg.mxu0
    %3668 = vrot.lane.b32.xlu0 %v2580, 64
    %v3669 = vpop.permute.xlu0 %3668
    %v3672 = vsel %vm565, %v3591, 0
    %3674 = vmatprep.subr.mxu0 0.0
    %3675 = vmatpush1.msra.mxu0 0.0
    %3676 = vmatprep.subr.mxu0 0.0
    %3677 = vmatpush1.msra.mxu0 0.0
    %3678 = vmatprep.subr.mxu0 0.0
    %3679 = vmatpush1.msra.mxu0 0.0
    %3680 = vmatprep.subr.mxu0 0.0
    %3681 = vmatpush1.msra.mxu0 0.0
    %3682 = vmatprep.subr.mxu0 0.0
    %3683 = vmatpush1.msra.mxu0 0.0
    %3684 = vmatprep.subr.mxu0 0.0
    %3685 = vmatpush1.msra.mxu0 0.0
    %3686 = vmatprep.subr.mxu0 0.0
    %3687 = vmatpush1.msra.mxu0 0.0
    %3688 = vmatprep.subr.mxu0 0.0
    %3689 = vmatpush1.msra.mxu0 0.0
    %3690 = vmatprep.subr.mxu0 0.0
    %3691 = vmatpush1.msra.mxu0 0.0
    %3692 = vmatprep.subr.mxu0 0.0
    %3693 = vmatpush1.msra.mxu0 0.0
    %3694 = vmatprep.subr.mxu0 0.0
    %3695 = vmatpush1.msra.mxu0 0.0
    %3696 = vmatprep.subr.mxu0 0.0
    %3697 = vmatpush1.msra.mxu0 0.0
    %3698 = vmatprep.subr.mxu0 0.0
    %3699 = vmatpush1.msra.mxu0 0.0
    %3700 = vmatprep.subr.mxu0 0.0
    %3701 = vmatpush1.msra.mxu0 0.0
    %3702 = vmatprep.subr.mxu0 0.0
    %3703 = vmatpush1.msra.mxu0 0.0
    %3704 = vmatprep.subr.mxu0 0.0
    %3705 = vmatpush1.msra.mxu0 %v3669
    %3706 = vmatprep.subr.mxu0 0.0
    %3707 = vmatpush2.msra.mxu0 0.0
    %3708 = vmatprep.subr.mxu0 0.0
    %3709 = vmatpush2.msra.mxu0 0.0
    %3710 = vmatprep.subr.mxu0 0.0
    %3711 = vmatpush2.msra.mxu0 0.0
    %3712 = vmatprep.subr.mxu0 0.0
    %3713 = vmatpush2.msra.mxu0 0.0
    %3714 = vmatprep.subr.mxu0 0.0
    %3715 = vmatpush2.msra.mxu0 0.0
    %3716 = vmatprep.subr.mxu0 0.0
    %3717 = vmatpush2.msra.mxu0 0.0
    %3718 = vmatprep.subr.mxu0 0.0
    %3719 = vmatpush2.msra.mxu0 0.0
    %3720 = vmatprep.subr.mxu0 0.0
    %3721 = vmatpush2.msra.mxu0 0.0
    %3722 = vmatprep.subr.mxu0 0.0
    %3723 = vmatpush2.msra.mxu0 0.0
    %3724 = vmatprep.subr.mxu0 0.0
    %3725 = vmatpush2.msra.mxu0 0.0
    %3726 = vmatprep.subr.mxu0 0.0
    %3727 = vmatpush2.msra.mxu0 0.0
    %3728 = vmatprep.subr.mxu0 0.0
    %3729 = vmatpush2.msra.mxu0 0.0
    %3730 = vmatprep.subr.mxu0 0.0
    %3731 = vmatpush2.msra.mxu0 0.0
    %3732 = vmatprep.subr.mxu0 0.0
    %3733 = vmatpush2.msra.mxu0 0.0
    %3734 = vmatprep.subr.mxu0 0.0
    %3735 = vmatpush2.msra.mxu0 0.0
    %3736 = vmatprep.subr.mxu0 0.0
    %3737 = vmatpush2.msra.mxu0 0.0
    %3738 = vmatprep.mubr.f32.mxu0 0.0
    %3739 = vmatmul.mubr.f32.gmra.mxu0 %v3672
    %v3740 = vpop.f32.mrf.mxu0
    %v3741 = vadd.f32 0.0, %v3740
    %v3742 = vpop.f32.mrf.mxu0
    %3743 = vdwg.mxu0
    %v3745 = vsel %vm412, %v3665, 0
    %v3748 = vsel %vm412, %v3741, 0
    %3750 = vmatprep.subr.mxu0 0.0
    %3751 = vmatpush1.msra.mxu0 0.0
    %3752 = vmatprep.subr.mxu0 0.0
    %3753 = vmatpush1.msra.mxu0 0.0
    %3754 = vmatprep.subr.mxu0 0.0
    %3755 = vmatpush1.msra.mxu0 0.0
    %3756 = vmatprep.subr.mxu0 0.0
    %3757 = vmatpush1.msra.mxu0 0.0
    %3758 = vmatprep.subr.mxu0 0.0
    %3759 = vmatpush1.msra.mxu0 0.0
    %3760 = vmatprep.subr.mxu0 0.0
    %3761 = vmatpush1.msra.mxu0 0.0
    %3762 = vmatprep.subr.mxu0 0.0
    %3763 = vmatpush1.msra.mxu0 0.0
    %3764 = vmatprep.subr.mxu0 0.0
    %3765 = vmatpush1.msra.mxu0 0.0
    %3766 = vmatprep.subr.mxu0 0.0
    %3767 = vmatpush1.msra.mxu0 0.0
    %3768 = vmatprep.subr.mxu0 0.0
    %3769 = vmatpush1.msra.mxu0 0.0
    %3770 = vmatprep.subr.mxu0 0.0
    %3771 = vmatpush1.msra.mxu0 0.0
    %3772 = vmatprep.subr.mxu0 0.0
    %3773 = vmatpush1.msra.mxu0 0.0
    %3774 = vmatprep.subr.mxu0 0.0
    %3775 = vmatpush1.msra.mxu0 %v2595
    %3776 = vmatprep.subr.mxu0 0.0
    %3777 = vmatpush1.msra.mxu0 %v2594
    %3778 = vmatprep.subr.mxu0 0.0
    %3779 = vmatpush1.msra.mxu0 %v2593
    %3780 = vmatprep.subr.mxu0 0.0
    %3781 = vmatpush1.msra.mxu0 %v2592
    %3782 = vmatprep.subr.mxu0 0.0
    %3783 = vmatpush2.msra.mxu0 0.0
    %3784 = vmatprep.subr.mxu0 0.0
    %3785 = vmatpush2.msra.mxu0 0.0
    %3786 = vmatprep.subr.mxu0 0.0
    %3787 = vmatpush2.msra.mxu0 0.0
    %3788 = vmatprep.subr.mxu0 0.0
    %3789 = vmatpush2.msra.mxu0 0.0
    %3790 = vmatprep.subr.mxu0 0.0
    %3791 = vmatpush2.msra.mxu0 0.0
    %3792 = vmatprep.subr.mxu0 0.0
    %3793 = vmatpush2.msra.mxu0 0.0
    %3794 = vmatprep.subr.mxu0 0.0
    %3795 = vmatpush2.msra.mxu0 0.0
    %3796 = vmatprep.subr.mxu0 0.0
    %3797 = vmatpush2.msra.mxu0 0.0
    %3798 = vmatprep.subr.mxu0 0.0
    %3799 = vmatpush2.msra.mxu0 0.0
    %3800 = vmatprep.subr.mxu0 0.0
    %3801 = vmatpush2.msra.mxu0 0.0
    %3802 = vmatprep.subr.mxu0 0.0
    %3803 = vmatpush2.msra.mxu0 0.0
    %3804 = vmatprep.subr.mxu0 0.0
    %3805 = vmatpush2.msra.mxu0 0.0
    %3806 = vmatprep.subr.mxu0 0.0
    %3807 = vmatpush2.msra.mxu0 0.0
    %3808 = vmatprep.subr.mxu0 0.0
    %3809 = vmatpush2.msra.mxu0 0.0
    %3810 = vmatprep.subr.mxu0 0.0
    %3811 = vmatpush2.msra.mxu0 0.0
    %3812 = vmatprep.subr.mxu0 0.0
    %3813 = vmatpush2.msra.mxu0 0.0
    %3814 = vmatprep.mubr.f32.mxu0 0.0
    %3815 = vmatmul.mubr.f32.gmra.mxu0 %v3745
    %v3816 = vpop.f32.mrf.mxu0
    %v3817 = vadd.f32 0.0, %v3816
    %v3818 = vpop.f32.mrf.mxu0
    %3819 = vmatprep.mubr.f32.mxu0 0.0
    %3820 = vmatmul.mubr.f32.gmra.mxu0 %v3748
    %v3821 = vpop.f32.mrf.mxu0
    %v3822 = vadd.f32 0.0, %v3821
    %v3823 = vpop.f32.mrf.mxu0
    %3824 = vdwg.mxu0
    %v3825 = vadd.f32 %v3406, %v3817
    %v3826 = vadd.f32 %v3411, %v3822
    %3827 = vrot.lane.b32.xlu0 %v2498, 32
    %v3828 = vpop.permute.xlu0 %3827
    %3829 = vrot.lane.b32.xlu0 %v2500, 32
    %v3830 = vpop.permute.xlu0 %3829
    %v3831 = vsel %vm412, %v3828, 0
    %v3833 = vsel %vm412, %v3830, 0
    %3835 = vmatprep.subr.mxu0 0.0
    %3836 = vmatpush1.xpose.msra.mxu0 0.0
    %3837 = vmatprep.subr.mxu0 0.0
    %3838 = vmatpush1.xpose.msra.mxu0 0.0
    %3839 = vmatprep.subr.mxu0 0.0
    %3840 = vmatpush1.xpose.msra.mxu0 0.0
    %3841 = vmatprep.subr.mxu0 0.0
    %3842 = vmatpush1.xpose.msra.mxu0 0.0
    %3843 = vmatprep.subr.mxu0 0.0
    %3844 = vmatpush1.xpose.msra.mxu0 0.0
    %3845 = vmatprep.subr.mxu0 0.0
    %3846 = vmatpush1.xpose.msra.mxu0 0.0
    %3847 = vmatprep.subr.mxu0 0.0
    %3848 = vmatpush1.xpose.msra.mxu0 0.0
    %3849 = vmatprep.subr.mxu0 0.0
    %3850 = vmatpush1.xpose.msra.mxu0 0.0
    %3851 = vmatprep.subr.mxu0 0.0
    %3852 = vmatpush1.xpose.msra.mxu0 0.0
    %3853 = vmatprep.subr.mxu0 0.0
    %3854 = vmatpush1.xpose.msra.mxu0 0.0
    %3855 = vmatprep.subr.mxu0 0.0
    %3856 = vmatpush1.xpose.msra.mxu0 0.0
    %3857 = vmatprep.subr.mxu0 0.0
    %3858 = vmatpush1.xpose.msra.mxu0 0.0
    %3859 = vmatprep.subr.mxu0 0.0
    %3860 = vmatpush1.xpose.msra.mxu0 0.0
    %3861 = vmatprep.subr.mxu0 0.0
    %3862 = vmatpush1.xpose.msra.mxu0 0.0
    %3863 = vmatprep.subr.mxu0 0.0
    %3864 = vmatpush1.xpose.msra.mxu0 0.0
    %3865 = vmatprep.subr.mxu0 0.0
    %3866 = vmatpush1.xpose.msra.mxu0 %v3833
    %3867 = vmatprep.subr.mxu0 0.0
    %3868 = vmatpush2.xpose.msra.mxu0 0.0
    %3869 = vmatprep.subr.mxu0 0.0
    %3870 = vmatpush2.xpose.msra.mxu0 0.0
    %3871 = vmatprep.subr.mxu0 0.0
    %3872 = vmatpush2.xpose.msra.mxu0 0.0
    %3873 = vmatprep.subr.mxu0 0.0
    %3874 = vmatpush2.xpose.msra.mxu0 0.0
    %3875 = vmatprep.subr.mxu0 0.0
    %3876 = vmatpush2.xpose.msra.mxu0 0.0
    %3877 = vmatprep.subr.mxu0 0.0
    %3878 = vmatpush2.xpose.msra.mxu0 0.0
    %3879 = vmatprep.subr.mxu0 0.0
    %3880 = vmatpush2.xpose.msra.mxu0 0.0
    %3881 = vmatprep.subr.mxu0 0.0
    %3882 = vmatpush2.xpose.msra.mxu0 0.0
    %3883 = vmatprep.subr.mxu0 0.0
    %3884 = vmatpush2.xpose.msra.mxu0 0.0
    %3885 = vmatprep.subr.mxu0 0.0
    %3886 = vmatpush2.xpose.msra.mxu0 0.0
    %3887 = vmatprep.subr.mxu0 0.0
    %3888 = vmatpush2.xpose.msra.mxu0 0.0
    %3889 = vmatprep.subr.mxu0 0.0
    %3890 = vmatpush2.xpose.msra.mxu0 0.0
    %3891 = vmatprep.subr.mxu0 0.0
    %3892 = vmatpush2.xpose.msra.mxu0 0.0
    %3893 = vmatprep.subr.mxu0 0.0
    %3894 = vmatpush2.xpose.msra.mxu0 0.0
    %3895 = vmatprep.subr.mxu0 0.0
    %3896 = vmatpush2.xpose.msra.mxu0 0.0
    %3897 = vmatprep.subr.mxu0 0.0
    %3898 = vmatpush2.xpose.msra.mxu0 0.0
    %3899 = vmatprep.mubr.f32.mxu0 0.0
    %3900 = vmatmul.mubr.f32.gmra.mxu0 %v3831
    %v3901 = vpop.f32.mrf.mxu0
    %v3902 = vadd.f32 0.0, %v3901
    %v3903 = vpop.f32.mrf.mxu0
    %3904 = vdwg.mxu0
    %3905 = vrot.lane.b32.xlu0 %v2504, 32
    %v3906 = vpop.permute.xlu0 %3905
    %3907 = vrot.lane.b32.xlu0 %v2506, 32
    %v3908 = vpop.permute.xlu0 %3907
    %v3909 = vsel %vm412, %v3906, 0
    %v3911 = vsel %vm412, %v3908, 0
    %3913 = vmatprep.subr.mxu0 0.0
    %3914 = vmatpush1.xpose.msra.mxu0 0.0
    %3915 = vmatprep.subr.mxu0 0.0
    %3916 = vmatpush1.xpose.msra.mxu0 0.0
    %3917 = vmatprep.subr.mxu0 0.0
    %3918 = vmatpush1.xpose.msra.mxu0 0.0
    %3919 = vmatprep.subr.mxu0 0.0
    %3920 = vmatpush1.xpose.msra.mxu0 0.0
    %3921 = vmatprep.subr.mxu0 0.0
    %3922 = vmatpush1.xpose.msra.mxu0 0.0
    %3923 = vmatprep.subr.mxu0 0.0
    %3924 = vmatpush1.xpose.msra.mxu0 0.0
    %3925 = vmatprep.subr.mxu0 0.0
    %3926 = vmatpush1.xpose.msra.mxu0 0.0
    %3927 = vmatprep.subr.mxu0 0.0
    %3928 = vmatpush1.xpose.msra.mxu0 0.0
    %3929 = vmatprep.subr.mxu0 0.0
    %3930 = vmatpush1.xpose.msra.mxu0 0.0
    %3931 = vmatprep.subr.mxu0 0.0
    %3932 = vmatpush1.xpose.msra.mxu0 0.0
    %3933 = vmatprep.subr.mxu0 0.0
    %3934 = vmatpush1.xpose.msra.mxu0 0.0
    %3935 = vmatprep.subr.mxu0 0.0
    %3936 = vmatpush1.xpose.msra.mxu0 0.0
    %3937 = vmatprep.subr.mxu0 0.0
    %3938 = vmatpush1.xpose.msra.mxu0 0.0
    %3939 = vmatprep.subr.mxu0 0.0
    %3940 = vmatpush1.xpose.msra.mxu0 0.0
    %3941 = vmatprep.subr.mxu0 0.0
    %3942 = vmatpush1.xpose.msra.mxu0 0.0
    %3943 = vmatprep.subr.mxu0 0.0
    %3944 = vmatpush1.xpose.msra.mxu0 %v3911
    %3945 = vmatprep.subr.mxu0 0.0
    %3946 = vmatpush2.xpose.msra.mxu0 0.0
    %3947 = vmatprep.subr.mxu0 0.0
    %3948 = vmatpush2.xpose.msra.mxu0 0.0
    %3949 = vmatprep.subr.mxu0 0.0
    %3950 = vmatpush2.xpose.msra.mxu0 0.0
    %3951 = vmatprep.subr.mxu0 0.0
    %3952 = vmatpush2.xpose.msra.mxu0 0.0
    %3953 = vmatprep.subr.mxu0 0.0
    %3954 = vmatpush2.xpose.msra.mxu0 0.0
    %3955 = vmatprep.subr.mxu0 0.0
    %3956 = vmatpush2.xpose.msra.mxu0 0.0
    %3957 = vmatprep.subr.mxu0 0.0
    %3958 = vmatpush2.xpose.msra.mxu0 0.0
    %3959 = vmatprep.subr.mxu0 0.0
    %3960 = vmatpush2.xpose.msra.mxu0 0.0
    %3961 = vmatprep.subr.mxu0 0.0
    %3962 = vmatpush2.xpose.msra.mxu0 0.0
    %3963 = vmatprep.subr.mxu0 0.0
    %3964 = vmatpush2.xpose.msra.mxu0 0.0
    %3965 = vmatprep.subr.mxu0 0.0
    %3966 = vmatpush2.xpose.msra.mxu0 0.0
    %3967 = vmatprep.subr.mxu0 0.0
    %3968 = vmatpush2.xpose.msra.mxu0 0.0
    %3969 = vmatprep.subr.mxu0 0.0
    %3970 = vmatpush2.xpose.msra.mxu0 0.0
    %3971 = vmatprep.subr.mxu0 0.0
    %3972 = vmatpush2.xpose.msra.mxu0 0.0
    %3973 = vmatprep.subr.mxu0 0.0
    %3974 = vmatpush2.xpose.msra.mxu0 0.0
    %3975 = vmatprep.subr.mxu0 0.0
    %3976 = vmatpush2.xpose.msra.mxu0 0.0
    %3977 = vmatprep.mubr.f32.mxu0 0.0
    %3978 = vmatmul.mubr.f32.gmra.mxu0 %v3909
    %v3979 = vpop.f32.mrf.mxu0
    %v3980 = vadd.f32 0.0, %v3979
    %v3981 = vpop.f32.mrf.mxu0
    %3982 = vdwg.mxu0
    %v3983 = vsel %vm565, %v3902, -inf
    %3984 = vmax.xlane.f32.xlu0 %v3983
    %v3985 = vpop.xlane.xlu0 %3984
    %v3986 = vsel %vm565, %v3980, -inf
    %3987 = vmax.xlane.f32.xlu0 %v3986
    %v3988 = vpop.xlane.xlu0 %3987
    %v3989 = vsub.f32 %v3902, %v3985
    %v3990 = vsub.f32 %v3980, %v3988
    %v3991 = vmul.f32 %v3989, 1.442695
    %v3992 = vpow.pop %v3991
    %v3993 = vmul.f32 %v3990, 1.442695
    %v3994 = vpow.pop %v3993
    %v3995 = vsel %vm565, %v3992, 0.0
    %3996 = vadd.xlane.f32.xlu0 %v3995
    %v3997 = vpop.xlane.xlu0 %3996
    %v3998 = vsel %vm565, %v3994, 0.0
    %3999 = vadd.xlane.f32.xlu0 %v3998
    %v4000 = vpop.xlane.xlu0 %3999
    %v4001 = vrcp.pop %v3997
    %v4002 = vrcp.pop %v4000
    %v4003 = vmul.f32 %v3992, %v4001
    %v4004 = vmul.f32 %v3994, %v4002
    %4005 = vrot.lane.b32.xlu0 %v2575, 32
    %v4006 = vpop.permute.xlu0 %4005
    %v4009 = vsel %vm565, %v4003, 0
    %4011 = vmatprep.subr.mxu0 0.0
    %4012 = vmatpush1.msra.mxu0 0.0
    %4013 = vmatprep.subr.mxu0 0.0
    %4014 = vmatpush1.msra.mxu0 0.0
    %4015 = vmatprep.subr.mxu0 0.0
    %4016 = vmatpush1.msra.mxu0 0.0
    %4017 = vmatprep.subr.mxu0 0.0
    %4018 = vmatpush1.msra.mxu0 0.0
    %4019 = vmatprep.subr.mxu0 0.0
    %4020 = vmatpush1.msra.mxu0 0.0
    %4021 = vmatprep.subr.mxu0 0.0
    %4022 = vmatpush1.msra.mxu0 0.0
    %4023 = vmatprep.subr.mxu0 0.0
    %4024 = vmatpush1.msra.mxu0 0.0
    %4025 = vmatprep.subr.mxu0 0.0
    %4026 = vmatpush1.msra.mxu0 0.0
    %4027 = vmatprep.subr.mxu0 0.0
    %4028 = vmatpush1.msra.mxu0 0.0
    %4029 = vmatprep.subr.mxu0 0.0
    %4030 = vmatpush1.msra.mxu0 0.0
    %4031 = vmatprep.subr.mxu0 0.0
    %4032 = vmatpush1.msra.mxu0 0.0
    %4033 = vmatprep.subr.mxu0 0.0
    %4034 = vmatpush1.msra.mxu0 0.0
    %4035 = vmatprep.subr.mxu0 0.0
    %4036 = vmatpush1.msra.mxu0 0.0
    %4037 = vmatprep.subr.mxu0 0.0
    %4038 = vmatpush1.msra.mxu0 0.0
    %4039 = vmatprep.subr.mxu0 0.0
    %4040 = vmatpush1.msra.mxu0 0.0
    %4041 = vmatprep.subr.mxu0 0.0
    %4042 = vmatpush1.msra.mxu0 %v4006
    %4043 = vmatprep.subr.mxu0 0.0
    %4044 = vmatpush2.msra.mxu0 0.0
    %4045 = vmatprep.subr.mxu0 0.0
    %4046 = vmatpush2.msra.mxu0 0.0
    %4047 = vmatprep.subr.mxu0 0.0
    %4048 = vmatpush2.msra.mxu0 0.0
    %4049 = vmatprep.subr.mxu0 0.0
    %4050 = vmatpush2.msra.mxu0 0.0
    %4051 = vmatprep.subr.mxu0 0.0
    %4052 = vmatpush2.msra.mxu0 0.0
    %4053 = vmatprep.subr.mxu0 0.0
    %4054 = vmatpush2.msra.mxu0 0.0
    %4055 = vmatprep.subr.mxu0 0.0
    %4056 = vmatpush2.msra.mxu0 0.0
    %4057 = vmatprep.subr.mxu0 0.0
    %4058 = vmatpush2.msra.mxu0 0.0
    %4059 = vmatprep.subr.mxu0 0.0
    %4060 = vmatpush2.msra.mxu0 0.0
    %4061 = vmatprep.subr.mxu0 0.0
    %4062 = vmatpush2.msra.mxu0 0.0
    %4063 = vmatprep.subr.mxu0 0.0
    %4064 = vmatpush2.msra.mxu0 0.0
    %4065 = vmatprep.subr.mxu0 0.0
    %4066 = vmatpush2.msra.mxu0 0.0
    %4067 = vmatprep.subr.mxu0 0.0
    %4068 = vmatpush2.msra.mxu0 0.0
    %4069 = vmatprep.subr.mxu0 0.0
    %4070 = vmatpush2.msra.mxu0 0.0
    %4071 = vmatprep.subr.mxu0 0.0
    %4072 = vmatpush2.msra.mxu0 0.0
    %4073 = vmatprep.subr.mxu0 0.0
    %4074 = vmatpush2.msra.mxu0 0.0
    %4075 = vmatprep.mubr.f32.mxu0 0.0
    %4076 = vmatmul.mubr.f32.gmra.mxu0 %v4009
    %v4077 = vpop.f32.mrf.mxu0
    %v4078 = vadd.f32 0.0, %v4077
    %v4079 = vpop.f32.mrf.mxu0
    %4080 = vdwg.mxu0
    %4081 = vrot.lane.b32.xlu0 %v2580, 32
    %v4082 = vpop.permute.xlu0 %4081
    %v4085 = vsel %vm565, %v4004, 0
    %4087 = vmatprep.subr.mxu0 0.0
    %4088 = vmatpush1.msra.mxu0 0.0
    %4089 = vmatprep.subr.mxu0 0.0
    %4090 = vmatpush1.msra.mxu0 0.0
    %4091 = vmatprep.subr.mxu0 0.0
    %4092 = vmatpush1.msra.mxu0 0.0
    %4093 = vmatprep.subr.mxu0 0.0
    %4094 = vmatpush1.msra.mxu0 0.0
    %4095 = vmatprep.subr.mxu0 0.0
    %4096 = vmatpush1.msra.mxu0 0.0
    %4097 = vmatprep.subr.mxu0 0.0
    %4098 = vmatpush1.msra.mxu0 0.0
    %4099 = vmatprep.subr.mxu0 0.0
    %4100 = vmatpush1.msra.mxu0 0.0
    %4101 = vmatprep.subr.mxu0 0.0
    %4102 = vmatpush1.msra.mxu0 0.0
    %4103 = vmatprep.subr.mxu0 0.0
    %4104 = vmatpush1.msra.mxu0 0.0
    %4105 = vmatprep.subr.mxu0 0.0
    %4106 = vmatpush1.msra.mxu0 0.0
    %4107 = vmatprep.subr.mxu0 0.0
    %4108 = vmatpush1.msra.mxu0 0.0
    %4109 = vmatprep.subr.mxu0 0.0
    %4110 = vmatpush1.msra.mxu0 0.0
    %4111 = vmatprep.subr.mxu0 0.0
    %4112 = vmatpush1.msra.mxu0 0.0
    %4113 = vmatprep.subr.mxu0 0.0
    %4114 = vmatpush1.msra.mxu0 0.0
    %4115 = vmatprep.subr.mxu0 0.0
    %4116 = vmatpush1.msra.mxu0 0.0
    %4117 = vmatprep.subr.mxu0 0.0
    %4118 = vmatpush1.msra.mxu0 %v4082
    %4119 = vmatprep.subr.mxu0 0.0
    %4120 = vmatpush2.msra.mxu0 0.0
    %4121 = vmatprep.subr.mxu0 0.0
    %4122 = vmatpush2.msra.mxu0 0.0
    %4123 = vmatprep.subr.mxu0 0.0
    %4124 = vmatpush2.msra.mxu0 0.0
    %4125 = vmatprep.subr.mxu0 0.0
    %4126 = vmatpush2.msra.mxu0 0.0
    %4127 = vmatprep.subr.mxu0 0.0
    %4128 = vmatpush2.msra.mxu0 0.0
    %4129 = vmatprep.subr.mxu0 0.0
    %4130 = vmatpush2.msra.mxu0 0.0
    %4131 = vmatprep.subr.mxu0 0.0
    %4132 = vmatpush2.msra.mxu0 0.0
    %4133 = vmatprep.subr.mxu0 0.0
    %4134 = vmatpush2.msra.mxu0 0.0
    %4135 = vmatprep.subr.mxu0 0.0
    %4136 = vmatpush2.msra.mxu0 0.0
    %4137 = vmatprep.subr.mxu0 0.0
    %4138 = vmatpush2.msra.mxu0 0.0
    %4139 = vmatprep.subr.mxu0 0.0
    %4140 = vmatpush2.msra.mxu0 0.0
    %4141 = vmatprep.subr.mxu0 0.0
    %4142 = vmatpush2.msra.mxu0 0.0
    %4143 = vmatprep.subr.mxu0 0.0
    %4144 = vmatpush2.msra.mxu0 0.0
    %4145 = vmatprep.subr.mxu0 0.0
    %4146 = vmatpush2.msra.mxu0 0.0
    %4147 = vmatprep.subr.mxu0 0.0
    %4148 = vmatpush2.msra.mxu0 0.0
    %4149 = vmatprep.subr.mxu0 0.0
    %4150 = vmatpush2.msra.mxu0 0.0
    %4151 = vmatprep.mubr.f32.mxu0 0.0
    %4152 = vmatmul.mubr.f32.gmra.mxu0 %v4085
    %v4153 = vpop.f32.mrf.mxu0
    %v4154 = vadd.f32 0.0, %v4153
    %v4155 = vpop.f32.mrf.mxu0
    %4156 = vdwg.mxu0
    %v4158 = vsel %vm412, %v4078, 0
    %v4161 = vsel %vm412, %v4154, 0
    %4163 = vmatprep.subr.mxu0 0.0
    %4164 = vmatpush1.msra.mxu0 0.0
    %4165 = vmatprep.subr.mxu0 0.0
    %4166 = vmatpush1.msra.mxu0 0.0
    %4167 = vmatprep.subr.mxu0 0.0
    %4168 = vmatpush1.msra.mxu0 0.0
    %4169 = vmatprep.subr.mxu0 0.0
    %4170 = vmatpush1.msra.mxu0 0.0
    %4171 = vmatprep.subr.mxu0 0.0
    %4172 = vmatpush1.msra.mxu0 0.0
    %4173 = vmatprep.subr.mxu0 0.0
    %4174 = vmatpush1.msra.mxu0 0.0
    %4175 = vmatprep.subr.mxu0 0.0
    %4176 = vmatpush1.msra.mxu0 0.0
    %4177 = vmatprep.subr.mxu0 0.0
    %4178 = vmatpush1.msra.mxu0 0.0
    %4179 = vmatprep.subr.mxu0 0.0
    %4180 = vmatpush1.msra.mxu0 0.0
    %4181 = vmatprep.subr.mxu0 0.0
    %4182 = vmatpush1.msra.mxu0 0.0
    %4183 = vmatprep.subr.mxu0 0.0
    %4184 = vmatpush1.msra.mxu0 0.0
    %4185 = vmatprep.subr.mxu0 0.0
    %4186 = vmatpush1.msra.mxu0 0.0
    %4187 = vmatprep.subr.mxu0 0.0
    %4188 = vmatpush1.msra.mxu0 %v2599
    %4189 = vmatprep.subr.mxu0 0.0
    %4190 = vmatpush1.msra.mxu0 %v2598
    %4191 = vmatprep.subr.mxu0 0.0
    %4192 = vmatpush1.msra.mxu0 %v2597
    %4193 = vmatprep.subr.mxu0 0.0
    %4194 = vmatpush1.msra.mxu0 %v2596
    %4195 = vmatprep.subr.mxu0 0.0
    %4196 = vmatpush2.msra.mxu0 0.0
    %4197 = vmatprep.subr.mxu0 0.0
    %4198 = vmatpush2.msra.mxu0 0.0
    %4199 = vmatprep.subr.mxu0 0.0
    %4200 = vmatpush2.msra.mxu0 0.0
    %4201 = vmatprep.subr.mxu0 0.0
    %4202 = vmatpush2.msra.mxu0 0.0
    %4203 = vmatprep.subr.mxu0 0.0
    %4204 = vmatpush2.msra.mxu0 0.0
    %4205 = vmatprep.subr.mxu0 0.0
    %4206 = vmatpush2.msra.mxu0 0.0
    %4207 = vmatprep.subr.mxu0 0.0
    %4208 = vmatpush2.msra.mxu0 0.0
    %4209 = vmatprep.subr.mxu0 0.0
    %4210 = vmatpush2.msra.mxu0 0.0
    %4211 = vmatprep.subr.mxu0 0.0
    %4212 = vmatpush2.msra.mxu0 0.0
    %4213 = vmatprep.subr.mxu0 0.0
    %4214 = vmatpush2.msra.mxu0 0.0
    %4215 = vmatprep.subr.mxu0 0.0
    %4216 = vmatpush2.msra.mxu0 0.0
    %4217 = vmatprep.subr.mxu0 0.0
    %4218 = vmatpush2.msra.mxu0 0.0
    %4219 = vmatprep.subr.mxu0 0.0
    %4220 = vmatpush2.msra.mxu0 0.0
    %4221 = vmatprep.subr.mxu0 0.0
    %4222 = vmatpush2.msra.mxu0 0.0
    %4223 = vmatprep.subr.mxu0 0.0
    %4224 = vmatpush2.msra.mxu0 0.0
    %4225 = vmatprep.subr.mxu0 0.0
    %4226 = vmatpush2.msra.mxu0 0.0
    %4227 = vmatprep.mubr.f32.mxu0 0.0
    %4228 = vmatmul.mubr.f32.gmra.mxu0 %v4158
    %v4229 = vpop.f32.mrf.mxu0
    %v4230 = vadd.f32 0.0, %v4229
    %v4231 = vpop.f32.mrf.mxu0
    %4232 = vmatprep.mubr.f32.mxu0 0.0
    %4233 = vmatmul.mubr.f32.gmra.mxu0 %v4161
    %v4234 = vpop.f32.mrf.mxu0
    %v4235 = vadd.f32 0.0, %v4234
    %v4236 = vpop.f32.mrf.mxu0
    %4237 = vdwg.mxu0
    %v4238 = vadd.f32 %v3825, %v4230
    %v4239 = vadd.f32 %v3826, %v4235
    %v4240 = vadd.f32 %v2380, %v4238
    %v4241 = vadd.f32 %v2381, %v4239
    %s4242 = scalar_lea.vmem %s5, 1
    %v4243 = vld [vmem:[%s4242] sm:$0x1]
    %s4244 = scalar_lea.vmem %s6, 1
    %v4245 = vld [vmem:[%s4244] sm:$0x1]
    %v4246 = vadd.f32 %v4240, %v4241
    %v4247 = vrot.slane %v4246, 4
    %v4248 = vadd.f32 %v4246, %v4247
    %v4249 = vrot.slane %v4248, 2
    %v4250 = vadd.f32 %v4248, %v4249
    %v4251 = vrot.slane %v4250, 1
    %v4252 = vadd.f32 %v4250, %v4251
    %v4253 = vmul.f32 %v4252, %v2065
    %v4254 = vsub.f32 %v4240, %v4253
    %v4255 = vsub.f32 %v4241, %v4253
    %v4256 = vmul.f32 %v4254, %v4254
    %v4257 = vmul.f32 %v4255, %v4255
    %v4258 = vadd.f32 %v4256, %v4257
    %v4259 = vrot.slane %v4258, 4
    %v4260 = vadd.f32 %v4258, %v4259
    %v4261 = vrot.slane %v4260, 2
    %v4262 = vadd.f32 %v4260, %v4261
    %v4263 = vrot.slane %v4262, 1
    %v4264 = vadd.f32 %v4262, %v4263
    %v4265 = vmul.f32 %v4264, %v2065
    %v4266 = vadd.f32 %v4265, 1e-05
    %v4267 = vrsqrt.pop %v4266
    %v4268 = vmul.f32 %v4254, %v4267
    %v4269 = vmul.f32 %v4255, %v4267
    %v4271 = vlaneseq
    %v4272 = vshrl.u32 %v4271, 7
    %v4273 = vsub.s32 0, %v4272
    %v4274 = vrot.slane %v4243, %v4273
    %v4276 = vmul.f32 %v4268, %v4274
    %v4277 = vmul.f32 %v4269, %v4274
    %v4279 = vlaneseq
    %v4280 = vshrl.u32 %v4279, 7
    %v4281 = vsub.s32 0, %v4280
    %v4282 = vrot.slane %v4245, %v4281
    %v4284 = vadd.f32 %v4276, %v4282
    %v4285 = vadd.f32 %v4277, %v4282
    %s4286 = scalar_lea.vmem [#allocation7], 256
    %v4287 = vld [vmem:[%s4286] sm:$0xff]
    %v4288 = vld [vmem:[%s4286 + $0x8] sm:$0xff]
    %v4289 = vld [vmem:[%s4286 + $0x10] sm:$0xff]
    %v4290 = vld [vmem:[%s4286 + $0x18] sm:$0xff]
    %v4291 = vld [vmem:[%s4286 + $0x20] sm:$0xff]
    %v4292 = vld [vmem:[%s4286 + $0x28] sm:$0xff]
    %v4293 = vld [vmem:[%s4286 + $0x30] sm:$0xff]
    %v4294 = vld [vmem:[%s4286 + $0x38] sm:$0xff]
    %v4295 = vld [vmem:[%s4286 + $0x40] sm:$0xff]
    %v4296 = vld [vmem:[%s4286 + $0x48] sm:$0xff]
    %v4297 = vld [vmem:[%s4286 + $0x50] sm:$0xff]
    %v4298 = vld [vmem:[%s4286 + $0x58] sm:$0xff]
    %v4299 = vld [vmem:[%s4286 + $0x60] sm:$0xff]
    %v4300 = vld [vmem:[%s4286 + $0x68] sm:$0xff]
    %v4301 = vld [vmem:[%s4286 + $0x70] sm:$0xff]
    %v4302 = vld [vmem:[%s4286 + $0x78] sm:$0xff]
    %v4303 = vld [vmem:[%s4286 + $0x80] sm:$0xff]
    %v4304 = vld [vmem:[%s4286 + $0x88] sm:$0xff]
    %v4305 = vld [vmem:[%s4286 + $0x90] sm:$0xff]
    %v4306 = vld [vmem:[%s4286 + $0x98] sm:$0xff]
    %v4307 = vld [vmem:[%s4286 + $0xa0] sm:$0xff]
    %v4308 = vld [vmem:[%s4286 + $0xa8] sm:$0xff]
    %v4309 = vld [vmem:[%s4286 + $0xb0] sm:$0xff]
    %v4310 = vld [vmem:[%s4286 + $0xb8] sm:$0xff]
    %v4311 = vld [vmem:[%s4286 + $0xc0] sm:$0xff]
    %v4312 = vld [vmem:[%s4286 + $0xc8] sm:$0xff]
    %v4313 = vld [vmem:[%s4286 + $0xd0] sm:$0xff]
    %v4314 = vld [vmem:[%s4286 + $0xd8] sm:$0xff]
    %v4315 = vld [vmem:[%s4286 + $0xe0] sm:$0xff]
    %v4316 = vld [vmem:[%s4286 + $0xe8] sm:$0xff]
    %v4317 = vld [vmem:[%s4286 + $0xf0] sm:$0xff]
    %v4318 = vld [vmem:[%s4286 + $0xf8] sm:$0xff]
    %s4319 = scalar_lea.vmem %s8, 2
    %v4320 = vld [vmem:[%s4319] sm:$0x3]
    %v4322 = vlaneseq
    %v4323 = vshrl.u32 %v4322, 7
    %v4324 = vsub.s32 0, %v4323
    %v4325 = vrot.slane %v4320, %v4324
    %v4326 = vlaneseq
    %v4327 = vshrl.u32 %v4326, 7
    %v4328 = vsub.s32 1, %v4327
    %v4329 = vrot.slane %v4320, %v4328
    %4332 = vmatprep.subr.mxu0 %v4318
    %4333 = vmatpush1.msra.mxu0 %v4317
    %4334 = vmatprep.subr.mxu0 %v4316
    %4335 = vmatpush1.msra.mxu0 %v4315
    %4336 = vmatprep.subr.mxu0 %v4314
    %4337 = vmatpush1.msra.mxu0 %v4313
    %4338 = vmatprep.subr.mxu0 %v4312
    %4339 = vmatpush1.msra.mxu0 %v4311
    %4340 = vmatprep.subr.mxu0 %v4310
    %4341 = vmatpush1.msra.mxu0 %v4309
    %4342 = vmatprep.subr.mxu0 %v4308
    %4343 = vmatpush1.msra.mxu0 %v4307
    %4344 = vmatprep.subr.mxu0 %v4306
    %4345 = vmatpush1.msra.mxu0 %v4305
    %4346 = vmatprep.subr.mxu0 %v4304
    %4347 = vmatpush1.msra.mxu0 %v4303
    %4348 = vmatprep.subr.mxu0 %v4302
    %4349 = vmatpush1.msra.mxu0 %v4301
    %4350 = vmatprep.subr.mxu0 %v4300
    %4351 = vmatpush1.msra.mxu0 %v4299
    %4352 = vmatprep.subr.mxu0 %v4298
    %4353 = vmatpush1.msra.mxu0 %v4297
    %4354 = vmatprep.subr.mxu0 %v4296
    %4355 = vmatpush1.msra.mxu0 %v4295
    %4356 = vmatprep.subr.mxu0 %v4294
    %4357 = vmatpush1.msra.mxu0 %v4293
    %4358 = vmatprep.subr.mxu0 %v4292
    %4359 = vmatpush1.msra.mxu0 %v4291
    %4360 = vmatprep.subr.mxu0 %v4290
    %4361 = vmatpush1.msra.mxu0 %v4289
    %4362 = vmatprep.subr.mxu0 %v4288
    %4363 = vmatpush1.msra.mxu0 %v4287
    %4364 = vmatprep.subr.mxu0 0.0
    %4365 = vmatpush2.msra.mxu0 0.0
    %4366 = vmatprep.subr.mxu0 0.0
    %4367 = vmatpush2.msra.mxu0 0.0
    %4368 = vmatprep.subr.mxu0 0.0
    %4369 = vmatpush2.msra.mxu0 0.0
    %4370 = vmatprep.subr.mxu0 0.0
    %4371 = vmatpush2.msra.mxu0 0.0
    %4372 = vmatprep.subr.mxu0 0.0
    %4373 = vmatpush2.msra.mxu0 0.0
    %4374 = vmatprep.subr.mxu0 0.0
    %4375 = vmatpush2.msra.mxu0 0.0
    %4376 = vmatprep.subr.mxu0 0.0
    %4377 = vmatpush2.msra.mxu0 0.0
    %4378 = vmatprep.subr.mxu0 0.0
    %4379 = vmatpush2.msra.mxu0 0.0
    %4380 = vmatprep.subr.mxu0 0.0
    %4381 = vmatpush2.msra.mxu0 0.0
    %4382 = vmatprep.subr.mxu0 0.0
    %4383 = vmatpush2.msra.mxu0 0.0
    %4384 = vmatprep.subr.mxu0 0.0
    %4385 = vmatpush2.msra.mxu0 0.0
    %4386 = vmatprep.subr.mxu0 0.0
    %4387 = vmatpush2.msra.mxu0 0.0
    %4388 = vmatprep.subr.mxu0 0.0
    %4389 = vmatpush2.msra.mxu0 0.0
    %4390 = vmatprep.subr.mxu0 0.0
    %4391 = vmatpush2.msra.mxu0 0.0
    %4392 = vmatprep.subr.mxu0 0.0
    %4393 = vmatpush2.msra.mxu0 0.0
    %4394 = vmatprep.subr.mxu0 0.0
    %4395 = vmatpush2.msra.mxu0 0.0
    %4396 = vmatprep.mubr.f32.mxu0 0.0
    %4397 = vmatmul.mubr.f32.gmra.mxu0 %v4284
    %v4398 = vpop.f32.mrf.mxu0
    %v4399 = vadd.f32 %v4325, %v4398
    %v4400 = vpop.f32.mrf.mxu0
    %v4401 = vadd.f32 %v4329, %v4400
    %4402 = vmatprep.mubr.f32.mxu0 0.0
    %4403 = vmatmul.mubr.f32.gmra.mxu0 %v4285
    %v4404 = vpop.f32.mrf.mxu0
    %v4405 = vadd.f32 %v4325, %v4404
    %v4406 = vpop.f32.mrf.mxu0
    %v4407 = vadd.f32 %v4329, %v4406
    %4408 = vdwg.mxu0
    %v4409 = vmax.f32 %v4399, 0.0
    %v4410 = vmax.f32 %v4401, 0.0
    %v4411 = vmax.f32 %v4405, 0.0
    %v4412 = vmax.f32 %v4407, 0.0
    %s4413 = scalar_lea.vmem [#allocation8], 256
    %v4414 = vld [vmem:[%s4413] sm:$0xff]
    %v4415 = vld [vmem:[%s4413 + $0x8] sm:$0xff]
    %v4416 = vld [vmem:[%s4413 + $0x10] sm:$0xff]
    %v4417 = vld [vmem:[%s4413 + $0x18] sm:$0xff]
    %v4418 = vld [vmem:[%s4413 + $0x20] sm:$0xff]
    %v4419 = vld [vmem:[%s4413 + $0x28] sm:$0xff]
    %v4420 = vld [vmem:[%s4413 + $0x30] sm:$0xff]
    %v4421 = vld [vmem:[%s4413 + $0x38] sm:$0xff]
    %v4422 = vld [vmem:[%s4413 + $0x40] sm:$0xff]
    %v4423 = vld [vmem:[%s4413 + $0x48] sm:$0xff]
    %v4424 = vld [vmem:[%s4413 + $0x50] sm:$0xff]
    %v4425 = vld [vmem:[%s4413 + $0x58] sm:$0xff]
    %v4426 = vld [vmem:[%s4413 + $0x60] sm:$0xff]
    %v4427 = vld [vmem:[%s4413 + $0x68] sm:$0xff]
    %v4428 = vld [vmem:[%s4413 + $0x70] sm:$0xff]
    %v4429 = vld [vmem:[%s4413 + $0x78] sm:$0xff]
    %v4430 = vld [vmem:[%s4413 + $0x80] sm:$0xff]
    %v4431 = vld [vmem:[%s4413 + $0x88] sm:$0xff]
    %v4432 = vld [vmem:[%s4413 + $0x90] sm:$0xff]
    %v4433 = vld [vmem:[%s4413 + $0x98] sm:$0xff]
    %v4434 = vld [vmem:[%s4413 + $0xa0] sm:$0xff]
    %v4435 = vld [vmem:[%s4413 + $0xa8] sm:$0xff]
    %v4436 = vld [vmem:[%s4413 + $0xb0] sm:$0xff]
    %v4437 = vld [vmem:[%s4413 + $0xb8] sm:$0xff]
    %v4438 = vld [vmem:[%s4413 + $0xc0] sm:$0xff]
    %v4439 = vld [vmem:[%s4413 + $0xc8] sm:$0xff]
    %v4440 = vld [vmem:[%s4413 + $0xd0] sm:$0xff]
    %v4441 = vld [vmem:[%s4413 + $0xd8] sm:$0xff]
    %v4442 = vld [vmem:[%s4413 + $0xe0] sm:$0xff]
    %v4443 = vld [vmem:[%s4413 + $0xe8] sm:$0xff]
    %v4444 = vld [vmem:[%s4413 + $0xf0] sm:$0xff]
    %v4445 = vld [vmem:[%s4413 + $0xf8] sm:$0xff]
    %s4446 = scalar_lea.vmem %s10, 1
    %v4447 = vld [vmem:[%s4446] sm:$0x1]
    %v4449 = vlaneseq
    %v4450 = vshrl.u32 %v4449, 7
    %v4451 = vsub.s32 0, %v4450
    %v4452 = vrot.slane %v4447, %v4451
    %4454 = vmatprep.subr.mxu0 0.0
    %4455 = vmatpush1.msra.mxu0 %v4429
    %4456 = vmatprep.subr.mxu0 0.0
    %4457 = vmatpush1.msra.mxu0 %v4428
    %4458 = vmatprep.subr.mxu0 0.0
    %4459 = vmatpush1.msra.mxu0 %v4427
    %4460 = vmatprep.subr.mxu0 0.0
    %4461 = vmatpush1.msra.mxu0 %v4426
    %4462 = vmatprep.subr.mxu0 0.0
    %4463 = vmatpush1.msra.mxu0 %v4425
    %4464 = vmatprep.subr.mxu0 0.0
    %4465 = vmatpush1.msra.mxu0 %v4424
    %4466 = vmatprep.subr.mxu0 0.0
    %4467 = vmatpush1.msra.mxu0 %v4423
    %4468 = vmatprep.subr.mxu0 0.0
    %4469 = vmatpush1.msra.mxu0 %v4422
    %4470 = vmatprep.subr.mxu0 0.0
    %4471 = vmatpush1.msra.mxu0 %v4421
    %4472 = vmatprep.subr.mxu0 0.0
    %4473 = vmatpush1.msra.mxu0 %v4420
    %4474 = vmatprep.subr.mxu0 0.0
    %4475 = vmatpush1.msra.mxu0 %v4419
    %4476 = vmatprep.subr.mxu0 0.0
    %4477 = vmatpush1.msra.mxu0 %v4418
    %4478 = vmatprep.subr.mxu0 0.0
    %4479 = vmatpush1.msra.mxu0 %v4417
    %4480 = vmatprep.subr.mxu0 0.0
    %4481 = vmatpush1.msra.mxu0 %v4416
    %4482 = vmatprep.subr.mxu0 0.0
    %4483 = vmatpush1.msra.mxu0 %v4415
    %4484 = vmatprep.subr.mxu0 0.0
    %4485 = vmatpush1.msra.mxu0 %v4414
    %4486 = vmatprep.subr.mxu0 0.0
    %4487 = vmatpush2.msra.mxu0 %v4445
    %4488 = vmatprep.subr.mxu0 0.0
    %4489 = vmatpush2.msra.mxu0 %v4444
    %4490 = vmatprep.subr.mxu0 0.0
    %4491 = vmatpush2.msra.mxu0 %v4443
    %4492 = vmatprep.subr.mxu0 0.0
    %4493 = vmatpush2.msra.mxu0 %v4442
    %4494 = vmatprep.subr.mxu0 0.0
    %4495 = vmatpush2.msra.mxu0 %v4441
    %4496 = vmatprep.subr.mxu0 0.0
    %4497 = vmatpush2.msra.mxu0 %v4440
    %4498 = vmatprep.subr.mxu0 0.0
    %4499 = vmatpush2.msra.mxu0 %v4439
    %4500 = vmatprep.subr.mxu0 0.0
    %4501 = vmatpush2.msra.mxu0 %v4438
    %4502 = vmatprep.subr.mxu0 0.0
    %4503 = vmatpush2.msra.mxu0 %v4437
    %4504 = vmatprep.subr.mxu0 0.0
    %4505 = vmatpush2.msra.mxu0 %v4436
    %4506 = vmatprep.subr.mxu0 0.0
    %4507 = vmatpush2.msra.mxu0 %v4435
    %4508 = vmatprep.subr.mxu0 0.0
    %4509 = vmatpush2.msra.mxu0 %v4434
    %4510 = vmatprep.subr.mxu0 0.0
    %4511 = vmatpush2.msra.mxu0 %v4433
    %4512 = vmatprep.subr.mxu0 0.0
    %4513 = vmatpush2.msra.mxu0 %v4432
    %4514 = vmatprep.subr.mxu0 0.0
    %4515 = vmatpush2.msra.mxu0 %v4431
    %4516 = vmatprep.subr.mxu0 0.0
    %4517 = vmatpush2.msra.mxu0 %v4430
    %4518 = vmatprep.mubr.f32.mxu0 %v4410
    %4519 = vmatmul.mubr.f32.gmra.mxu0 %v4409
    %v4520 = vpop.f32.mrf.mxu0
    %v4521 = vadd.f32 %v4452, %v4520
    %v4522 = vpop.f32.mrf.mxu0
    %4523 = vmatprep.mubr.f32.mxu0 %v4412
    %4524 = vmatmul.mubr.f32.gmra.mxu0 %v4411
    %v4525 = vpop.f32.mrf.mxu0
    %v4526 = vadd.f32 %v4452, %v4525
    %v4527 = vpop.f32.mrf.mxu0
    %4528 = vdwg.mxu0
    %v4529 = vadd.f32 %v4284, %v4521
    %v4530 = vadd.f32 %v4285, %v4526
    %s4531 = scalar_lea.vmem %s11, 1
    %v4532 = vld [vmem:[%s4531] sm:$0x1]
    %s4533 = scalar_lea.vmem %s12, 1
    %v4534 = vld [vmem:[%s4533] sm:$0x1]
    %v4535 = vadd.f32 %v4529, %v4530
    %v4536 = vrot.slane %v4535, 4
    %v4537 = vadd.f32 %v4535, %v4536
    %v4538 = vrot.slane %v4537, 2
    %v4539 = vadd.f32 %v4537, %v4538
    %v4540 = vrot.slane %v4539, 1
    %v4541 = vadd.f32 %v4539, %v4540
    %v4542 = vmul.f32 %v4541, %v2065
    %v4543 = vsub.f32 %v4529, %v4542
    %v4544 = vsub.f32 %v4530, %v4542
    %v4545 = vmul.f32 %v4543, %v4543
    %v4546 = vmul.f32 %v4544, %v4544
    %v4547 = vadd.f32 %v4545, %v4546
    %v4548 = vrot.slane %v4547, 4
    %v4549 = vadd.f32 %v4547, %v4548
    %v4550 = vrot.slane %v4549, 2
    %v4551 = vadd.f32 %v4549, %v4550
    %v4552 = vrot.slane %v4551, 1
    %v4553 = vadd.f32 %v4551, %v4552
    %v4554 = vmul.f32 %v4553, %v2065
    %v4555 = vadd.f32 %v4554, 1e-05
    %v4556 = vrsqrt.pop %v4555
    %v4557 = vmul.f32 %v4543, %v4556
    %v4558 = vmul.f32 %v4544, %v4556
    %v4560 = vlaneseq
    %v4561 = vshrl.u32 %v4560, 7
    %v4562 = vsub.s32 0, %v4561
    %v4563 = vrot.slane %v4532, %v4562
    %v4565 = vmul.f32 %v4557, %v4563
    %v4566 = vmul.f32 %v4558, %v4563
    %v4568 = vlaneseq
    %v4569 = vshrl.u32 %v4568, 7
    %v4570 = vsub.s32 0, %v4569
    %v4571 = vrot.slane %v4534, %v4570
    %v4573 = vadd.f32 %v4565, %v4571
    %v4574 = vadd.f32 %v4566, %v4571
    %4575 = vst [vmem:[#allocation10] sm:$0xff] %v4573
    %4576 = vst [vmem:[#allocation10 + $0x8] sm:$0xff] %v4574
    // Predicated region
    $region70: #{agent_encoder.1} parent=1 // pred_check
      _
    $region71: #{agent_encoder.1} parent=1 // pred_check_branch
      %4578 = sbr.rel (0) target = $region73
    $region72: #{agent_encoder.1} parent=1 // pred_region
      %s4580 = ssub.s32 256, 256
      %4581 = vsyncadd [#allocation4], %s4580
      %s4582 = sshll.u32 [#allocation10], 4
      %s4583 = int_to_ptr.vmem [resolvable:$true] %s4582
      %4588 = dma.vmem_to_hbm [thread:$0]  %s4583, 256, %s13, [#allocation4], 128, 128, 8
    $region73: #{agent_encoder.1} parent=1 // pred_fallthru
      _
    // Predicated region
    $region74: #{agent_encoder.1} parent=1 // pred_check
      _
    $region75: #{agent_encoder.1} parent=1 // pred_check_branch
      %4590 = sbr.rel (0) target = $region77
    $region76: #{agent_encoder.1} parent=1 // pred_region
      %4591 = dma.done [#allocation4], 256
    $region77: #{agent_encoder.1} parent=1 // pred_fallthru
      _
    %4592 = vsyncpa [#allocation3], 1
    %4593 = vsyncpa [#allocation6], 1
    %4594 = vsyncpa [#allocation9], 1
    %4595 = vsyncpa [#allocation4], 1

</llo_original>
